<compile_context>
chip_gen: v6e
topology: v6e:2x2x1
jax: 0.10.0
libtpu: 0.0.40
codegen_flags: <defaults>
</compile_context>

<pallas_src>
import functools

import jax
import jax.numpy as jnp
from jax.experimental import pallas as pl
from jax.experimental.pallas import tpu as pltpu

_VMEM_LIMIT = 32 * 1024 * 1024   # explicit scoped-VMEM limit (safe on v5e/v6e/v7x)
_TILE_CAP = 512                  # rows per grid step (multiple of 16, sized for v7x VMEM)

_C1P = 128    # conv1 out-channels padded 20 -> 128 (unmasked stores)
_C2P = 128    # conv2 out-channels padded 50 -> 128
_F1P = 512    # fc1 out-features padded 500 -> 512
_F2P = 128    # fc2 out-features padded 10 -> 128 (lane-dense final store)
_NEG = -1.0e30  # bias for padded fc2 columns: exp() underflows to 0, softmax unchanged


def _round_up(x, m):
    return (x + m - 1) // m * m


def _row_tiling(m):
    """Row tile (multiple of 16 for bf16 sublane packing, <= _TILE_CAP) + padded row count."""
    tile = min(_TILE_CAP, _round_up(m, 16))
    return tile, _round_up(m, tile)


def _compiler_params():
    return pltpu.CompilerParams(
        dimension_semantics=("parallel",),
        vmem_limit_bytes=_VMEM_LIMIT,
    )


# ----------------------------- Pallas kernels ------------------------------


def _conv_mm_pool_kernel(p_ref, w_ref, b_ref, o_ref):
    # p_ref: (4, TILE, K) bf16 -- the 4 pooling-window shifts of the im2col rows.
    # One MXU dot per shift; 2x2 max-pool == elementwise max of the 4 f32 accumulators,
    # then bias + ReLU (f32 epilogue), stored bf16.
    w = w_ref[...]
    acc = jnp.dot(p_ref[0], w, preferred_element_type=jnp.float32)
    for g in range(1, 4):
        acc = jnp.maximum(acc, jnp.dot(p_ref[g], w, preferred_element_type=jnp.float32))
    o_ref[...] = jnp.maximum(acc + b_ref[...], 0.0).astype(o_ref.dtype)


def _fc_head_kernel(x_ref, w1_ref, b1_ref, w2_ref, b2_ref, o_ref):
    # Fused fc1 + bias + ReLU + fc2 + bias + log_softmax.  fc1 activation stays in VMEM.
    h = jnp.dot(x_ref[...], w1_ref[...], preferred_element_type=jnp.float32)
    h = jnp.maximum(h + b1_ref[...], 0.0)
    logits = jnp.dot(h.astype(jnp.bfloat16), w2_ref[...],
                     preferred_element_type=jnp.float32) + b2_ref[...]
    m = jnp.max(logits, axis=-1, keepdims=True)
    s = logits - m
    lse = jnp.log(jnp.sum(jnp.exp(s), axis=-1, keepdims=True))
    o_ref[...] = (s - lse).astype(o_ref.dtype)


# ------------------------------- wrappers -----------------------------------


def conv2d_relu_pool(x_nhwc, w_mat, b_vec, kh=5, kw=5):
    """Fused conv(stride 1, valid) + bias + ReLU + maxpool(2, 2).  NHWC in / NHWC out.

    x_nhwc: (N, H, W, Cin).  w_mat: (kh*kw*Cin, Cout_pad) bf16.  b_vec: (Cout_pad,) f32.
    Returns (N, Ho//2, Wo//2, Cout_pad) bf16; padded channels are exact zeros.
    """
    N, H, W, Cin = x_nhwc.shape
    K, Cp = w_mat.shape
    Ho, Wo = H - kh + 1, W - kw + 1
    Hp, Wp = Ho // 2, Wo // 2

    # im2col (XLA glue): feature order (ki, kj, c) matches the prepared weight layout.
    # TODO(synk): in-kernel patch extraction would remove the 25x HBM expansion, but needs
    # lane-relayout handling for Cin < 128; kept as XLA glue for robustness.
    cols = []
    for ki in range(kh):
        for kj in range(kw):
            cols.append(x_nhwc[:, ki:ki + Ho, kj:kj + Wo, :])
    patches = jnp.concatenate(cols, axis=-1)                       # (N, Ho, Wo, K)

    # 4 pooling-window shifts; group g, row r index the same pooled output pixel.
    groups = [patches[:, di::2, dj::2, :].reshape(N * Hp * Wp, K)
              for di in (0, 1) for dj in (0, 1)]
    pg = jnp.stack(groups, axis=0).astype(jnp.bfloat16)            # (4, M, K)

    M = N * Hp * Wp
    tile, mp = _row_tiling(M)
    pg = jnp.pad(pg, ((0, 0), (0, mp - M), (0, 0)))

    out = pl.pallas_call(
        _conv_mm_pool_kernel,
        out_shape=jax.ShapeDtypeStruct((mp, Cp), jnp.bfloat16),
        grid=(mp // tile,),
        in_specs=[
            pl.BlockSpec((4, tile, K), lambda i: (0, i, 0)),
            pl.BlockSpec((K, Cp), lambda i: (0, 0)),
            pl.BlockSpec((1, Cp), lambda i: (0, 0)),
        ],
        out_specs=pl.BlockSpec((tile, Cp), lambda i: (i, 0)),
        compiler_params=_compiler_params(),
    )(pg, w_mat, b_vec.reshape(1, Cp))
    return out[:M].reshape(N, Hp, Wp, Cp)


def fc_head(x, w1, b1, w2, b2):
    """Fused fc1(+ReLU) -> fc2 -> log_softmax.  x: (M, 800).  Returns (M, 10) f32 log-probs."""
    M, K = x.shape
    tile, mp = _row_tiling(M)
    xp = jnp.pad(x.astype(jnp.bfloat16), ((0, mp - M), (0, 0)))
    out = pl.pallas_call(
        _fc_head_kernel,
        out_shape=jax.ShapeDtypeStruct((mp, _F2P), jnp.float32),
        grid=(mp // tile,),
        in_specs=[
            pl.BlockSpec((tile, K), lambda i: (i, 0)),
            pl.BlockSpec((K, _F1P), lambda i: (0, 0)),
            pl.BlockSpec((1, _F1P), lambda i: (0, 0)),
            pl.BlockSpec((_F1P, _F2P), lambda i: (0, 0)),
            pl.BlockSpec((1, _F2P), lambda i: (0, 0)),
        ],
        out_specs=pl.BlockSpec((tile, _F2P), lambda i: (i, 0)),
        compiler_params=_compiler_params(),
    )(xp, w1, b1.reshape(1, _F1P), w2, b2.reshape(1, _F2P))
    return out[:M, :10]


# ------------------------------- parameters ---------------------------------


def init_params(key):
    # Deterministic init mirroring torch's default U(-1/sqrt(fan_in), 1/sqrt(fan_in)),
    # stored in torch's native layouts.
    def uniform(k, shape, fan_in):
        bound = 1.0 / jnp.sqrt(jnp.float32(fan_in))
        return jax.random.uniform(k, shape, jnp.float32, -bound, bound)

    ks = jax.random.split(key, 8)
    return {
        "conv1_w": uniform(ks[0], (20, 1, 5, 5), 1 * 5 * 5),
        "conv1_b": uniform(ks[1], (20,), 1 * 5 * 5),
        "conv2_w": uniform(ks[2], (50, 20, 5, 5), 20 * 5 * 5),
        "conv2_b": uniform(ks[3], (50,), 20 * 5 * 5),
        "fc1_w": uniform(ks[4], (500, 4 * 4 * 50), 4 * 4 * 50),
        "fc1_b": uniform(ks[5], (500,), 4 * 4 * 50),
        "fc2_w": uniform(ks[6], (10, 500), 500),
        "fc2_b": uniform(ks[7], (10,), 500),
    }


def prepare_params(p):
    """One-time re-layout of torch-layout params into kernel-ready (bf16, lane-padded) form."""
    def conv_mat(w, b, cpad):
        cout, cin, kh, kw = w.shape
        m = jnp.transpose(w, (2, 3, 1, 0)).reshape(kh * kw * cin, cout)   # rows = (ki, kj, c)
        m = jnp.pad(m, ((0, 0), (0, cpad - cout))).astype(jnp.bfloat16)
        return m, jnp.pad(b, (0, cpad - cout))

    c1w, c1b = conv_mat(p["conv1_w"], p["conv1_b"], _C1P)
    c2w, c2b = conv_mat(p["conv2_w"], p["conv2_b"], _C2P)

    # fc1: consume the NHWC-flattened (h, w, c) activations directly -- the reference
    # model's channel-major flatten is folded into this weight permutation.
    f1 = p["fc1_w"].reshape(500, 50, 4, 4)                                 # (out, c, h, w)
    f1 = jnp.transpose(f1, (2, 3, 1, 0)).reshape(4 * 4 * 50, 500)          # rows = (h, w, c)
    f1 = jnp.pad(f1, ((0, 0), (0, _F1P - 500))).astype(jnp.bfloat16)
    f1b = jnp.pad(p["fc1_b"], (0, _F1P - 500))

    # fc2: pre-transposed; contraction dim padded to fc1's padded width (zero rows),
    # output dim padded to 128 with zero weights + large-negative bias (softmax-neutral).
    f2 = jnp.pad(p["fc2_w"].T, ((0, _F1P - 500), (0, _F2P - 10))).astype(jnp.bfloat16)
    f2b = jnp.concatenate(
        [p["fc2_b"], jnp.full((_F2P - 10,), _NEG, jnp.float32)])

    return {"conv1_w": c1w, "conv1_b": c1b, "conv2_w": c2w, "conv2_b": c2b,
            "fc1_w": f1, "fc1_b": f1b, "fc2_w": f2, "fc2_b": f2b}


# ------------------------------- forward ------------------------------------


def net_forward(kp, x_nchw):
    x = jnp.transpose(x_nchw, (0, 2, 3, 1))                     # NCHW -> NHWC, once at input
    x = conv2d_relu_pool(x, kp["conv1_w"], kp["conv1_b"])       # (N, 12, 12, 128) bf16
    x = x[..., :20]                                             # drop zero-padded channels
    x = conv2d_relu_pool(x, kp["conv2_w"], kp["conv2_b"])       # (N, 4, 4, 128) bf16
    x = x[..., :50]
    n = x.shape[0]
    x = x.reshape(n, 4 * 4 * 50)                                # NHWC flatten (fc1 permuted to match)
    return fc_head(x, kp["fc1_w"], kp["fc1_b"], kp["fc2_w"], kp["fc2_b"])   # (N, 10)


# ------------------------- pure-JAX reference (f32) --------------------------


def reference_forward(p, x_nchw):
    def conv(x, w, b):
        y = jax.lax.conv_general_dilated(
            x, w, (1, 1), "VALID", dimension_numbers=("NCHW", "OIHW", "NCHW"))
        return y + b.reshape(1, -1, 1, 1)

    def pool(x):
        return jax.lax.reduce_window(x, -jnp.inf, jax.lax.max,
                                     (1, 1, 2, 2), (1, 1, 2, 2), "VALID")

    x = pool(jax.nn.relu(conv(x_nchw, p["conv1_w"], p["conv1_b"])))
    x = pool(jax.nn.relu(conv(x, p["conv2_w"], p["conv2_b"])))
    x = x.reshape(x.shape[0], -1)                               # NCHW flatten (c, h, w)
    x = jax.nn.relu(x @ p["fc1_w"].T + p["fc1_b"])
    x = x @ p["fc2_w"].T + p["fc2_b"]
    return jax.nn.log_softmax(x, axis=-1)


if __name__ == "__main__":
    key = jax.random.PRNGKey(0)
    pkey, xkey = jax.random.split(key)
    params = init_params(pkey)
    kparams = prepare_params(params)     # one-time weight re-layout, outside the hot path
    # Input spatial size must be 28x28 so the flattened features are 4*4*50 = 800.
    x = jax.random.normal(xkey, (2, 1, 28, 28), jnp.float32)

    out = jax.jit(net_forward)(kparams, x)
    jax.block_until_ready(out)
    assert out.shape == (2, 10)
    assert bool(jnp.all(jnp.isfinite(out)))
    # log_softmax rows must exponentiate to a probability distribution.
    assert jnp.allclose(jnp.sum(jnp.exp(out), axis=-1), 1.0, atol=1e-3)

    # Correctness vs. a pure-JAX f32 reference (tolerance accounts for bf16 MXU operands).
    ref = jax.jit(reference_forward)(params, x)
    jax.block_until_ready(ref)
    err = float(jnp.max(jnp.abs(out - ref)))
    assert err < 1e-1, f"max abs log-prob error {err}"

    print("KERNEL_OK")
</pallas_src>

<mosaic_0001>
module attributes {stable_mosaic.version = 11 : i64} {
  func.func @_conv_mm_pool_kernel(%arg0: i32, %arg1: memref<4x288x25xbf16, #tpu.memory_space<vmem>>, %arg2: memref<25x128xbf16, #tpu.memory_space<vmem>>, %arg3: memref<1x128xf32, #tpu.memory_space<vmem>>, %arg4: memref<288x128xbf16, #tpu.memory_space<vmem>>) attributes {dimension_semantics = [#tpu.dimension_semantics<parallel>], iteration_bounds = array<i64: 1>, scalar_prefetch = 0 : i64, scratch_operands = 0 : i64, tpu.core_type = #tpu.core_type<tc>, window_params = [{transform_indices = @transform_0, window_bounds = array<i64: 4, 288, 25>}, {pipeline_mode = #tpu.pipeline_mode<synchronous>, transform_indices = @transform_1, window_bounds = array<i64: 25, 128>}, {pipeline_mode = #tpu.pipeline_mode<synchronous>, transform_indices = @transform_2, window_bounds = array<i64: 1, 128>}, {transform_indices = @transform_3, window_bounds = array<i64: 288, 128>}]} {
    %c0 = arith.constant 0 : index
    %c0_0 = arith.constant 0 : index
    %0 = vector.load %arg2[%c0, %c0_0] : memref<25x128xbf16, #tpu.memory_space<vmem>>, vector<25x128xbf16>
    %c0_1 = arith.constant 0 : index
    %c0_2 = arith.constant 0 : index
    %c0_3 = arith.constant 0 : index
    %1 = vector.load %arg1[%c0_1, %c0_2, %c0_3] : memref<4x288x25xbf16, #tpu.memory_space<vmem>>, vector<1x288x25xbf16>
    %2 = vector.shape_cast %1 : vector<1x288x25xbf16> to vector<288x25xbf16>
    %cst = arith.constant dense<0.000000e+00> : vector<288x128xf32>
    %3 = tpu.matmul %2, %0, %cst {dimension_numbers = #tpu.dot_dimension_numbers<[1], [0], [0], [1], [0, 0, 1, 1], [], []>} : vector<288x25xbf16>, vector<25x128xbf16>, vector<288x128xf32> -> vector<288x128xf32>
    %c1 = arith.constant 1 : index
    %c0_4 = arith.constant 0 : index
    %c0_5 = arith.constant 0 : index
    %4 = vector.load %arg1[%c1, %c0_4, %c0_5] : memref<4x288x25xbf16, #tpu.memory_space<vmem>>, vector<1x288x25xbf16>
    %5 = vector.shape_cast %4 : vector<1x288x25xbf16> to vector<288x25xbf16>
    %cst_6 = arith.constant dense<0.000000e+00> : vector<288x128xf32>
    %6 = tpu.matmul %5, %0, %cst_6 {dimension_numbers = #tpu.dot_dimension_numbers<[1], [0], [0], [1], [0, 0, 1, 1], [], []>} : vector<288x25xbf16>, vector<25x128xbf16>, vector<288x128xf32> -> vector<288x128xf32>
    %7 = arith.maximumf %3, %6 : vector<288x128xf32>
    %c2 = arith.constant 2 : index
    %c0_7 = arith.constant 0 : index
    %c0_8 = arith.constant 0 : index
    %8 = vector.load %arg1[%c2, %c0_7, %c0_8] : memref<4x288x25xbf16, #tpu.memory_space<vmem>>, vector<1x288x25xbf16>
    %9 = vector.shape_cast %8 : vector<1x288x25xbf16> to vector<288x25xbf16>
    %cst_9 = arith.constant dense<0.000000e+00> : vector<288x128xf32>
    %10 = tpu.matmul %9, %0, %cst_9 {dimension_numbers = #tpu.dot_dimension_numbers<[1], [0], [0], [1], [0, 0, 1, 1], [], []>} : vector<288x25xbf16>, vector<25x128xbf16>, vector<288x128xf32> -> vector<288x128xf32>
    %11 = arith.maximumf %7, %10 : vector<288x128xf32>
    %c3 = arith.constant 3 : index
    %c0_10 = arith.constant 0 : index
    %c0_11 = arith.constant 0 : index
    %12 = vector.load %arg1[%c3, %c0_10, %c0_11] : memref<4x288x25xbf16, #tpu.memory_space<vmem>>, vector<1x288x25xbf16>
    %13 = vector.shape_cast %12 : vector<1x288x25xbf16> to vector<288x25xbf16>
    %cst_12 = arith.constant dense<0.000000e+00> : vector<288x128xf32>
    %14 = tpu.matmul %13, %0, %cst_12 {dimension_numbers = #tpu.dot_dimension_numbers<[1], [0], [0], [1], [0, 0, 1, 1], [], []>} : vector<288x25xbf16>, vector<25x128xbf16>, vector<288x128xf32> -> vector<288x128xf32>
    %15 = arith.maximumf %11, %14 : vector<288x128xf32>
    %c0_13 = arith.constant 0 : index
    %c0_14 = arith.constant 0 : index
    %16 = vector.load %arg3[%c0_13, %c0_14] : memref<1x128xf32, #tpu.memory_space<vmem>>, vector<1x128xf32>
    %17 = vector.broadcast %16 : vector<1x128xf32> to vector<288x128xf32>
    %18 = arith.addf %15, %17 : vector<288x128xf32>
    %cst_15 = arith.constant 0.000000e+00 : f32
    %19 = vector.broadcast %cst_15 : f32 to vector<288x128xf32>
    %20 = arith.maximumf %18, %19 : vector<288x128xf32>
    %21 = arith.truncf %20 : vector<288x128xf32> to vector<288x128xbf16>
    %c0_16 = arith.constant 0 : index
    %c0_17 = arith.constant 0 : index
    %22 = vector.load %arg4[%c0_16, %c0_17] : memref<288x128xbf16, #tpu.memory_space<vmem>>, vector<288x128xbf16>
    tpu.vector_store %arg4[%c0_16, %c0_17], %21 {strides = array<i32>} : memref<288x128xbf16, #tpu.memory_space<vmem>>, vector<288x128xbf16>,
    return
  }
  func.func @transform_0(%arg0: i32) -> (i32, i32, i32) {
    %c0_i32 = arith.constant 0 : i32
    %c0_i32_0 = arith.constant 0 : i32
    %c0_i32_1 = arith.constant 0 : i32
    return %c0_i32, %arg0, %c0_i32_0 : i32, i32, i32
  }
  func.func @transform_1(%arg0: i32) -> (i32, i32) {
    %c0_i32 = arith.constant 0 : i32
    %c0_i32_0 = arith.constant 0 : i32
    %c0_i32_1 = arith.constant 0 : i32
    return %c0_i32, %c0_i32_0 : i32, i32
  }
  func.func @transform_2(%arg0: i32) -> (i32, i32) {
    %c0_i32 = arith.constant 0 : i32
    %c0_i32_0 = arith.constant 0 : i32
    %c0_i32_1 = arith.constant 0 : i32
    return %c0_i32, %c0_i32_0 : i32, i32
  }
  func.func @transform_3(%arg0: i32) -> (i32, i32) {
    %c0_i32 = arith.constant 0 : i32
    %c0_i32_0 = arith.constant 0 : i32
    return %arg0, %c0_i32 : i32, i32
  }
}

module attributes {stable_mosaic.version = 11 : i64} {
  func.func @_conv_mm_pool_kernel(%arg0: i32, %arg1: memref<4x32x500xbf16, #tpu.memory_space<vmem>>, %arg2: memref<500x128xbf16, #tpu.memory_space<vmem>>, %arg3: memref<1x128xf32, #tpu.memory_space<vmem>>, %arg4: memref<32x128xbf16, #tpu.memory_space<vmem>>) attributes {dimension_semantics = [#tpu.dimension_semantics<parallel>], iteration_bounds = array<i64: 1>, scalar_prefetch = 0 : i64, scratch_operands = 0 : i64, tpu.core_type = #tpu.core_type<tc>, window_params = [{transform_indices = @transform_0, window_bounds = array<i64: 4, 32, 500>}, {pipeline_mode = #tpu.pipeline_mode<synchronous>, transform_indices = @transform_1, window_bounds = array<i64: 500, 128>}, {pipeline_mode = #tpu.pipeline_mode<synchronous>, transform_indices = @transform_2, window_bounds = array<i64: 1, 128>}, {transform_indices = @transform_3, window_bounds = array<i64: 32, 128>}]} {
    %c0 = arith.constant 0 : index
    %c0_0 = arith.constant 0 : index
    %0 = vector.load %arg2[%c0, %c0_0] : memref<500x128xbf16, #tpu.memory_space<vmem>>, vector<500x128xbf16>
    %c0_1 = arith.constant 0 : index
    %c0_2 = arith.constant 0 : index
    %c0_3 = arith.constant 0 : index
    %1 = vector.load %arg1[%c0_1, %c0_2, %c0_3] : memref<4x32x500xbf16, #tpu.memory_space<vmem>>, vector<1x32x500xbf16>
    %2 = vector.shape_cast %1 : vector<1x32x500xbf16> to vector<32x500xbf16>
    %cst = arith.constant dense<0.000000e+00> : vector<32x128xf32>
    %3 = tpu.matmul %2, %0, %cst {dimension_numbers = #tpu.dot_dimension_numbers<[1], [0], [0], [1], [0, 0, 1, 1], [], []>} : vector<32x500xbf16>, vector<500x128xbf16>, vector<32x128xf32> -> vector<32x128xf32>
    %c1 = arith.constant 1 : index
    %c0_4 = arith.constant 0 : index
    %c0_5 = arith.constant 0 : index
    %4 = vector.load %arg1[%c1, %c0_4, %c0_5] : memref<4x32x500xbf16, #tpu.memory_space<vmem>>, vector<1x32x500xbf16>
    %5 = vector.shape_cast %4 : vector<1x32x500xbf16> to vector<32x500xbf16>
    %cst_6 = arith.constant dense<0.000000e+00> : vector<32x128xf32>
    %6 = tpu.matmul %5, %0, %cst_6 {dimension_numbers = #tpu.dot_dimension_numbers<[1], [0], [0], [1], [0, 0, 1, 1], [], []>} : vector<32x500xbf16>, vector<500x128xbf16>, vector<32x128xf32> -> vector<32x128xf32>
    %7 = arith.maximumf %3, %6 : vector<32x128xf32>
    %c2 = arith.constant 2 : index
    %c0_7 = arith.constant 0 : index
    %c0_8 = arith.constant 0 : index
    %8 = vector.load %arg1[%c2, %c0_7, %c0_8] : memref<4x32x500xbf16, #tpu.memory_space<vmem>>, vector<1x32x500xbf16>
    %9 = vector.shape_cast %8 : vector<1x32x500xbf16> to vector<32x500xbf16>
    %cst_9 = arith.constant dense<0.000000e+00> : vector<32x128xf32>
    %10 = tpu.matmul %9, %0, %cst_9 {dimension_numbers = #tpu.dot_dimension_numbers<[1], [0], [0], [1], [0, 0, 1, 1], [], []>} : vector<32x500xbf16>, vector<500x128xbf16>, vector<32x128xf32> -> vector<32x128xf32>
    %11 = arith.maximumf %7, %10 : vector<32x128xf32>
    %c3 = arith.constant 3 : index
    %c0_10 = arith.constant 0 : index
    %c0_11 = arith.constant 0 : index
    %12 = vector.load %arg1[%c3, %c0_10, %c0_11] : memref<4x32x500xbf16, #tpu.memory_space<vmem>>, vector<1x32x500xbf16>
    %13 = vector.shape_cast %12 : vector<1x32x500xbf16> to vector<32x500xbf16>
    %cst_12 = arith.constant dense<0.000000e+00> : vector<32x128xf32>
    %14 = tpu.matmul %13, %0, %cst_12 {dimension_numbers = #tpu.dot_dimension_numbers<[1], [0], [0], [1], [0, 0, 1, 1], [], []>} : vector<32x500xbf16>, vector<500x128xbf16>, vector<32x128xf32> -> vector<32x128xf32>
    %15 = arith.maximumf %11, %14 : vector<32x128xf32>
    %c0_13 = arith.constant 0 : index
    %c0_14 = arith.constant 0 : index
    %16 = vector.load %arg3[%c0_13, %c0_14] : memref<1x128xf32, #tpu.memory_space<vmem>>, vector<1x128xf32>
    %17 = vector.broadcast %16 : vector<1x128xf32> to vector<32x128xf32>
    %18 = arith.addf %15, %17 : vector<32x128xf32>
    %cst_15 = arith.constant 0.000000e+00 : f32
    %19 = vector.broadcast %cst_15 : f32 to vector<32x128xf32>
    %20 = arith.maximumf %18, %19 : vector<32x128xf32>
    %21 = arith.truncf %20 : vector<32x128xf32> to vector<32x128xbf16>
    %c0_16 = arith.constant 0 : index
    %c0_17 = arith.constant 0 : index
    %22 = vector.load %arg4[%c0_16, %c0_17] : memref<32x128xbf16, #tpu.memory_space<vmem>>, vector<32x128xbf16>
    tpu.vector_store %arg4[%c0_16, %c0_17], %21 {strides = array<i32>} : memref<32x128xbf16, #tpu.memory_space<vmem>>, vector<32x128xbf16>,
    return
  }
  func.func @transform_0(%arg0: i32) -> (i32, i32, i32) {
    %c0_i32 = arith.constant 0 : i32
    %c0_i32_0 = arith.constant 0 : i32
    %c0_i32_1 = arith.constant 0 : i32
    return %c0_i32, %arg0, %c0_i32_0 : i32, i32, i32
  }
  func.func @transform_1(%arg0: i32) -> (i32, i32) {
    %c0_i32 = arith.constant 0 : i32
    %c0_i32_0 = arith.constant 0 : i32
    %c0_i32_1 = arith.constant 0 : i32
    return %c0_i32, %c0_i32_0 : i32, i32
  }
  func.func @transform_2(%arg0: i32) -> (i32, i32) {
    %c0_i32 = arith.constant 0 : i32
    %c0_i32_0 = arith.constant 0 : i32
    %c0_i32_1 = arith.constant 0 : i32
    return %c0_i32, %c0_i32_0 : i32, i32
  }
  func.func @transform_3(%arg0: i32) -> (i32, i32) {
    %c0_i32 = arith.constant 0 : i32
    %c0_i32_0 = arith.constant 0 : i32
    return %arg0, %c0_i32 : i32, i32
  }
}

module attributes {stable_mosaic.version = 11 : i64} {
  func.func @_fc_head_kernel(%arg0: i32, %arg1: memref<16x800xbf16, #tpu.memory_space<vmem>>, %arg2: memref<800x512xbf16, #tpu.memory_space<vmem>>, %arg3: memref<1x512xf32, #tpu.memory_space<vmem>>, %arg4: memref<512x128xbf16, #tpu.memory_space<vmem>>, %arg5: memref<1x128xf32, #tpu.memory_space<vmem>>, %arg6: memref<16x128xf32, #tpu.memory_space<vmem>>) attributes {dimension_semantics = [#tpu.dimension_semantics<parallel>], iteration_bounds = array<i64: 1>, scalar_prefetch = 0 : i64, scratch_operands = 0 : i64, tpu.core_type = #tpu.core_type<tc>, window_params = [{transform_indices = @transform_0, window_bounds = array<i64: 16, 800>}, {pipeline_mode = #tpu.pipeline_mode<synchronous>, transform_indices = @transform_1, window_bounds = array<i64: 800, 512>}, {pipeline_mode = #tpu.pipeline_mode<synchronous>, transform_indices = @transform_2, window_bounds = array<i64: 1, 512>}, {pipeline_mode = #tpu.pipeline_mode<synchronous>, transform_indices = @transform_3, window_bounds = array<i64: 512, 128>}, {pipeline_mode = #tpu.pipeline_mode<synchronous>, transform_indices = @transform_4, window_bounds = array<i64: 1, 128>}, {transform_indices = @transform_5, window_bounds = array<i64: 16, 128>}]} {
    %c0 = arith.constant 0 : index
    %c0_0 = arith.constant 0 : index
    %0 = vector.load %arg1[%c0, %c0_0] : memref<16x800xbf16, #tpu.memory_space<vmem>>, vector<16x800xbf16>
    %c0_1 = arith.constant 0 : index
    %c0_2 = arith.constant 0 : index
    %1 = vector.load %arg2[%c0_1, %c0_2] : memref<800x512xbf16, #tpu.memory_space<vmem>>, vector<800x512xbf16>
    %cst = arith.constant dense<0.000000e+00> : vector<16x512xf32>
    %2 = tpu.matmul %0, %1, %cst {dimension_numbers = #tpu.dot_dimension_numbers<[1], [0], [0], [1], [0, 0, 1, 1], [], []>} : vector<16x800xbf16>, vector<800x512xbf16>, vector<16x512xf32> -> vector<16x512xf32>
    %c0_3 = arith.constant 0 : index
    %c0_4 = arith.constant 0 : index
    %3 = vector.load %arg3[%c0_3, %c0_4] : memref<1x512xf32, #tpu.memory_space<vmem>>, vector<1x512xf32>
    %4 = vector.broadcast %3 : vector<1x512xf32> to vector<16x512xf32>
    %5 = arith.addf %2, %4 : vector<16x512xf32>
    %cst_5 = arith.constant 0.000000e+00 : f32
    %6 = vector.broadcast %cst_5 : f32 to vector<16x512xf32>
    %7 = arith.maximumf %5, %6 : vector<16x512xf32>
    %8 = arith.truncf %7 : vector<16x512xf32> to vector<16x512xbf16>
    %c0_6 = arith.constant 0 : index
    %c0_7 = arith.constant 0 : index
    %9 = vector.load %arg4[%c0_6, %c0_7] : memref<512x128xbf16, #tpu.memory_space<vmem>>, vector<512x128xbf16>
    %cst_8 = arith.constant dense<0.000000e+00> : vector<16x128xf32>
    %10 = tpu.matmul %8, %9, %cst_8 {dimension_numbers = #tpu.dot_dimension_numbers<[1], [0], [0], [1], [0, 0, 1, 1], [], []>} : vector<16x512xbf16>, vector<512x128xbf16>, vector<16x128xf32> -> vector<16x128xf32>
    %c0_9 = arith.constant 0 : index
    %c0_10 = arith.constant 0 : index
    %11 = vector.load %arg5[%c0_9, %c0_10] : memref<1x128xf32, #tpu.memory_space<vmem>>, vector<1x128xf32>
    %12 = vector.broadcast %11 : vector<1x128xf32> to vector<16x128xf32>
    %13 = arith.addf %10, %12 : vector<16x128xf32>
    %cst_11 = arith.constant dense<0xFF800000> : vector<16xf32>
    %14 = vector.multi_reduction <maximumf>, %13, %cst_11 [1] : vector<16x128xf32> to vector<16xf32>
    %15 = vector.shape_cast %14 : vector<16xf32> to vector<16x1xf32>
    %16 = vector.broadcast %15 : vector<16x1xf32> to vector<16x128xf32>
    %17 = arith.subf %13, %16 : vector<16x128xf32>
    %18 = math.exp %17 : vector<16x128xf32>
    %cst_12 = arith.constant dense<0.000000e+00> : vector<16xf32>
    %19 = vector.multi_reduction <add>, %18, %cst_12 [1] : vector<16x128xf32> to vector<16xf32>
    %20 = vector.shape_cast %19 : vector<16xf32> to vector<16x1xf32>
    %21 = math.log %20 : vector<16x1xf32>
    %22 = vector.broadcast %21 : vector<16x1xf32> to vector<16x128xf32>
    %23 = arith.subf %17, %22 : vector<16x128xf32>
    %c0_13 = arith.constant 0 : index
    %c0_14 = arith.constant 0 : index
    %24 = vector.load %arg6[%c0_13, %c0_14] : memref<16x128xf32, #tpu.memory_space<vmem>>, vector<16x128xf32>
    tpu.vector_store %arg6[%c0_13, %c0_14], %23 {strides = array<i32>} : memref<16x128xf32, #tpu.memory_space<vmem>>, vector<16x128xf32>,
    return
  }
  func.func @transform_0(%arg0: i32) -> (i32, i32) {
    %c0_i32 = arith.constant 0 : i32
    %c0_i32_0 = arith.constant 0 : i32
    return %arg0, %c0_i32 : i32, i32
  }
  func.func @transform_1(%arg0: i32) -> (i32, i32) {
    %c0_i32 = arith.constant 0 : i32
    %c0_i32_0 = arith.constant 0 : i32
    %c0_i32_1 = arith.constant 0 : i32
    return %c0_i32, %c0_i32_0 : i32, i32
  }
  func.func @transform_2(%arg0: i32) -> (i32, i32) {
    %c0_i32 = arith.constant 0 : i32
    %c0_i32_0 = arith.constant 0 : i32
    %c0_i32_1 = arith.constant 0 : i32
    return %c0_i32, %c0_i32_0 : i32, i32
  }
  func.func @transform_3(%arg0: i32) -> (i32, i32) {
    %c0_i32 = arith.constant 0 : i32
    %c0_i32_0 = arith.constant 0 : i32
    %c0_i32_1 = arith.constant 0 : i32
    return %c0_i32, %c0_i32_0 : i32, i32
  }
  func.func @transform_4(%arg0: i32) -> (i32, i32) {
    %c0_i32 = arith.constant 0 : i32
    %c0_i32_0 = arith.constant 0 : i32
    %c0_i32_1 = arith.constant 0 : i32
    return %c0_i32, %c0_i32_0 : i32, i32
  }
  func.func @transform_5(%arg0: i32) -> (i32, i32) {
    %c0_i32 = arith.constant 0 : i32
    %c0_i32_0 = arith.constant 0 : i32
    return %arg0, %c0_i32 : i32, i32
  }
}

</mosaic_0001>

<llo_original>
// kernel: net_forward.3
$region0: #{net_forward.3}
  #allocation0 [shape = 'u32[]', space=smem, size = 0x4, offset = 0x4, fixed_abs, tag = 'smem constant byte address 0x4 - core index']
  #allocation1 [shape = 'u32[144,128]{1,0:T(1,128)}', space=vmem, size = 0x12000, scoped, tag = 'internal scratch']
  %s0 = inlined_call_operand.vmem [shape: bf16[4,288,25], index: 0, kind: input, shape index: {}]
  %s1 = inlined_call_operand.vmem [shape: bf16[25,128], index: 1, kind: input, shape index: {}]
  %s2 = inlined_call_operand.vmem [shape: f32[1,128], index: 2, kind: input, shape index: {}]
  %s3 = inlined_call_operand.vmem [shape: bf16[288,128], index: 3, kind: output, shape index: {}]
  %s4 = sld [smem:[#allocation0]]
  $region22: #{net_forward.3} parent=0
    _
  %s6 = ssub.s32 1, %s4
  %s7 = scalar_select 0, %s6, %s4
  // Predicated region
  $region2: #{net_forward.3} parent=0 // pred_check
    _
  $region3: #{net_forward.3} parent=0 // pred_check_branch
    %9 = sbr.rel (0) target = $region5
  $region4: #{net_forward.3} parent=0 // pred_region
    _
  $region5: #{net_forward.3} parent=0 // pred_fallthru
    _
  // Predicated region
  $region6: #{net_forward.3} parent=0 // pred_check
    _
  $region7: #{net_forward.3} parent=0 // pred_check_branch
    %11 = sbr.rel (0) target = $region9
  $region8: #{net_forward.3} parent=0 // pred_region
    _
  $region9: #{net_forward.3} parent=0 // pred_fallthru
    _
  // Predicated region
  $region10: #{net_forward.3} parent=0 // pred_check
    _
  $region11: #{net_forward.3} parent=0 // pred_check_branch
    %13 = sbr.rel (0) target = $region13
  $region12: #{net_forward.3} parent=0 // pred_region
    _
  $region13: #{net_forward.3} parent=0 // pred_fallthru
    _
  %v15 = vld [vmem:[%s1] sm:$0xf]
  %v16 = vld [vmem:[%s1 + $0x4] sm:$0xf]
  %v17 = vld [vmem:[%s1 + $0x8] sm:$0xf]
  %v18 = vld [vmem:[%s1 + $0xc] sm:$0x1]
  %v19 = vld [vmem:[%s0] sm:$0xf]
  %v20 = vld [vmem:[%s0 + $0x4] sm:$0xf]
  %v21 = vld [vmem:[%s0 + $0x8] sm:$0xf]
  %v22 = vld [vmem:[%s0 + $0xc] sm:$0xf]
  %v23 = vld [vmem:[%s0 + $0x10] sm:$0xf]
  %v24 = vld [vmem:[%s0 + $0x14] sm:$0xf]
  %v25 = vld [vmem:[%s0 + $0x18] sm:$0xf]
  %v26 = vld [vmem:[%s0 + $0x1c] sm:$0xf]
  %v27 = vld [vmem:[%s0 + $0x20] sm:$0xf]
  %v28 = vld [vmem:[%s0 + $0x24] sm:$0xf]
  %v29 = vld [vmem:[%s0 + $0x28] sm:$0xf]
  %v30 = vld [vmem:[%s0 + $0x2c] sm:$0xf]
  %v31 = vld [vmem:[%s0 + $0x30] sm:$0xf]
  %v32 = vld [vmem:[%s0 + $0x34] sm:$0xf]
  %v33 = vld [vmem:[%s0 + $0x38] sm:$0xf]
  %v34 = vld [vmem:[%s0 + $0x3c] sm:$0xf]
  %v35 = vld [vmem:[%s0 + $0x40] sm:$0xf]
  %v36 = vld [vmem:[%s0 + $0x44] sm:$0xf]
  %v37 = vld [vmem:[%s0 + $0x48] sm:$0xf]
  %v38 = vld [vmem:[%s0 + $0x4c] sm:$0xf]
  %v39 = vld [vmem:[%s0 + $0x50] sm:$0xf]
  %v40 = vld [vmem:[%s0 + $0x54] sm:$0xf]
  %v41 = vld [vmem:[%s0 + $0x58] sm:$0xf]
  %v42 = vld [vmem:[%s0 + $0x5c] sm:$0xf]
  %v43 = vld [vmem:[%s0 + $0x60] sm:$0xf]
  %v44 = vld [vmem:[%s0 + $0x64] sm:$0xf]
  %v45 = vld [vmem:[%s0 + $0x68] sm:$0xf]
  %v46 = vld [vmem:[%s0 + $0x6c] sm:$0xf]
  %v47 = vld [vmem:[%s0 + $0x70] sm:$0xf]
  %v48 = vld [vmem:[%s0 + $0x74] sm:$0xf]
  %v49 = vld [vmem:[%s0 + $0x78] sm:$0xf]
  %v50 = vld [vmem:[%s0 + $0x7c] sm:$0xf]
  %v51 = vld [vmem:[%s0 + $0x80] sm:$0xf]
  %v52 = vld [vmem:[%s0 + $0x84] sm:$0xf]
  %v53 = vld [vmem:[%s0 + $0x88] sm:$0xf]
  %v54 = vld [vmem:[%s0 + $0x8c] sm:$0xf]
  %v91 = vunpack.c.l.b16 %v19
  %v92 = vunpack.c.l.b16 %v20
  %v93 = vunpack.c.l.b16 %v21
  %v94 = vunpack.c.l.b16 %v22
  %v95 = vunpack.c.l.b16 %v23
  %v96 = vunpack.c.l.b16 %v24
  %v97 = vunpack.c.l.b16 %v25
  %v98 = vunpack.c.l.b16 %v26
  %v99 = vunpack.c.l.b16 %v27
  %v100 = vunpack.c.l.b16 %v28
  %v101 = vunpack.c.l.b16 %v29
  %v102 = vunpack.c.l.b16 %v30
  %v103 = vunpack.c.l.b16 %v31
  %v104 = vunpack.c.l.b16 %v32
  %v105 = vunpack.c.l.b16 %v33
  %v106 = vunpack.c.l.b16 %v34
  %v107 = vunpack.c.l.b16 %v35
  %v108 = vunpack.c.l.b16 %v36
  %v109 = vunpack.c.l.b16 %v37
  %v110 = vunpack.c.l.b16 %v38
  %v111 = vunpack.c.l.b16 %v39
  %v112 = vunpack.c.l.b16 %v40
  %v113 = vunpack.c.l.b16 %v41
  %v114 = vunpack.c.l.b16 %v42
  %v115 = vunpack.c.l.b16 %v43
  %v116 = vunpack.c.l.b16 %v44
  %v117 = vunpack.c.l.b16 %v45
  %v118 = vunpack.c.l.b16 %v46
  %v119 = vunpack.c.l.b16 %v47
  %v120 = vunpack.c.l.b16 %v48
  %v121 = vunpack.c.l.b16 %v49
  %v122 = vunpack.c.l.b16 %v50
  %v123 = vunpack.c.l.b16 %v51
  %v124 = vunpack.c.l.b16 %v52
  %v125 = vunpack.c.l.b16 %v53
  %v126 = vunpack.c.l.b16 %v54
  %v127 = vpack.c.b16 %v92, %v91
  %v128 = vpack.c.b16 %v94, %v93
  %v129 = vpack.c.b16 %v96, %v95
  %v130 = vpack.c.b16 %v98, %v97
  %v131 = vpack.c.b16 %v100, %v99
  %v132 = vpack.c.b16 %v102, %v101
  %v133 = vpack.c.b16 %v104, %v103
  %v134 = vpack.c.b16 %v106, %v105
  %v135 = vpack.c.b16 %v108, %v107
  %v136 = vpack.c.b16 %v110, %v109
  %v137 = vpack.c.b16 %v112, %v111
  %v138 = vpack.c.b16 %v114, %v113
  %v139 = vpack.c.b16 %v116, %v115
  %v140 = vpack.c.b16 %v118, %v117
  %v141 = vpack.c.b16 %v120, %v119
  %v142 = vpack.c.b16 %v122, %v121
  %v143 = vpack.c.b16 %v124, %v123
  %v144 = vpack.c.b16 %v126, %v125
  %v149 = vunpack.c.l.b16 %v15
  %v150 = vunpack.c.l.b16 %v16
  %v151 = vunpack.c.l.b16 %v17
  %v152 = vunpack.c.l.b16 %v18
  %v153 = vpack.c.b16 %v150, %v149
  %v154 = vpack.c.b16 %v152, %v151
  %vm156 = vcmask 203776
  %v158 = vsel %vm156, %v127, 0
  %v161 = vsel %vm156, %v128, 0
  %v164 = vsel %vm156, %v129, 0
  %v167 = vsel %vm156, %v130, 0
  %v170 = vsel %vm156, %v131, 0
  %v173 = vsel %vm156, %v132, 0
  %v176 = vsel %vm156, %v133, 0
  %v179 = vsel %vm156, %v134, 0
  %v182 = vsel %vm156, %v135, 0
  %v185 = vsel %vm156, %v136, 0
  %v188 = vsel %vm156, %v137, 0
  %v191 = vsel %vm156, %v138, 0
  %v194 = vsel %vm156, %v139, 0
  %v197 = vsel %vm156, %v140, 0
  %v200 = vsel %vm156, %v141, 0
  %v203 = vsel %vm156, %v142, 0
  %v206 = vsel %vm156, %v143, 0
  %v209 = vsel %vm156, %v144, 0
  %vm211 = vcmask 1043456
  %vm212 = vcmask 1044480
  %v213 = vsel %vm211, 4294967295, 65535
  %v214 = vsel %vm212, %v213, 0
  %v216 = vand.u32 %v154, %v214
  %218 = vmatprep.subr.bf16.mxu0 0
  %219 = vmatpush1.bf16.msra.mxu0 0
  %220 = vmatprep.subr.bf16.mxu0 0
  %221 = vmatpush1.bf16.msra.mxu0 0
  %222 = vmatprep.subr.bf16.mxu0 0
  %223 = vmatpush1.bf16.msra.mxu0 0
  %224 = vmatprep.subr.bf16.mxu0 0
  %225 = vmatpush1.bf16.msra.mxu0 0
  %226 = vmatprep.subr.bf16.mxu0 0
  %227 = vmatpush1.bf16.msra.mxu0 0
  %228 = vmatprep.subr.bf16.mxu0 0
  %229 = vmatpush1.bf16.msra.mxu0 0
  %230 = vmatprep.subr.bf16.mxu0 0
  %231 = vmatpush1.bf16.msra.mxu0 %v216
  %232 = vmatprep.subr.bf16.mxu0 0
  %233 = vmatpush1.bf16.msra.mxu0 %v153
  %234 = vmatprep.subr.bf16.mxu0 0
  %235 = vmatpush2.bf16.msra.mxu0 0
  %236 = vmatprep.subr.bf16.mxu0 0
  %237 = vmatpush2.bf16.msra.mxu0 0
  %238 = vmatprep.subr.bf16.mxu0 0
  %239 = vmatpush2.bf16.msra.mxu0 0
  %240 = vmatprep.subr.bf16.mxu0 0
  %241 = vmatpush2.bf16.msra.mxu0 0
  %242 = vmatprep.subr.bf16.mxu0 0
  %243 = vmatpush2.bf16.msra.mxu0 0
  %244 = vmatprep.subr.bf16.mxu0 0
  %245 = vmatpush2.bf16.msra.mxu0 0
  %246 = vmatprep.subr.bf16.mxu0 0
  %247 = vmatpush2.bf16.msra.mxu0 0
  %248 = vmatprep.subr.bf16.mxu0 0
  %249 = vmatpush2.bf16.msra.mxu0 0
  %250 = vmatprep.mubr.bf16.mxu0 0
  %251 = vmatmul.mubr.bf16.gmra.mxu0 %v158
  %v252 = vpop.f32.mrf.mxu0
  %v253 = vadd.f32 0.0, %v252
  %v254 = vpop.f32.mrf.mxu0
  %v255 = vpop.f32.mrf.mxu0
  %v256 = vadd.f32 0.0, %v255
  %v257 = vpop.f32.mrf.mxu0
  %258 = vmatprep.mubr.bf16.mxu0 0
  %259 = vmatmul.mubr.bf16.gmra.mxu0 %v161
  %v260 = vpop.f32.mrf.mxu0
  %v261 = vadd.f32 0.0, %v260
  %v262 = vpop.f32.mrf.mxu0
  %v263 = vpop.f32.mrf.mxu0
  %v264 = vadd.f32 0.0, %v263
  %v265 = vpop.f32.mrf.mxu0
  %266 = vmatprep.mubr.bf16.mxu0 0
  %267 = vmatmul.mubr.bf16.gmra.mxu0 %v164
  %v268 = vpop.f32.mrf.mxu0
  %v269 = vadd.f32 0.0, %v268
  %v270 = vpop.f32.mrf.mxu0
  %v271 = vpop.f32.mrf.mxu0
  %v272 = vadd.f32 0.0, %v271
  %v273 = vpop.f32.mrf.mxu0
  %274 = vmatprep.mubr.bf16.mxu0 0
  %275 = vmatmul.mubr.bf16.gmra.mxu0 %v167
  %v276 = vpop.f32.mrf.mxu0
  %v277 = vadd.f32 0.0, %v276
  %v278 = vpop.f32.mrf.mxu0
  %v279 = vpop.f32.mrf.mxu0
  %v280 = vadd.f32 0.0, %v279
  %v281 = vpop.f32.mrf.mxu0
  %282 = vmatprep.mubr.bf16.mxu0 0
  %283 = vmatmul.mubr.bf16.gmra.mxu0 %v170
  %v284 = vpop.f32.mrf.mxu0
  %v285 = vadd.f32 0.0, %v284
  %v286 = vpop.f32.mrf.mxu0
  %v287 = vpop.f32.mrf.mxu0
  %v288 = vadd.f32 0.0, %v287
  %v289 = vpop.f32.mrf.mxu0
  %290 = vmatprep.mubr.bf16.mxu0 0
  %291 = vmatmul.mubr.bf16.gmra.mxu0 %v173
  %v292 = vpop.f32.mrf.mxu0
  %v293 = vadd.f32 0.0, %v292
  %v294 = vpop.f32.mrf.mxu0
  %v295 = vpop.f32.mrf.mxu0
  %v296 = vadd.f32 0.0, %v295
  %v297 = vpop.f32.mrf.mxu0
  %298 = vmatprep.mubr.bf16.mxu0 0
  %299 = vmatmul.mubr.bf16.gmra.mxu0 %v176
  %v300 = vpop.f32.mrf.mxu0
  %v301 = vadd.f32 0.0, %v300
  %v302 = vpop.f32.mrf.mxu0
  %v303 = vpop.f32.mrf.mxu0
  %v304 = vadd.f32 0.0, %v303
  %v305 = vpop.f32.mrf.mxu0
  %306 = vmatprep.mubr.bf16.mxu0 0
  %307 = vmatmul.mubr.bf16.gmra.mxu0 %v179
  %v308 = vpop.f32.mrf.mxu0
  %v309 = vadd.f32 0.0, %v308
  %v310 = vpop.f32.mrf.mxu0
  %v311 = vpop.f32.mrf.mxu0
  %v312 = vadd.f32 0.0, %v311
  %v313 = vpop.f32.mrf.mxu0
  %314 = vmatprep.mubr.bf16.mxu0 0
  %315 = vmatmul.mubr.bf16.gmra.mxu0 %v182
  %v316 = vpop.f32.mrf.mxu0
  %v317 = vadd.f32 0.0, %v316
  %v318 = vpop.f32.mrf.mxu0
  %v319 = vpop.f32.mrf.mxu0
  %v320 = vadd.f32 0.0, %v319
  %v321 = vpop.f32.mrf.mxu0
  %322 = vmatprep.mubr.bf16.mxu0 0
  %323 = vmatmul.mubr.bf16.gmra.mxu0 %v185
  %v324 = vpop.f32.mrf.mxu0
  %v325 = vadd.f32 0.0, %v324
  %v326 = vpop.f32.mrf.mxu0
  %v327 = vpop.f32.mrf.mxu0
  %v328 = vadd.f32 0.0, %v327
  %v329 = vpop.f32.mrf.mxu0
  %330 = vmatprep.mubr.bf16.mxu0 0
  %331 = vmatmul.mubr.bf16.gmra.mxu0 %v188
  %v332 = vpop.f32.mrf.mxu0
  %v333 = vadd.f32 0.0, %v332
  %v334 = vpop.f32.mrf.mxu0
  %v335 = vpop.f32.mrf.mxu0
  %v336 = vadd.f32 0.0, %v335
  %v337 = vpop.f32.mrf.mxu0
  %338 = vmatprep.mubr.bf16.mxu0 0
  %339 = vmatmul.mubr.bf16.gmra.mxu0 %v191
  %v340 = vpop.f32.mrf.mxu0
  %v341 = vadd.f32 0.0, %v340
  %v342 = vpop.f32.mrf.mxu0
  %v343 = vpop.f32.mrf.mxu0
  %v344 = vadd.f32 0.0, %v343
  %v345 = vpop.f32.mrf.mxu0
  %346 = vmatprep.mubr.bf16.mxu0 0
  %347 = vmatmul.mubr.bf16.gmra.mxu0 %v194
  %v348 = vpop.f32.mrf.mxu0
  %v349 = vadd.f32 0.0, %v348
  %v350 = vpop.f32.mrf.mxu0
  %v351 = vpop.f32.mrf.mxu0
  %v352 = vadd.f32 0.0, %v351
  %v353 = vpop.f32.mrf.mxu0
  %354 = vmatprep.mubr.bf16.mxu0 0
  %355 = vmatmul.mubr.bf16.gmra.mxu0 %v197
  %v356 = vpop.f32.mrf.mxu0
  %v357 = vadd.f32 0.0, %v356
  %v358 = vpop.f32.mrf.mxu0
  %v359 = vpop.f32.mrf.mxu0
  %v360 = vadd.f32 0.0, %v359
  %v361 = vpop.f32.mrf.mxu0
  %362 = vmatprep.mubr.bf16.mxu0 0
  %363 = vmatmul.mubr.bf16.gmra.mxu0 %v200
  %v364 = vpop.f32.mrf.mxu0
  %v365 = vadd.f32 0.0, %v364
  %v366 = vpop.f32.mrf.mxu0
  %v367 = vpop.f32.mrf.mxu0
  %v368 = vadd.f32 0.0, %v367
  %v369 = vpop.f32.mrf.mxu0
  %370 = vmatprep.mubr.bf16.mxu0 0
  %371 = vmatmul.mubr.bf16.gmra.mxu0 %v203
  %v372 = vpop.f32.mrf.mxu0
  %v373 = vadd.f32 0.0, %v372
  %v374 = vpop.f32.mrf.mxu0
  %v375 = vpop.f32.mrf.mxu0
  %v376 = vadd.f32 0.0, %v375
  %v377 = vpop.f32.mrf.mxu0
  %378 = vmatprep.mubr.bf16.mxu0 0
  %379 = vmatmul.mubr.bf16.gmra.mxu0 %v206
  %v380 = vpop.f32.mrf.mxu0
  %v381 = vadd.f32 0.0, %v380
  %v382 = vpop.f32.mrf.mxu0
  %v383 = vpop.f32.mrf.mxu0
  %v384 = vadd.f32 0.0, %v383
  %v385 = vpop.f32.mrf.mxu0
  %386 = vmatprep.mubr.bf16.mxu0 0
  %387 = vmatmul.mubr.bf16.gmra.mxu0 %v209
  %v388 = vpop.f32.mrf.mxu0
  %v389 = vadd.f32 0.0, %v388
  %v390 = vpop.f32.mrf.mxu0
  %v391 = vpop.f32.mrf.mxu0
  %v392 = vadd.f32 0.0, %v391
  %v393 = vpop.f32.mrf.mxu0
  %394 = vdwg.mxu0
  %s395 = scalar_lea.vmem %s0, 144
  %v396 = vld [vmem:[%s395] sm:$0xf]
  %v397 = vld [vmem:[%s395 + $0x4] sm:$0xf]
  %v398 = vld [vmem:[%s395 + $0x8] sm:$0xf]
  %v399 = vld [vmem:[%s395 + $0xc] sm:$0xf]
  %v400 = vld [vmem:[%s395 + $0x10] sm:$0xf]
  %v401 = vld [vmem:[%s395 + $0x14] sm:$0xf]
  %v402 = vld [vmem:[%s395 + $0x18] sm:$0xf]
  %v403 = vld [vmem:[%s395 + $0x1c] sm:$0xf]
  %v404 = vld [vmem:[%s395 + $0x20] sm:$0xf]
  %v405 = vld [vmem:[%s395 + $0x24] sm:$0xf]
  %v406 = vld [vmem:[%s395 + $0x28] sm:$0xf]
  %v407 = vld [vmem:[%s395 + $0x2c] sm:$0xf]
  %v408 = vld [vmem:[%s395 + $0x30] sm:$0xf]
  %v409 = vld [vmem:[%s395 + $0x34] sm:$0xf]
  %v410 = vld [vmem:[%s395 + $0x38] sm:$0xf]
  %v411 = vld [vmem:[%s395 + $0x3c] sm:$0xf]
  %v412 = vld [vmem:[%s395 + $0x40] sm:$0xf]
  %v413 = vld [vmem:[%s395 + $0x44] sm:$0xf]
  %v414 = vld [vmem:[%s395 + $0x48] sm:$0xf]
  %v415 = vld [vmem:[%s395 + $0x4c] sm:$0xf]
  %v416 = vld [vmem:[%s395 + $0x50] sm:$0xf]
  %v417 = vld [vmem:[%s395 + $0x54] sm:$0xf]
  %v418 = vld [vmem:[%s395 + $0x58] sm:$0xf]
  %v419 = vld [vmem:[%s395 + $0x5c] sm:$0xf]
  %v420 = vld [vmem:[%s395 + $0x60] sm:$0xf]
  %v421 = vld [vmem:[%s395 + $0x64] sm:$0xf]
  %v422 = vld [vmem:[%s395 + $0x68] sm:$0xf]
  %v423 = vld [vmem:[%s395 + $0x6c] sm:$0xf]
  %v424 = vld [vmem:[%s395 + $0x70] sm:$0xf]
  %v425 = vld [vmem:[%s395 + $0x74] sm:$0xf]
  %v426 = vld [vmem:[%s395 + $0x78] sm:$0xf]
  %v427 = vld [vmem:[%s395 + $0x7c] sm:$0xf]
  %v428 = vld [vmem:[%s395 + $0x80] sm:$0xf]
  %v429 = vld [vmem:[%s395 + $0x84] sm:$0xf]
  %v430 = vld [vmem:[%s395 + $0x88] sm:$0xf]
  %v431 = vld [vmem:[%s395 + $0x8c] sm:$0xf]
  %v468 = vunpack.c.l.b16 %v396
  %v469 = vunpack.c.l.b16 %v397
  %v470 = vunpack.c.l.b16 %v398
  %v471 = vunpack.c.l.b16 %v399
  %v472 = vunpack.c.l.b16 %v400
  %v473 = vunpack.c.l.b16 %v401
  %v474 = vunpack.c.l.b16 %v402
  %v475 = vunpack.c.l.b16 %v403
  %v476 = vunpack.c.l.b16 %v404
  %v477 = vunpack.c.l.b16 %v405
  %v478 = vunpack.c.l.b16 %v406
  %v479 = vunpack.c.l.b16 %v407
  %v480 = vunpack.c.l.b16 %v408
  %v481 = vunpack.c.l.b16 %v409
  %v482 = vunpack.c.l.b16 %v410
  %v483 = vunpack.c.l.b16 %v411
  %v484 = vunpack.c.l.b16 %v412
  %v485 = vunpack.c.l.b16 %v413
  %v486 = vunpack.c.l.b16 %v414
  %v487 = vunpack.c.l.b16 %v415
  %v488 = vunpack.c.l.b16 %v416
  %v489 = vunpack.c.l.b16 %v417
  %v490 = vunpack.c.l.b16 %v418
  %v491 = vunpack.c.l.b16 %v419
  %v492 = vunpack.c.l.b16 %v420
  %v493 = vunpack.c.l.b16 %v421
  %v494 = vunpack.c.l.b16 %v422
  %v495 = vunpack.c.l.b16 %v423
  %v496 = vunpack.c.l.b16 %v424
  %v497 = vunpack.c.l.b16 %v425
  %v498 = vunpack.c.l.b16 %v426
  %v499 = vunpack.c.l.b16 %v427
  %v500 = vunpack.c.l.b16 %v428
  %v501 = vunpack.c.l.b16 %v429
  %v502 = vunpack.c.l.b16 %v430
  %v503 = vunpack.c.l.b16 %v431
  %v504 = vpack.c.b16 %v469, %v468
  %v505 = vpack.c.b16 %v471, %v470
  %v506 = vpack.c.b16 %v473, %v472
  %v507 = vpack.c.b16 %v475, %v474
  %v508 = vpack.c.b16 %v477, %v476
  %v509 = vpack.c.b16 %v479, %v478
  %v510 = vpack.c.b16 %v481, %v480
  %v511 = vpack.c.b16 %v483, %v482
  %v512 = vpack.c.b16 %v485, %v484
  %v513 = vpack.c.b16 %v487, %v486
  %v514 = vpack.c.b16 %v489, %v488
  %v515 = vpack.c.b16 %v491, %v490
  %v516 = vpack.c.b16 %v493, %v492
  %v517 = vpack.c.b16 %v495, %v494
  %v518 = vpack.c.b16 %v497, %v496
  %v519 = vpack.c.b16 %v499, %v498
  %v520 = vpack.c.b16 %v501, %v500
  %v521 = vpack.c.b16 %v503, %v502
  %v523 = vsel %vm156, %v504, 0
  %v526 = vsel %vm156, %v505, 0
  %v529 = vsel %vm156, %v506, 0
  %v532 = vsel %vm156, %v507, 0
  %v535 = vsel %vm156, %v508, 0
  %v538 = vsel %vm156, %v509, 0
  %v541 = vsel %vm156, %v510, 0
  %v544 = vsel %vm156, %v511, 0
  %v547 = vsel %vm156, %v512, 0
  %v550 = vsel %vm156, %v513, 0
  %v553 = vsel %vm156, %v514, 0
  %v556 = vsel %vm156, %v515, 0
  %v559 = vsel %vm156, %v516, 0
  %v562 = vsel %vm156, %v517, 0
  %v565 = vsel %vm156, %v518, 0
  %v568 = vsel %vm156, %v519, 0
  %v571 = vsel %vm156, %v520, 0
  %v574 = vsel %vm156, %v521, 0
  %576 = vmatprep.subr.bf16.mxu0 0
  %577 = vmatpush1.bf16.msra.mxu0 0
  %578 = vmatprep.subr.bf16.mxu0 0
  %579 = vmatpush1.bf16.msra.mxu0 0
  %580 = vmatprep.subr.bf16.mxu0 0
  %581 = vmatpush1.bf16.msra.mxu0 0
  %582 = vmatprep.subr.bf16.mxu0 0
  %583 = vmatpush1.bf16.msra.mxu0 0
  %584 = vmatprep.subr.bf16.mxu0 0
  %585 = vmatpush1.bf16.msra.mxu0 0
  %586 = vmatprep.subr.bf16.mxu0 0
  %587 = vmatpush1.bf16.msra.mxu0 0
  %588 = vmatprep.subr.bf16.mxu0 0
  %589 = vmatpush1.bf16.msra.mxu0 %v216
  %590 = vmatprep.subr.bf16.mxu0 0
  %591 = vmatpush1.bf16.msra.mxu0 %v153
  %592 = vmatprep.subr.bf16.mxu0 0
  %593 = vmatpush2.bf16.msra.mxu0 0
  %594 = vmatprep.subr.bf16.mxu0 0
  %595 = vmatpush2.bf16.msra.mxu0 0
  %596 = vmatprep.subr.bf16.mxu0 0
  %597 = vmatpush2.bf16.msra.mxu0 0
  %598 = vmatprep.subr.bf16.mxu0 0
  %599 = vmatpush2.bf16.msra.mxu0 0
  %600 = vmatprep.subr.bf16.mxu0 0
  %601 = vmatpush2.bf16.msra.mxu0 0
  %602 = vmatprep.subr.bf16.mxu0 0
  %603 = vmatpush2.bf16.msra.mxu0 0
  %604 = vmatprep.subr.bf16.mxu0 0
  %605 = vmatpush2.bf16.msra.mxu0 0
  %606 = vmatprep.subr.bf16.mxu0 0
  %607 = vmatpush2.bf16.msra.mxu0 0
  %608 = vmatprep.mubr.bf16.mxu0 0
  %609 = vmatmul.mubr.bf16.gmra.mxu0 %v523
  %v610 = vpop.f32.mrf.mxu0
  %v611 = vadd.f32 0.0, %v610
  %v612 = vpop.f32.mrf.mxu0
  %v613 = vpop.f32.mrf.mxu0
  %v614 = vadd.f32 0.0, %v613
  %v615 = vpop.f32.mrf.mxu0
  %616 = vmatprep.mubr.bf16.mxu0 0
  %617 = vmatmul.mubr.bf16.gmra.mxu0 %v526
  %v618 = vpop.f32.mrf.mxu0
  %v619 = vadd.f32 0.0, %v618
  %v620 = vpop.f32.mrf.mxu0
  %v621 = vpop.f32.mrf.mxu0
  %v622 = vadd.f32 0.0, %v621
  %v623 = vpop.f32.mrf.mxu0
  %624 = vmatprep.mubr.bf16.mxu0 0
  %625 = vmatmul.mubr.bf16.gmra.mxu0 %v529
  %v626 = vpop.f32.mrf.mxu0
  %v627 = vadd.f32 0.0, %v626
  %v628 = vpop.f32.mrf.mxu0
  %v629 = vpop.f32.mrf.mxu0
  %v630 = vadd.f32 0.0, %v629
  %v631 = vpop.f32.mrf.mxu0
  %632 = vmatprep.mubr.bf16.mxu0 0
  %633 = vmatmul.mubr.bf16.gmra.mxu0 %v532
  %v634 = vpop.f32.mrf.mxu0
  %v635 = vadd.f32 0.0, %v634
  %v636 = vpop.f32.mrf.mxu0
  %v637 = vpop.f32.mrf.mxu0
  %v638 = vadd.f32 0.0, %v637
  %v639 = vpop.f32.mrf.mxu0
  %640 = vmatprep.mubr.bf16.mxu0 0
  %641 = vmatmul.mubr.bf16.gmra.mxu0 %v535
  %v642 = vpop.f32.mrf.mxu0
  %v643 = vadd.f32 0.0, %v642
  %v644 = vpop.f32.mrf.mxu0
  %v645 = vpop.f32.mrf.mxu0
  %v646 = vadd.f32 0.0, %v645
  %v647 = vpop.f32.mrf.mxu0
  %648 = vmatprep.mubr.bf16.mxu0 0
  %649 = vmatmul.mubr.bf16.gmra.mxu0 %v538
  %v650 = vpop.f32.mrf.mxu0
  %v651 = vadd.f32 0.0, %v650
  %v652 = vpop.f32.mrf.mxu0
  %v653 = vpop.f32.mrf.mxu0
  %v654 = vadd.f32 0.0, %v653
  %v655 = vpop.f32.mrf.mxu0
  %656 = vmatprep.mubr.bf16.mxu0 0
  %657 = vmatmul.mubr.bf16.gmra.mxu0 %v541
  %v658 = vpop.f32.mrf.mxu0
  %v659 = vadd.f32 0.0, %v658
  %v660 = vpop.f32.mrf.mxu0
  %v661 = vpop.f32.mrf.mxu0
  %v662 = vadd.f32 0.0, %v661
  %v663 = vpop.f32.mrf.mxu0
  %664 = vmatprep.mubr.bf16.mxu0 0
  %665 = vmatmul.mubr.bf16.gmra.mxu0 %v544
  %v666 = vpop.f32.mrf.mxu0
  %v667 = vadd.f32 0.0, %v666
  %v668 = vpop.f32.mrf.mxu0
  %v669 = vpop.f32.mrf.mxu0
  %v670 = vadd.f32 0.0, %v669
  %v671 = vpop.f32.mrf.mxu0
  %672 = vmatprep.mubr.bf16.mxu0 0
  %673 = vmatmul.mubr.bf16.gmra.mxu0 %v547
  %v674 = vpop.f32.mrf.mxu0
  %v675 = vadd.f32 0.0, %v674
  %v676 = vpop.f32.mrf.mxu0
  %v677 = vpop.f32.mrf.mxu0
  %v678 = vadd.f32 0.0, %v677
  %v679 = vpop.f32.mrf.mxu0
  %680 = vmatprep.mubr.bf16.mxu0 0
  %681 = vmatmul.mubr.bf16.gmra.mxu0 %v550
  %v682 = vpop.f32.mrf.mxu0
  %v683 = vadd.f32 0.0, %v682
  %v684 = vpop.f32.mrf.mxu0
  %v685 = vpop.f32.mrf.mxu0
  %v686 = vadd.f32 0.0, %v685
  %v687 = vpop.f32.mrf.mxu0
  %688 = vmatprep.mubr.bf16.mxu0 0
  %689 = vmatmul.mubr.bf16.gmra.mxu0 %v553
  %v690 = vpop.f32.mrf.mxu0
  %v691 = vadd.f32 0.0, %v690
  %v692 = vpop.f32.mrf.mxu0
  %v693 = vpop.f32.mrf.mxu0
  %v694 = vadd.f32 0.0, %v693
  %v695 = vpop.f32.mrf.mxu0
  %696 = vmatprep.mubr.bf16.mxu0 0
  %697 = vmatmul.mubr.bf16.gmra.mxu0 %v556
  %v698 = vpop.f32.mrf.mxu0
  %v699 = vadd.f32 0.0, %v698
  %v700 = vpop.f32.mrf.mxu0
  %v701 = vpop.f32.mrf.mxu0
  %v702 = vadd.f32 0.0, %v701
  %v703 = vpop.f32.mrf.mxu0
  %704 = vmatprep.mubr.bf16.mxu0 0
  %705 = vmatmul.mubr.bf16.gmra.mxu0 %v559
  %v706 = vpop.f32.mrf.mxu0
  %v707 = vadd.f32 0.0, %v706
  %v708 = vpop.f32.mrf.mxu0
  %v709 = vpop.f32.mrf.mxu0
  %v710 = vadd.f32 0.0, %v709
  %v711 = vpop.f32.mrf.mxu0
  %712 = vmatprep.mubr.bf16.mxu0 0
  %713 = vmatmul.mubr.bf16.gmra.mxu0 %v562
  %v714 = vpop.f32.mrf.mxu0
  %v715 = vadd.f32 0.0, %v714
  %v716 = vpop.f32.mrf.mxu0
  %v717 = vpop.f32.mrf.mxu0
  %v718 = vadd.f32 0.0, %v717
  %v719 = vpop.f32.mrf.mxu0
  %720 = vmatprep.mubr.bf16.mxu0 0
  %721 = vmatmul.mubr.bf16.gmra.mxu0 %v565
  %v722 = vpop.f32.mrf.mxu0
  %v723 = vadd.f32 0.0, %v722
  %v724 = vpop.f32.mrf.mxu0
  %v725 = vpop.f32.mrf.mxu0
  %v726 = vadd.f32 0.0, %v725
  %v727 = vpop.f32.mrf.mxu0
  %728 = vmatprep.mubr.bf16.mxu0 0
  %729 = vmatmul.mubr.bf16.gmra.mxu0 %v568
  %v730 = vpop.f32.mrf.mxu0
  %v731 = vadd.f32 0.0, %v730
  %v732 = vpop.f32.mrf.mxu0
  %v733 = vpop.f32.mrf.mxu0
  %v734 = vadd.f32 0.0, %v733
  %v735 = vpop.f32.mrf.mxu0
  %736 = vmatprep.mubr.bf16.mxu0 0
  %737 = vmatmul.mubr.bf16.gmra.mxu0 %v571
  %v738 = vpop.f32.mrf.mxu0
  %v739 = vadd.f32 0.0, %v738
  %v740 = vpop.f32.mrf.mxu0
  %v741 = vpop.f32.mrf.mxu0
  %v742 = vadd.f32 0.0, %v741
  %v743 = vpop.f32.mrf.mxu0
  %744 = vmatprep.mubr.bf16.mxu0 0
  %745 = vmatmul.mubr.bf16.gmra.mxu0 %v574
  %v746 = vpop.f32.mrf.mxu0
  %v747 = vadd.f32 0.0, %v746
  %v748 = vpop.f32.mrf.mxu0
  %v749 = vpop.f32.mrf.mxu0
  %v750 = vadd.f32 0.0, %v749
  %v751 = vpop.f32.mrf.mxu0
  %752 = vdwg.mxu0
  %v753 = vmax.f32 %v253, %v611
  %v754 = vmax.f32 %v256, %v614
  %v755 = vmax.f32 %v261, %v619
  %v756 = vmax.f32 %v264, %v622
  %v757 = vmax.f32 %v269, %v627
  %v758 = vmax.f32 %v272, %v630
  %v759 = vmax.f32 %v277, %v635
  %v760 = vmax.f32 %v280, %v638
  %v761 = vmax.f32 %v285, %v643
  %v762 = vmax.f32 %v288, %v646
  %v763 = vmax.f32 %v293, %v651
  %v764 = vmax.f32 %v296, %v654
  %v765 = vmax.f32 %v301, %v659
  %v766 = vmax.f32 %v304, %v662
  %v767 = vmax.f32 %v309, %v667
  %v768 = vmax.f32 %v312, %v670
  %v769 = vmax.f32 %v317, %v675
  %v770 = vmax.f32 %v320, %v678
  %v771 = vmax.f32 %v325, %v683
  %v772 = vmax.f32 %v328, %v686
  %v773 = vmax.f32 %v333, %v691
  %v774 = vmax.f32 %v336, %v694
  %v775 = vmax.f32 %v341, %v699
  %v776 = vmax.f32 %v344, %v702
  %v777 = vmax.f32 %v349, %v707
  %v778 = vmax.f32 %v352, %v710
  %v779 = vmax.f32 %v357, %v715
  %v780 = vmax.f32 %v360, %v718
  %v781 = vmax.f32 %v365, %v723
  %v782 = vmax.f32 %v368, %v726
  %v783 = vmax.f32 %v373, %v731
  %v784 = vmax.f32 %v376, %v734
  %v785 = vmax.f32 %v381, %v739
  %v786 = vmax.f32 %v384, %v742
  %v787 = vmax.f32 %v389, %v747
  %v788 = vmax.f32 %v392, %v750
  %s789 = scalar_lea.vmem %s0, 288
  %v790 = vld [vmem:[%s789] sm:$0xf]
  %v791 = vld [vmem:[%s789 + $0x4] sm:$0xf]
  %v792 = vld [vmem:[%s789 + $0x8] sm:$0xf]
  %v793 = vld [vmem:[%s789 + $0xc] sm:$0xf]
  %v794 = vld [vmem:[%s789 + $0x10] sm:$0xf]
  %v795 = vld [vmem:[%s789 + $0x14] sm:$0xf]
  %v796 = vld [vmem:[%s789 + $0x18] sm:$0xf]
  %v797 = vld [vmem:[%s789 + $0x1c] sm:$0xf]
  %v798 = vld [vmem:[%s789 + $0x20] sm:$0xf]
  %v799 = vld [vmem:[%s789 + $0x24] sm:$0xf]
  %v800 = vld [vmem:[%s789 + $0x28] sm:$0xf]
  %v801 = vld [vmem:[%s789 + $0x2c] sm:$0xf]
  %v802 = vld [vmem:[%s789 + $0x30] sm:$0xf]
  %v803 = vld [vmem:[%s789 + $0x34] sm:$0xf]
  %v804 = vld [vmem:[%s789 + $0x38] sm:$0xf]
  %v805 = vld [vmem:[%s789 + $0x3c] sm:$0xf]
  %v806 = vld [vmem:[%s789 + $0x40] sm:$0xf]
  %v807 = vld [vmem:[%s789 + $0x44] sm:$0xf]
  %v808 = vld [vmem:[%s789 + $0x48] sm:$0xf]
  %v809 = vld [vmem:[%s789 + $0x4c] sm:$0xf]
  %v810 = vld [vmem:[%s789 + $0x50] sm:$0xf]
  %v811 = vld [vmem:[%s789 + $0x54] sm:$0xf]
  %v812 = vld [vmem:[%s789 + $0x58] sm:$0xf]
  %v813 = vld [vmem:[%s789 + $0x5c] sm:$0xf]
  %v814 = vld [vmem:[%s789 + $0x60] sm:$0xf]
  %v815 = vld [vmem:[%s789 + $0x64] sm:$0xf]
  %v816 = vld [vmem:[%s789 + $0x68] sm:$0xf]
  %v817 = vld [vmem:[%s789 + $0x6c] sm:$0xf]
  %v818 = vld [vmem:[%s789 + $0x70] sm:$0xf]
  %v819 = vld [vmem:[%s789 + $0x74] sm:$0xf]
  %v820 = vld [vmem:[%s789 + $0x78] sm:$0xf]
  %v821 = vld [vmem:[%s789 + $0x7c] sm:$0xf]
  %v822 = vld [vmem:[%s789 + $0x80] sm:$0xf]
  %v823 = vld [vmem:[%s789 + $0x84] sm:$0xf]
  %v824 = vld [vmem:[%s789 + $0x88] sm:$0xf]
  %v825 = vld [vmem:[%s789 + $0x8c] sm:$0xf]
  %v862 = vunpack.c.l.b16 %v790
  %v863 = vunpack.c.l.b16 %v791
  %v864 = vunpack.c.l.b16 %v792
  %v865 = vunpack.c.l.b16 %v793
  %v866 = vunpack.c.l.b16 %v794
  %v867 = vunpack.c.l.b16 %v795
  %v868 = vunpack.c.l.b16 %v796
  %v869 = vunpack.c.l.b16 %v797
  %v870 = vunpack.c.l.b16 %v798
  %v871 = vunpack.c.l.b16 %v799
  %v872 = vunpack.c.l.b16 %v800
  %v873 = vunpack.c.l.b16 %v801
  %v874 = vunpack.c.l.b16 %v802
  %v875 = vunpack.c.l.b16 %v803
  %v876 = vunpack.c.l.b16 %v804
  %v877 = vunpack.c.l.b16 %v805
  %v878 = vunpack.c.l.b16 %v806
  %v879 = vunpack.c.l.b16 %v807
  %v880 = vunpack.c.l.b16 %v808
  %v881 = vunpack.c.l.b16 %v809
  %v882 = vunpack.c.l.b16 %v810
  %v883 = vunpack.c.l.b16 %v811
  %v884 = vunpack.c.l.b16 %v812
  %v885 = vunpack.c.l.b16 %v813
  %v886 = vunpack.c.l.b16 %v814
  %v887 = vunpack.c.l.b16 %v815
  %v888 = vunpack.c.l.b16 %v816
  %v889 = vunpack.c.l.b16 %v817
  %v890 = vunpack.c.l.b16 %v818
  %v891 = vunpack.c.l.b16 %v819
  %v892 = vunpack.c.l.b16 %v820
  %v893 = vunpack.c.l.b16 %v821
  %v894 = vunpack.c.l.b16 %v822
  %v895 = vunpack.c.l.b16 %v823
  %v896 = vunpack.c.l.b16 %v824
  %v897 = vunpack.c.l.b16 %v825
  %v898 = vpack.c.b16 %v863, %v862
  %v899 = vpack.c.b16 %v865, %v864
  %v900 = vpack.c.b16 %v867, %v866
  %v901 = vpack.c.b16 %v869, %v868
  %v902 = vpack.c.b16 %v871, %v870
  %v903 = vpack.c.b16 %v873, %v872
  %v904 = vpack.c.b16 %v875, %v874
  %v905 = vpack.c.b16 %v877, %v876
  %v906 = vpack.c.b16 %v879, %v878
  %v907 = vpack.c.b16 %v881, %v880
  %v908 = vpack.c.b16 %v883, %v882
  %v909 = vpack.c.b16 %v885, %v884
  %v910 = vpack.c.b16 %v887, %v886
  %v911 = vpack.c.b16 %v889, %v888
  %v912 = vpack.c.b16 %v891, %v890
  %v913 = vpack.c.b16 %v893, %v892
  %v914 = vpack.c.b16 %v895, %v894
  %v915 = vpack.c.b16 %v897, %v896
  %v917 = vsel %vm156, %v898, 0
  %v920 = vsel %vm156, %v899, 0
  %v923 = vsel %vm156, %v900, 0
  %v926 = vsel %vm156, %v901, 0
  %v929 = vsel %vm156, %v902, 0
  %v932 = vsel %vm156, %v903, 0
  %v935 = vsel %vm156, %v904, 0
  %v938 = vsel %vm156, %v905, 0
  %v941 = vsel %vm156, %v906, 0
  %v944 = vsel %vm156, %v907, 0
  %v947 = vsel %vm156, %v908, 0
  %v950 = vsel %vm156, %v909, 0
  %v953 = vsel %vm156, %v910, 0
  %v956 = vsel %vm156, %v911, 0
  %v959 = vsel %vm156, %v912, 0
  %v962 = vsel %vm156, %v913, 0
  %v965 = vsel %vm156, %v914, 0
  %v968 = vsel %vm156, %v915, 0
  %970 = vmatprep.subr.bf16.mxu0 0
  %971 = vmatpush1.bf16.msra.mxu0 0
  %972 = vmatprep.subr.bf16.mxu0 0
  %973 = vmatpush1.bf16.msra.mxu0 0
  %974 = vmatprep.subr.bf16.mxu0 0
  %975 = vmatpush1.bf16.msra.mxu0 0
  %976 = vmatprep.subr.bf16.mxu0 0
  %977 = vmatpush1.bf16.msra.mxu0 0
  %978 = vmatprep.subr.bf16.mxu0 0
  %979 = vmatpush1.bf16.msra.mxu0 0
  %980 = vmatprep.subr.bf16.mxu0 0
  %981 = vmatpush1.bf16.msra.mxu0 0
  %982 = vmatprep.subr.bf16.mxu0 0
  %983 = vmatpush1.bf16.msra.mxu0 %v216
  %984 = vmatprep.subr.bf16.mxu0 0
  %985 = vmatpush1.bf16.msra.mxu0 %v153
  %986 = vmatprep.subr.bf16.mxu0 0
  %987 = vmatpush2.bf16.msra.mxu0 0
  %988 = vmatprep.subr.bf16.mxu0 0
  %989 = vmatpush2.bf16.msra.mxu0 0
  %990 = vmatprep.subr.bf16.mxu0 0
  %991 = vmatpush2.bf16.msra.mxu0 0
  %992 = vmatprep.subr.bf16.mxu0 0
  %993 = vmatpush2.bf16.msra.mxu0 0
  %994 = vmatprep.subr.bf16.mxu0 0
  %995 = vmatpush2.bf16.msra.mxu0 0
  %996 = vmatprep.subr.bf16.mxu0 0
  %997 = vmatpush2.bf16.msra.mxu0 0
  %998 = vmatprep.subr.bf16.mxu0 0
  %999 = vmatpush2.bf16.msra.mxu0 0
  %1000 = vmatprep.subr.bf16.mxu0 0
  %1001 = vmatpush2.bf16.msra.mxu0 0
  %1002 = vmatprep.mubr.bf16.mxu0 0
  %1003 = vmatmul.mubr.bf16.gmra.mxu0 %v917
  %v1004 = vpop.f32.mrf.mxu0
  %v1005 = vadd.f32 0.0, %v1004
  %v1006 = vpop.f32.mrf.mxu0
  %v1007 = vpop.f32.mrf.mxu0
  %v1008 = vadd.f32 0.0, %v1007
  %v1009 = vpop.f32.mrf.mxu0
  %1010 = vmatprep.mubr.bf16.mxu0 0
  %1011 = vmatmul.mubr.bf16.gmra.mxu0 %v920
  %v1012 = vpop.f32.mrf.mxu0
  %v1013 = vadd.f32 0.0, %v1012
  %v1014 = vpop.f32.mrf.mxu0
  %v1015 = vpop.f32.mrf.mxu0
  %v1016 = vadd.f32 0.0, %v1015
  %v1017 = vpop.f32.mrf.mxu0
  %1018 = vmatprep.mubr.bf16.mxu0 0
  %1019 = vmatmul.mubr.bf16.gmra.mxu0 %v923
  %v1020 = vpop.f32.mrf.mxu0
  %v1021 = vadd.f32 0.0, %v1020
  %v1022 = vpop.f32.mrf.mxu0
  %v1023 = vpop.f32.mrf.mxu0
  %v1024 = vadd.f32 0.0, %v1023
  %v1025 = vpop.f32.mrf.mxu0
  %1026 = vmatprep.mubr.bf16.mxu0 0
  %1027 = vmatmul.mubr.bf16.gmra.mxu0 %v926
  %v1028 = vpop.f32.mrf.mxu0
  %v1029 = vadd.f32 0.0, %v1028
  %v1030 = vpop.f32.mrf.mxu0
  %v1031 = vpop.f32.mrf.mxu0
  %v1032 = vadd.f32 0.0, %v1031
  %v1033 = vpop.f32.mrf.mxu0
  %1034 = vmatprep.mubr.bf16.mxu0 0
  %1035 = vmatmul.mubr.bf16.gmra.mxu0 %v929
  %v1036 = vpop.f32.mrf.mxu0
  %v1037 = vadd.f32 0.0, %v1036
  %v1038 = vpop.f32.mrf.mxu0
  %v1039 = vpop.f32.mrf.mxu0
  %v1040 = vadd.f32 0.0, %v1039
  %v1041 = vpop.f32.mrf.mxu0
  %1042 = vmatprep.mubr.bf16.mxu0 0
  %1043 = vmatmul.mubr.bf16.gmra.mxu0 %v932
  %v1044 = vpop.f32.mrf.mxu0
  %v1045 = vadd.f32 0.0, %v1044
  %v1046 = vpop.f32.mrf.mxu0
  %v1047 = vpop.f32.mrf.mxu0
  %v1048 = vadd.f32 0.0, %v1047
  %v1049 = vpop.f32.mrf.mxu0
  %1050 = vmatprep.mubr.bf16.mxu0 0
  %1051 = vmatmul.mubr.bf16.gmra.mxu0 %v935
  %v1052 = vpop.f32.mrf.mxu0
  %v1053 = vadd.f32 0.0, %v1052
  %v1054 = vpop.f32.mrf.mxu0
  %v1055 = vpop.f32.mrf.mxu0
  %v1056 = vadd.f32 0.0, %v1055
  %v1057 = vpop.f32.mrf.mxu0
  %1058 = vmatprep.mubr.bf16.mxu0 0
  %1059 = vmatmul.mubr.bf16.gmra.mxu0 %v938
  %v1060 = vpop.f32.mrf.mxu0
  %v1061 = vadd.f32 0.0, %v1060
  %v1062 = vpop.f32.mrf.mxu0
  %v1063 = vpop.f32.mrf.mxu0
  %v1064 = vadd.f32 0.0, %v1063
  %v1065 = vpop.f32.mrf.mxu0
  %1066 = vmatprep.mubr.bf16.mxu0 0
  %1067 = vmatmul.mubr.bf16.gmra.mxu0 %v941
  %v1068 = vpop.f32.mrf.mxu0
  %v1069 = vadd.f32 0.0, %v1068
  %v1070 = vpop.f32.mrf.mxu0
  %v1071 = vpop.f32.mrf.mxu0
  %v1072 = vadd.f32 0.0, %v1071
  %v1073 = vpop.f32.mrf.mxu0
  %1074 = vmatprep.mubr.bf16.mxu0 0
  %1075 = vmatmul.mubr.bf16.gmra.mxu0 %v944
  %v1076 = vpop.f32.mrf.mxu0
  %v1077 = vadd.f32 0.0, %v1076
  %v1078 = vpop.f32.mrf.mxu0
  %v1079 = vpop.f32.mrf.mxu0
  %v1080 = vadd.f32 0.0, %v1079
  %v1081 = vpop.f32.mrf.mxu0
  %1082 = vmatprep.mubr.bf16.mxu0 0
  %1083 = vmatmul.mubr.bf16.gmra.mxu0 %v947
  %v1084 = vpop.f32.mrf.mxu0
  %v1085 = vadd.f32 0.0, %v1084
  %v1086 = vpop.f32.mrf.mxu0
  %v1087 = vpop.f32.mrf.mxu0
  %v1088 = vadd.f32 0.0, %v1087
  %v1089 = vpop.f32.mrf.mxu0
  %1090 = vmatprep.mubr.bf16.mxu0 0
  %1091 = vmatmul.mubr.bf16.gmra.mxu0 %v950
  %v1092 = vpop.f32.mrf.mxu0
  %v1093 = vadd.f32 0.0, %v1092
  %v1094 = vpop.f32.mrf.mxu0
  %v1095 = vpop.f32.mrf.mxu0
  %v1096 = vadd.f32 0.0, %v1095
  %v1097 = vpop.f32.mrf.mxu0
  %1098 = vmatprep.mubr.bf16.mxu0 0
  %1099 = vmatmul.mubr.bf16.gmra.mxu0 %v953
  %v1100 = vpop.f32.mrf.mxu0
  %v1101 = vadd.f32 0.0, %v1100
  %v1102 = vpop.f32.mrf.mxu0
  %v1103 = vpop.f32.mrf.mxu0
  %v1104 = vadd.f32 0.0, %v1103
  %v1105 = vpop.f32.mrf.mxu0
  %1106 = vmatprep.mubr.bf16.mxu0 0
  %1107 = vmatmul.mubr.bf16.gmra.mxu0 %v956
  %v1108 = vpop.f32.mrf.mxu0
  %v1109 = vadd.f32 0.0, %v1108
  %v1110 = vpop.f32.mrf.mxu0
  %v1111 = vpop.f32.mrf.mxu0
  %v1112 = vadd.f32 0.0, %v1111
  %v1113 = vpop.f32.mrf.mxu0
  %1114 = vmatprep.mubr.bf16.mxu0 0
  %1115 = vmatmul.mubr.bf16.gmra.mxu0 %v959
  %v1116 = vpop.f32.mrf.mxu0
  %v1117 = vadd.f32 0.0, %v1116
  %v1118 = vpop.f32.mrf.mxu0
  %v1119 = vpop.f32.mrf.mxu0
  %v1120 = vadd.f32 0.0, %v1119
  %v1121 = vpop.f32.mrf.mxu0
  %1122 = vmatprep.mubr.bf16.mxu0 0
  %1123 = vmatmul.mubr.bf16.gmra.mxu0 %v962
  %v1124 = vpop.f32.mrf.mxu0
  %v1125 = vadd.f32 0.0, %v1124
  %v1126 = vpop.f32.mrf.mxu0
  %v1127 = vpop.f32.mrf.mxu0
  %v1128 = vadd.f32 0.0, %v1127
  %v1129 = vpop.f32.mrf.mxu0
  %1130 = vmatprep.mubr.bf16.mxu0 0
  %1131 = vmatmul.mubr.bf16.gmra.mxu0 %v965
  %v1132 = vpop.f32.mrf.mxu0
  %v1133 = vadd.f32 0.0, %v1132
  %v1134 = vpop.f32.mrf.mxu0
  %v1135 = vpop.f32.mrf.mxu0
  %v1136 = vadd.f32 0.0, %v1135
  %v1137 = vpop.f32.mrf.mxu0
  %1138 = vmatprep.mubr.bf16.mxu0 0
  %1139 = vmatmul.mubr.bf16.gmra.mxu0 %v968
  %v1140 = vpop.f32.mrf.mxu0
  %v1141 = vadd.f32 0.0, %v1140
  %v1142 = vpop.f32.mrf.mxu0
  %v1143 = vpop.f32.mrf.mxu0
  %v1144 = vadd.f32 0.0, %v1143
  %v1145 = vpop.f32.mrf.mxu0
  %1146 = vdwg.mxu0
  %v1147 = vmax.f32 %v753, %v1005
  %v1148 = vmax.f32 %v754, %v1008
  %v1149 = vmax.f32 %v755, %v1013
  %v1150 = vmax.f32 %v756, %v1016
  %v1151 = vmax.f32 %v757, %v1021
  %v1152 = vmax.f32 %v758, %v1024
  %v1153 = vmax.f32 %v759, %v1029
  %v1154 = vmax.f32 %v760, %v1032
  %v1155 = vmax.f32 %v761, %v1037
  %v1156 = vmax.f32 %v762, %v1040
  %v1157 = vmax.f32 %v763, %v1045
  %v1158 = vmax.f32 %v764, %v1048
  %v1159 = vmax.f32 %v765, %v1053
  %v1160 = vmax.f32 %v766, %v1056
  %v1161 = vmax.f32 %v767, %v1061
  %v1162 = vmax.f32 %v768, %v1064
  %v1163 = vmax.f32 %v769, %v1069
  %v1164 = vmax.f32 %v770, %v1072
  %v1165 = vmax.f32 %v771, %v1077
  %v1166 = vmax.f32 %v772, %v1080
  %v1167 = vmax.f32 %v773, %v1085
  %v1168 = vmax.f32 %v774, %v1088
  %v1169 = vmax.f32 %v775, %v1093
  %v1170 = vmax.f32 %v776, %v1096
  %v1171 = vmax.f32 %v777, %v1101
  %v1172 = vmax.f32 %v778, %v1104
  %v1173 = vmax.f32 %v779, %v1109
  %v1174 = vmax.f32 %v780, %v1112
  %v1175 = vmax.f32 %v781, %v1117
  %v1176 = vmax.f32 %v782, %v1120
  %v1177 = vmax.f32 %v783, %v1125
  %v1178 = vmax.f32 %v784, %v1128
  %v1179 = vmax.f32 %v785, %v1133
  %v1180 = vmax.f32 %v786, %v1136
  %v1181 = vmax.f32 %v787, %v1141
  %v1182 = vmax.f32 %v788, %v1144
  %s1183 = scalar_lea.vmem %s0, 432
  %v1184 = vld [vmem:[%s1183] sm:$0xf]
  %v1185 = vld [vmem:[%s1183 + $0x4] sm:$0xf]
  %v1186 = vld [vmem:[%s1183 + $0x8] sm:$0xf]
  %v1187 = vld [vmem:[%s1183 + $0xc] sm:$0xf]
  %v1188 = vld [vmem:[%s1183 + $0x10] sm:$0xf]
  %v1189 = vld [vmem:[%s1183 + $0x14] sm:$0xf]
  %v1190 = vld [vmem:[%s1183 + $0x18] sm:$0xf]
  %v1191 = vld [vmem:[%s1183 + $0x1c] sm:$0xf]
  %v1192 = vld [vmem:[%s1183 + $0x20] sm:$0xf]
  %v1193 = vld [vmem:[%s1183 + $0x24] sm:$0xf]
  %v1194 = vld [vmem:[%s1183 + $0x28] sm:$0xf]
  %v1195 = vld [vmem:[%s1183 + $0x2c] sm:$0xf]
  %v1196 = vld [vmem:[%s1183 + $0x30] sm:$0xf]
  %v1197 = vld [vmem:[%s1183 + $0x34] sm:$0xf]
  %v1198 = vld [vmem:[%s1183 + $0x38] sm:$0xf]
  %v1199 = vld [vmem:[%s1183 + $0x3c] sm:$0xf]
  %v1200 = vld [vmem:[%s1183 + $0x40] sm:$0xf]
  %v1201 = vld [vmem:[%s1183 + $0x44] sm:$0xf]
  %v1202 = vld [vmem:[%s1183 + $0x48] sm:$0xf]
  %v1203 = vld [vmem:[%s1183 + $0x4c] sm:$0xf]
  %v1204 = vld [vmem:[%s1183 + $0x50] sm:$0xf]
  %v1205 = vld [vmem:[%s1183 + $0x54] sm:$0xf]
  %v1206 = vld [vmem:[%s1183 + $0x58] sm:$0xf]
  %v1207 = vld [vmem:[%s1183 + $0x5c] sm:$0xf]
  %v1208 = vld [vmem:[%s1183 + $0x60] sm:$0xf]
  %v1209 = vld [vmem:[%s1183 + $0x64] sm:$0xf]
  %v1210 = vld [vmem:[%s1183 + $0x68] sm:$0xf]
  %v1211 = vld [vmem:[%s1183 + $0x6c] sm:$0xf]
  %v1212 = vld [vmem:[%s1183 + $0x70] sm:$0xf]
  %v1213 = vld [vmem:[%s1183 + $0x74] sm:$0xf]
  %v1214 = vld [vmem:[%s1183 + $0x78] sm:$0xf]
  %v1215 = vld [vmem:[%s1183 + $0x7c] sm:$0xf]
  %v1216 = vld [vmem:[%s1183 + $0x80] sm:$0xf]
  %v1217 = vld [vmem:[%s1183 + $0x84] sm:$0xf]
  %v1218 = vld [vmem:[%s1183 + $0x88] sm:$0xf]
  %v1219 = vld [vmem:[%s1183 + $0x8c] sm:$0xf]
  %v1256 = vunpack.c.l.b16 %v1184
  %v1257 = vunpack.c.l.b16 %v1185
  %v1258 = vunpack.c.l.b16 %v1186
  %v1259 = vunpack.c.l.b16 %v1187
  %v1260 = vunpack.c.l.b16 %v1188
  %v1261 = vunpack.c.l.b16 %v1189
  %v1262 = vunpack.c.l.b16 %v1190
  %v1263 = vunpack.c.l.b16 %v1191
  %v1264 = vunpack.c.l.b16 %v1192
  %v1265 = vunpack.c.l.b16 %v1193
  %v1266 = vunpack.c.l.b16 %v1194
  %v1267 = vunpack.c.l.b16 %v1195
  %v1268 = vunpack.c.l.b16 %v1196
  %v1269 = vunpack.c.l.b16 %v1197
  %v1270 = vunpack.c.l.b16 %v1198
  %v1271 = vunpack.c.l.b16 %v1199
  %v1272 = vunpack.c.l.b16 %v1200
  %v1273 = vunpack.c.l.b16 %v1201
  %v1274 = vunpack.c.l.b16 %v1202
  %v1275 = vunpack.c.l.b16 %v1203
  %v1276 = vunpack.c.l.b16 %v1204
  %v1277 = vunpack.c.l.b16 %v1205
  %v1278 = vunpack.c.l.b16 %v1206
  %v1279 = vunpack.c.l.b16 %v1207
  %v1280 = vunpack.c.l.b16 %v1208
  %v1281 = vunpack.c.l.b16 %v1209
  %v1282 = vunpack.c.l.b16 %v1210
  %v1283 = vunpack.c.l.b16 %v1211
  %v1284 = vunpack.c.l.b16 %v1212
  %v1285 = vunpack.c.l.b16 %v1213
  %v1286 = vunpack.c.l.b16 %v1214
  %v1287 = vunpack.c.l.b16 %v1215
  %v1288 = vunpack.c.l.b16 %v1216
  %v1289 = vunpack.c.l.b16 %v1217
  %v1290 = vunpack.c.l.b16 %v1218
  %v1291 = vunpack.c.l.b16 %v1219
  %v1292 = vpack.c.b16 %v1257, %v1256
  %v1293 = vpack.c.b16 %v1259, %v1258
  %v1294 = vpack.c.b16 %v1261, %v1260
  %v1295 = vpack.c.b16 %v1263, %v1262
  %v1296 = vpack.c.b16 %v1265, %v1264
  %v1297 = vpack.c.b16 %v1267, %v1266
  %v1298 = vpack.c.b16 %v1269, %v1268
  %v1299 = vpack.c.b16 %v1271, %v1270
  %v1300 = vpack.c.b16 %v1273, %v1272
  %v1301 = vpack.c.b16 %v1275, %v1274
  %v1302 = vpack.c.b16 %v1277, %v1276
  %v1303 = vpack.c.b16 %v1279, %v1278
  %v1304 = vpack.c.b16 %v1281, %v1280
  %v1305 = vpack.c.b16 %v1283, %v1282
  %v1306 = vpack.c.b16 %v1285, %v1284
  %v1307 = vpack.c.b16 %v1287, %v1286
  %v1308 = vpack.c.b16 %v1289, %v1288
  %v1309 = vpack.c.b16 %v1291, %v1290
  %v1311 = vsel %vm156, %v1292, 0
  %v1314 = vsel %vm156, %v1293, 0
  %v1317 = vsel %vm156, %v1294, 0
  %v1320 = vsel %vm156, %v1295, 0
  %v1323 = vsel %vm156, %v1296, 0
  %v1326 = vsel %vm156, %v1297, 0
  %v1329 = vsel %vm156, %v1298, 0
  %v1332 = vsel %vm156, %v1299, 0
  %v1335 = vsel %vm156, %v1300, 0
  %v1338 = vsel %vm156, %v1301, 0
  %v1341 = vsel %vm156, %v1302, 0
  %v1344 = vsel %vm156, %v1303, 0
  %v1347 = vsel %vm156, %v1304, 0
  %v1350 = vsel %vm156, %v1305, 0
  %v1353 = vsel %vm156, %v1306, 0
  %v1356 = vsel %vm156, %v1307, 0
  %v1359 = vsel %vm156, %v1308, 0
  %v1362 = vsel %vm156, %v1309, 0
  %1364 = vmatprep.subr.bf16.mxu0 0
  %1365 = vmatpush1.bf16.msra.mxu0 0
  %1366 = vmatprep.subr.bf16.mxu0 0
  %1367 = vmatpush1.bf16.msra.mxu0 0
  %1368 = vmatprep.subr.bf16.mxu0 0
  %1369 = vmatpush1.bf16.msra.mxu0 0
  %1370 = vmatprep.subr.bf16.mxu0 0
  %1371 = vmatpush1.bf16.msra.mxu0 0
  %1372 = vmatprep.subr.bf16.mxu0 0
  %1373 = vmatpush1.bf16.msra.mxu0 0
  %1374 = vmatprep.subr.bf16.mxu0 0
  %1375 = vmatpush1.bf16.msra.mxu0 0
  %1376 = vmatprep.subr.bf16.mxu0 0
  %1377 = vmatpush1.bf16.msra.mxu0 %v216
  %1378 = vmatprep.subr.bf16.mxu0 0
  %1379 = vmatpush1.bf16.msra.mxu0 %v153
  %1380 = vmatprep.subr.bf16.mxu0 0
  %1381 = vmatpush2.bf16.msra.mxu0 0
  %1382 = vmatprep.subr.bf16.mxu0 0
  %1383 = vmatpush2.bf16.msra.mxu0 0
  %1384 = vmatprep.subr.bf16.mxu0 0
  %1385 = vmatpush2.bf16.msra.mxu0 0
  %1386 = vmatprep.subr.bf16.mxu0 0
  %1387 = vmatpush2.bf16.msra.mxu0 0
  %1388 = vmatprep.subr.bf16.mxu0 0
  %1389 = vmatpush2.bf16.msra.mxu0 0
  %1390 = vmatprep.subr.bf16.mxu0 0
  %1391 = vmatpush2.bf16.msra.mxu0 0
  %1392 = vmatprep.subr.bf16.mxu0 0
  %1393 = vmatpush2.bf16.msra.mxu0 0
  %1394 = vmatprep.subr.bf16.mxu0 0
  %1395 = vmatpush2.bf16.msra.mxu0 0
  %1396 = vmatprep.mubr.bf16.mxu0 0
  %1397 = vmatmul.mubr.bf16.gmra.mxu0 %v1311
  %v1398 = vpop.f32.mrf.mxu0
  %v1399 = vadd.f32 0.0, %v1398
  %v1400 = vpop.f32.mrf.mxu0
  %v1401 = vpop.f32.mrf.mxu0
  %v1402 = vadd.f32 0.0, %v1401
  %v1403 = vpop.f32.mrf.mxu0
  %1404 = vmatprep.mubr.bf16.mxu0 0
  %1405 = vmatmul.mubr.bf16.gmra.mxu0 %v1314
  %v1406 = vpop.f32.mrf.mxu0
  %v1407 = vadd.f32 0.0, %v1406
  %v1408 = vpop.f32.mrf.mxu0
  %v1409 = vpop.f32.mrf.mxu0
  %v1410 = vadd.f32 0.0, %v1409
  %v1411 = vpop.f32.mrf.mxu0
  %1412 = vmatprep.mubr.bf16.mxu0 0
  %1413 = vmatmul.mubr.bf16.gmra.mxu0 %v1317
  %v1414 = vpop.f32.mrf.mxu0
  %v1415 = vadd.f32 0.0, %v1414
  %v1416 = vpop.f32.mrf.mxu0
  %v1417 = vpop.f32.mrf.mxu0
  %v1418 = vadd.f32 0.0, %v1417
  %v1419 = vpop.f32.mrf.mxu0
  %1420 = vmatprep.mubr.bf16.mxu0 0
  %1421 = vmatmul.mubr.bf16.gmra.mxu0 %v1320
  %v1422 = vpop.f32.mrf.mxu0
  %v1423 = vadd.f32 0.0, %v1422
  %v1424 = vpop.f32.mrf.mxu0
  %v1425 = vpop.f32.mrf.mxu0
  %v1426 = vadd.f32 0.0, %v1425
  %v1427 = vpop.f32.mrf.mxu0
  %1428 = vmatprep.mubr.bf16.mxu0 0
  %1429 = vmatmul.mubr.bf16.gmra.mxu0 %v1323
  %v1430 = vpop.f32.mrf.mxu0
  %v1431 = vadd.f32 0.0, %v1430
  %v1432 = vpop.f32.mrf.mxu0
  %v1433 = vpop.f32.mrf.mxu0
  %v1434 = vadd.f32 0.0, %v1433
  %v1435 = vpop.f32.mrf.mxu0
  %1436 = vmatprep.mubr.bf16.mxu0 0
  %1437 = vmatmul.mubr.bf16.gmra.mxu0 %v1326
  %v1438 = vpop.f32.mrf.mxu0
  %v1439 = vadd.f32 0.0, %v1438
  %v1440 = vpop.f32.mrf.mxu0
  %v1441 = vpop.f32.mrf.mxu0
  %v1442 = vadd.f32 0.0, %v1441
  %v1443 = vpop.f32.mrf.mxu0
  %1444 = vmatprep.mubr.bf16.mxu0 0
  %1445 = vmatmul.mubr.bf16.gmra.mxu0 %v1329
  %v1446 = vpop.f32.mrf.mxu0
  %v1447 = vadd.f32 0.0, %v1446
  %v1448 = vpop.f32.mrf.mxu0
  %v1449 = vpop.f32.mrf.mxu0
  %v1450 = vadd.f32 0.0, %v1449
  %v1451 = vpop.f32.mrf.mxu0
  %1452 = vmatprep.mubr.bf16.mxu0 0
  %1453 = vmatmul.mubr.bf16.gmra.mxu0 %v1332
  %v1454 = vpop.f32.mrf.mxu0
  %v1455 = vadd.f32 0.0, %v1454
  %v1456 = vpop.f32.mrf.mxu0
  %v1457 = vpop.f32.mrf.mxu0
  %v1458 = vadd.f32 0.0, %v1457
  %v1459 = vpop.f32.mrf.mxu0
  %1460 = vmatprep.mubr.bf16.mxu0 0
  %1461 = vmatmul.mubr.bf16.gmra.mxu0 %v1335
  %v1462 = vpop.f32.mrf.mxu0
  %v1463 = vadd.f32 0.0, %v1462
  %v1464 = vpop.f32.mrf.mxu0
  %v1465 = vpop.f32.mrf.mxu0
  %v1466 = vadd.f32 0.0, %v1465
  %v1467 = vpop.f32.mrf.mxu0
  %1468 = vmatprep.mubr.bf16.mxu0 0
  %1469 = vmatmul.mubr.bf16.gmra.mxu0 %v1338
  %v1470 = vpop.f32.mrf.mxu0
  %v1471 = vadd.f32 0.0, %v1470
  %v1472 = vpop.f32.mrf.mxu0
  %v1473 = vpop.f32.mrf.mxu0
  %v1474 = vadd.f32 0.0, %v1473
  %v1475 = vpop.f32.mrf.mxu0
  %1476 = vmatprep.mubr.bf16.mxu0 0
  %1477 = vmatmul.mubr.bf16.gmra.mxu0 %v1341
  %v1478 = vpop.f32.mrf.mxu0
  %v1479 = vadd.f32 0.0, %v1478
  %v1480 = vpop.f32.mrf.mxu0
  %v1481 = vpop.f32.mrf.mxu0
  %v1482 = vadd.f32 0.0, %v1481
  %v1483 = vpop.f32.mrf.mxu0
  %1484 = vmatprep.mubr.bf16.mxu0 0
  %1485 = vmatmul.mubr.bf16.gmra.mxu0 %v1344
  %v1486 = vpop.f32.mrf.mxu0
  %v1487 = vadd.f32 0.0, %v1486
  %v1488 = vpop.f32.mrf.mxu0
  %v1489 = vpop.f32.mrf.mxu0
  %v1490 = vadd.f32 0.0, %v1489
  %v1491 = vpop.f32.mrf.mxu0
  %1492 = vmatprep.mubr.bf16.mxu0 0
  %1493 = vmatmul.mubr.bf16.gmra.mxu0 %v1347
  %v1494 = vpop.f32.mrf.mxu0
  %v1495 = vadd.f32 0.0, %v1494
  %v1496 = vpop.f32.mrf.mxu0
  %v1497 = vpop.f32.mrf.mxu0
  %v1498 = vadd.f32 0.0, %v1497
  %v1499 = vpop.f32.mrf.mxu0
  %1500 = vmatprep.mubr.bf16.mxu0 0
  %1501 = vmatmul.mubr.bf16.gmra.mxu0 %v1350
  %v1502 = vpop.f32.mrf.mxu0
  %v1503 = vadd.f32 0.0, %v1502
  %v1504 = vpop.f32.mrf.mxu0
  %v1505 = vpop.f32.mrf.mxu0
  %v1506 = vadd.f32 0.0, %v1505
  %v1507 = vpop.f32.mrf.mxu0
  %1508 = vmatprep.mubr.bf16.mxu0 0
  %1509 = vmatmul.mubr.bf16.gmra.mxu0 %v1353
  %v1510 = vpop.f32.mrf.mxu0
  %v1511 = vadd.f32 0.0, %v1510
  %v1512 = vpop.f32.mrf.mxu0
  %v1513 = vpop.f32.mrf.mxu0
  %v1514 = vadd.f32 0.0, %v1513
  %v1515 = vpop.f32.mrf.mxu0
  %1516 = vmatprep.mubr.bf16.mxu0 0
  %1517 = vmatmul.mubr.bf16.gmra.mxu0 %v1356
  %v1518 = vpop.f32.mrf.mxu0
  %v1519 = vadd.f32 0.0, %v1518
  %v1520 = vpop.f32.mrf.mxu0
  %v1521 = vpop.f32.mrf.mxu0
  %v1522 = vadd.f32 0.0, %v1521
  %v1523 = vpop.f32.mrf.mxu0
  %1524 = vmatprep.mubr.bf16.mxu0 0
  %1525 = vmatmul.mubr.bf16.gmra.mxu0 %v1359
  %v1526 = vpop.f32.mrf.mxu0
  %v1527 = vadd.f32 0.0, %v1526
  %v1528 = vpop.f32.mrf.mxu0
  %v1529 = vpop.f32.mrf.mxu0
  %v1530 = vadd.f32 0.0, %v1529
  %v1531 = vpop.f32.mrf.mxu0
  %1532 = vmatprep.mubr.bf16.mxu0 0
  %1533 = vmatmul.mubr.bf16.gmra.mxu0 %v1362
  %v1534 = vpop.f32.mrf.mxu0
  %v1535 = vadd.f32 0.0, %v1534
  %v1536 = vpop.f32.mrf.mxu0
  %v1537 = vpop.f32.mrf.mxu0
  %v1538 = vadd.f32 0.0, %v1537
  %v1539 = vpop.f32.mrf.mxu0
  %1540 = vdwg.mxu0
  %v1541 = vmax.f32 %v1147, %v1399
  %v1542 = vmax.f32 %v1148, %v1402
  %v1543 = vmax.f32 %v1149, %v1407
  %v1544 = vmax.f32 %v1150, %v1410
  %v1545 = vmax.f32 %v1151, %v1415
  %v1546 = vmax.f32 %v1152, %v1418
  %v1547 = vmax.f32 %v1153, %v1423
  %v1548 = vmax.f32 %v1154, %v1426
  %v1549 = vmax.f32 %v1155, %v1431
  %v1550 = vmax.f32 %v1156, %v1434
  %v1551 = vmax.f32 %v1157, %v1439
  %v1552 = vmax.f32 %v1158, %v1442
  %v1553 = vmax.f32 %v1159, %v1447
  %v1554 = vmax.f32 %v1160, %v1450
  %v1555 = vmax.f32 %v1161, %v1455
  %v1556 = vmax.f32 %v1162, %v1458
  %v1557 = vmax.f32 %v1163, %v1463
  %v1558 = vmax.f32 %v1164, %v1466
  %v1559 = vmax.f32 %v1165, %v1471
  %v1560 = vmax.f32 %v1166, %v1474
  %v1561 = vmax.f32 %v1167, %v1479
  %v1562 = vmax.f32 %v1168, %v1482
  %v1563 = vmax.f32 %v1169, %v1487
  %v1564 = vmax.f32 %v1170, %v1490
  %v1565 = vmax.f32 %v1171, %v1495
  %v1566 = vmax.f32 %v1172, %v1498
  %v1567 = vmax.f32 %v1173, %v1503
  %v1568 = vmax.f32 %v1174, %v1506
  %v1569 = vmax.f32 %v1175, %v1511
  %v1570 = vmax.f32 %v1176, %v1514
  %v1571 = vmax.f32 %v1177, %v1519
  %v1572 = vmax.f32 %v1178, %v1522
  %v1573 = vmax.f32 %v1179, %v1527
  %v1574 = vmax.f32 %v1180, %v1530
  %v1575 = vmax.f32 %v1181, %v1535
  %v1576 = vmax.f32 %v1182, %v1538
  %v1577 = vld [vmem:[%s2] sm:$0x1]
  %v1579 = vlaneseq
  %v1580 = vshrl.u32 %v1579, 7
  %v1581 = vsub.s32 0, %v1580
  %v1582 = vrot.slane %v1577, %v1581
  %v1584 = vadd.f32 %v1541, %v1582
  %v1585 = vadd.f32 %v1542, %v1582
  %v1586 = vadd.f32 %v1543, %v1582
  %v1587 = vadd.f32 %v1544, %v1582
  %v1588 = vadd.f32 %v1545, %v1582
  %v1589 = vadd.f32 %v1546, %v1582
  %v1590 = vadd.f32 %v1547, %v1582
  %v1591 = vadd.f32 %v1548, %v1582
  %v1592 = vadd.f32 %v1549, %v1582
  %v1593 = vadd.f32 %v1550, %v1582
  %v1594 = vadd.f32 %v1551, %v1582
  %v1595 = vadd.f32 %v1552, %v1582
  %v1596 = vadd.f32 %v1553, %v1582
  %v1597 = vadd.f32 %v1554, %v1582
  %v1598 = vadd.f32 %v1555, %v1582
  %v1599 = vadd.f32 %v1556, %v1582
  %v1600 = vadd.f32 %v1557, %v1582
  %v1601 = vadd.f32 %v1558, %v1582
  %v1602 = vadd.f32 %v1559, %v1582
  %v1603 = vadd.f32 %v1560, %v1582
  %v1604 = vadd.f32 %v1561, %v1582
  %v1605 = vadd.f32 %v1562, %v1582
  %v1606 = vadd.f32 %v1563, %v1582
  %v1607 = vadd.f32 %v1564, %v1582
  %v1608 = vadd.f32 %v1565, %v1582
  %v1609 = vadd.f32 %v1566, %v1582
  %v1610 = vadd.f32 %v1567, %v1582
  %v1611 = vadd.f32 %v1568, %v1582
  %v1612 = vadd.f32 %v1569, %v1582
  %v1613 = vadd.f32 %v1570, %v1582
  %v1614 = vadd.f32 %v1571, %v1582
  %v1615 = vadd.f32 %v1572, %v1582
  %v1616 = vadd.f32 %v1573, %v1582
  %v1617 = vadd.f32 %v1574, %v1582
  %v1618 = vadd.f32 %v1575, %v1582
  %v1619 = vadd.f32 %v1576, %v1582
  %v1620 = vmax.f32 %v1584, 0.0
  %v1621 = vmax.f32 %v1585, 0.0
  %v1622 = vmax.f32 %v1586, 0.0
  %v1623 = vmax.f32 %v1587, 0.0
  %v1624 = vmax.f32 %v1588, 0.0
  %v1625 = vmax.f32 %v1589, 0.0
  %v1626 = vmax.f32 %v1590, 0.0
  %v1627 = vmax.f32 %v1591, 0.0
  %v1628 = vmax.f32 %v1592, 0.0
  %v1629 = vmax.f32 %v1593, 0.0
  %v1630 = vmax.f32 %v1594, 0.0
  %v1631 = vmax.f32 %v1595, 0.0
  %v1632 = vmax.f32 %v1596, 0.0
  %v1633 = vmax.f32 %v1597, 0.0
  %v1634 = vmax.f32 %v1598, 0.0
  %v1635 = vmax.f32 %v1599, 0.0
  %v1636 = vmax.f32 %v1600, 0.0
  %v1637 = vmax.f32 %v1601, 0.0
  %v1638 = vmax.f32 %v1602, 0.0
  %v1639 = vmax.f32 %v1603, 0.0
  %v1640 = vmax.f32 %v1604, 0.0
  %v1641 = vmax.f32 %v1605, 0.0
  %v1642 = vmax.f32 %v1606, 0.0
  %v1643 = vmax.f32 %v1607, 0.0
  %v1644 = vmax.f32 %v1608, 0.0
  %v1645 = vmax.f32 %v1609, 0.0
  %v1646 = vmax.f32 %v1610, 0.0
  %v1647 = vmax.f32 %v1611, 0.0
  %v1648 = vmax.f32 %v1612, 0.0
  %v1649 = vmax.f32 %v1613, 0.0
  %v1650 = vmax.f32 %v1614, 0.0
  %v1651 = vmax.f32 %v1615, 0.0
  %v1652 = vmax.f32 %v1616, 0.0
  %v1653 = vmax.f32 %v1617, 0.0
  %v1654 = vmax.f32 %v1618, 0.0
  %v1655 = vmax.f32 %v1619, 0.0
  %v1656 = vpack.c.bf16 %v1621, %v1620
  %v1657 = vpack.c.bf16 %v1623, %v1622
  %v1658 = vpack.c.bf16 %v1625, %v1624
  %v1659 = vpack.c.bf16 %v1627, %v1626
  %v1660 = vpack.c.bf16 %v1629, %v1628
  %v1661 = vpack.c.bf16 %v1631, %v1630
  %v1662 = vpack.c.bf16 %v1633, %v1632
  %v1663 = vpack.c.bf16 %v1635, %v1634
  %v1664 = vpack.c.bf16 %v1637, %v1636
  %v1665 = vpack.c.bf16 %v1639, %v1638
  %v1666 = vpack.c.bf16 %v1641, %v1640
  %v1667 = vpack.c.bf16 %v1643, %v1642
  %v1668 = vpack.c.bf16 %v1645, %v1644
  %v1669 = vpack.c.bf16 %v1647, %v1646
  %v1670 = vpack.c.bf16 %v1649, %v1648
  %v1671 = vpack.c.bf16 %v1651, %v1650
  %v1672 = vpack.c.bf16 %v1653, %v1652
  %v1673 = vpack.c.bf16 %v1655, %v1654
  %v1692 = vunpack.c.l.b16 %v1656
  %v1693 = vunpack.c.h.b16 %v1656
  %v1694 = vunpack.c.l.b16 %v1657
  %v1695 = vunpack.c.h.b16 %v1657
  %v1696 = vunpack.c.l.b16 %v1658
  %v1697 = vunpack.c.h.b16 %v1658
  %v1698 = vunpack.c.l.b16 %v1659
  %v1699 = vunpack.c.h.b16 %v1659
  %v1700 = vunpack.c.l.b16 %v1660
  %v1701 = vunpack.c.h.b16 %v1660
  %v1702 = vunpack.c.l.b16 %v1661
  %v1703 = vunpack.c.h.b16 %v1661
  %v1704 = vunpack.c.l.b16 %v1662
  %v1705 = vunpack.c.h.b16 %v1662
  %v1706 = vunpack.c.l.b16 %v1663
  %v1707 = vunpack.c.h.b16 %v1663
  %v1708 = vunpack.c.l.b16 %v1664
  %v1709 = vunpack.c.h.b16 %v1664
  %v1710 = vunpack.c.l.b16 %v1665
  %v1711 = vunpack.c.h.b16 %v1665
  %v1712 = vunpack.c.l.b16 %v1666
  %v1713 = vunpack.c.h.b16 %v1666
  %v1714 = vunpack.c.l.b16 %v1667
  %v1715 = vunpack.c.h.b16 %v1667
  %v1716 = vunpack.c.l.b16 %v1668
  %v1717 = vunpack.c.h.b16 %v1668
  %v1718 = vunpack.c.l.b16 %v1669
  %v1719 = vunpack.c.h.b16 %v1669
  %v1720 = vunpack.c.l.b16 %v1670
  %v1721 = vunpack.c.h.b16 %v1670
  %v1722 = vunpack.c.l.b16 %v1671
  %v1723 = vunpack.c.h.b16 %v1671
  %v1724 = vunpack.c.l.b16 %v1672
  %v1725 = vunpack.c.h.b16 %v1672
  %v1726 = vunpack.c.l.b16 %v1673
  %v1727 = vunpack.c.h.b16 %v1673
  %v1728 = vpack.c.b16 %v1692, %v1692
  %v1729 = vpack.c.b16 %v1693, %v1693
  %v1730 = vpack.c.b16 %v1694, %v1694
  %v1731 = vpack.c.b16 %v1695, %v1695
  %v1732 = vpack.c.b16 %v1696, %v1696
  %v1733 = vpack.c.b16 %v1697, %v1697
  %v1734 = vpack.c.b16 %v1698, %v1698
  %v1735 = vpack.c.b16 %v1699, %v1699
  %v1736 = vpack.c.b16 %v1700, %v1700
  %v1737 = vpack.c.b16 %v1701, %v1701
  %v1738 = vpack.c.b16 %v1702, %v1702
  %v1739 = vpack.c.b16 %v1703, %v1703
  %v1740 = vpack.c.b16 %v1704, %v1704
  %v1741 = vpack.c.b16 %v1705, %v1705
  %v1742 = vpack.c.b16 %v1706, %v1706
  %v1743 = vpack.c.b16 %v1707, %v1707
  %v1744 = vpack.c.b16 %v1708, %v1708
  %v1745 = vpack.c.b16 %v1709, %v1709
  %v1746 = vpack.c.b16 %v1710, %v1710
  %v1747 = vpack.c.b16 %v1711, %v1711
  %v1748 = vpack.c.b16 %v1712, %v1712
  %v1749 = vpack.c.b16 %v1713, %v1713
  %v1750 = vpack.c.b16 %v1714, %v1714
  %v1751 = vpack.c.b16 %v1715, %v1715
  %v1752 = vpack.c.b16 %v1716, %v1716
  %v1753 = vpack.c.b16 %v1717, %v1717
  %v1754 = vpack.c.b16 %v1718, %v1718
  %v1755 = vpack.c.b16 %v1719, %v1719
  %v1756 = vpack.c.b16 %v1720, %v1720
  %v1757 = vpack.c.b16 %v1721, %v1721
  %v1758 = vpack.c.b16 %v1722, %v1722
  %v1759 = vpack.c.b16 %v1723, %v1723
  %v1760 = vpack.c.b16 %v1724, %v1724
  %v1761 = vpack.c.b16 %v1725, %v1725
  %v1762 = vpack.c.b16 %v1726, %v1726
  %v1763 = vpack.c.b16 %v1727, %v1727
  %1800 = vst [vmem:[%s3] sm:$0xf] %v1728
  %1801 = vst [vmem:[%s3 + $0x4] sm:$0xf] %v1729
  %1802 = vst [vmem:[%s3 + $0x8] sm:$0xf] %v1730
  %1803 = vst [vmem:[%s3 + $0xc] sm:$0xf] %v1731
  %1804 = vst [vmem:[%s3 + $0x10] sm:$0xf] %v1732
  %1805 = vst [vmem:[%s3 + $0x14] sm:$0xf] %v1733
  %1806 = vst [vmem:[%s3 + $0x18] sm:$0xf] %v1734
  %1807 = vst [vmem:[%s3 + $0x1c] sm:$0xf] %v1735
  %1808 = vst [vmem:[%s3 + $0x20] sm:$0xf] %v1736
  %1809 = vst [vmem:[%s3 + $0x24] sm:$0xf] %v1737
  %1810 = vst [vmem:[%s3 + $0x28] sm:$0xf] %v1738
  %1811 = vst [vmem:[%s3 + $0x2c] sm:$0xf] %v1739
  %1812 = vst [vmem:[%s3 + $0x30] sm:$0xf] %v1740
  %1813 = vst [vmem:[%s3 + $0x34] sm:$0xf] %v1741
  %1814 = vst [vmem:[%s3 + $0x38] sm:$0xf] %v1742
  %1815 = vst [vmem:[%s3 + $0x3c] sm:$0xf] %v1743
  %1816 = vst [vmem:[%s3 + $0x40] sm:$0xf] %v1744
  %1817 = vst [vmem:[%s3 + $0x44] sm:$0xf] %v1745
  %1818 = vst [vmem:[%s3 + $0x48] sm:$0xf] %v1746
  %1819 = vst [vmem:[%s3 + $0x4c] sm:$0xf] %v1747
  %1820 = vst [vmem:[%s3 + $0x50] sm:$0xf] %v1748
  %1821 = vst [vmem:[%s3 + $0x54] sm:$0xf] %v1749
  %1822 = vst [vmem:[%s3 + $0x58] sm:$0xf] %v1750
  %1823 = vst [vmem:[%s3 + $0x5c] sm:$0xf] %v1751
  %1824 = vst [vmem:[%s3 + $0x60] sm:$0xf] %v1752
  %1825 = vst [vmem:[%s3 + $0x64] sm:$0xf] %v1753
  %1826 = vst [vmem:[%s3 + $0x68] sm:$0xf] %v1754
  %1827 = vst [vmem:[%s3 + $0x6c] sm:$0xf] %v1755
  %1828 = vst [vmem:[%s3 + $0x70] sm:$0xf] %v1756
  %1829 = vst [vmem:[%s3 + $0x74] sm:$0xf] %v1757
  %1830 = vst [vmem:[%s3 + $0x78] sm:$0xf] %v1758
  %1831 = vst [vmem:[%s3 + $0x7c] sm:$0xf] %v1759
  %1832 = vst [vmem:[%s3 + $0x80] sm:$0xf] %v1760
  %1833 = vst [vmem:[%s3 + $0x84] sm:$0xf] %v1761
  %1834 = vst [vmem:[%s3 + $0x88] sm:$0xf] %v1762
  %1835 = vst [vmem:[%s3 + $0x8c] sm:$0xf] %v1763
  // Predicated region
  $region14: #{net_forward.3} parent=0 // pred_check
    _
  $region15: #{net_forward.3} parent=0 // pred_check_branch
    %1837 = sbr.rel (0) target = $region17
  $region16: #{net_forward.3} parent=0 // pred_region
    _
  $region17: #{net_forward.3} parent=0 // pred_fallthru
    _
  // Predicated region
  $region18: #{net_forward.3} parent=0 // pred_check
    _
  $region19: #{net_forward.3} parent=0 // pred_check_branch
    %1839 = sbr.rel (0) target = $region21
  $region20: #{net_forward.3} parent=0 // pred_region
    _
  $region21: #{net_forward.3} parent=0 // pred_fallthru
    _

// kernel: net_forward.4
$region0: #{net_forward.4}
  #allocation0 [shape = 'u32[]', space=smem, size = 0x4, offset = 0x4, fixed_abs, tag = 'smem constant byte address 0x4 - core index']
  #allocation1 [shape = 'u32[144,128]{1,0:T(1,128)}', space=vmem, size = 0x12000, scoped, tag = 'internal scratch']
  %s0 = inlined_call_operand.vmem [shape: bf16[4,32,500], index: 0, kind: input, shape index: {}]
  %s1 = inlined_call_operand.vmem [shape: bf16[500,128], index: 1, kind: input, shape index: {}]
  %s2 = inlined_call_operand.vmem [shape: f32[1,128], index: 2, kind: input, shape index: {}]
  %s3 = inlined_call_operand.vmem [shape: bf16[32,128], index: 3, kind: output, shape index: {}]
  %s4 = sld [smem:[#allocation0]]
  $region22: #{net_forward.4} parent=0
    _
  %s6 = ssub.s32 1, %s4
  %s7 = scalar_select 0, %s6, %s4
  // Predicated region
  $region2: #{net_forward.4} parent=0 // pred_check
    _
  $region3: #{net_forward.4} parent=0 // pred_check_branch
    %9 = sbr.rel (0) target = $region5
  $region4: #{net_forward.4} parent=0 // pred_region
    _
  $region5: #{net_forward.4} parent=0 // pred_fallthru
    _
  // Predicated region
  $region6: #{net_forward.4} parent=0 // pred_check
    _
  $region7: #{net_forward.4} parent=0 // pred_check_branch
    %11 = sbr.rel (0) target = $region9
  $region8: #{net_forward.4} parent=0 // pred_region
    _
  $region9: #{net_forward.4} parent=0 // pred_fallthru
    _
  // Predicated region
  $region10: #{net_forward.4} parent=0 // pred_check
    _
  $region11: #{net_forward.4} parent=0 // pred_check_branch
    %13 = sbr.rel (0) target = $region13
  $region12: #{net_forward.4} parent=0 // pred_region
    _
  $region13: #{net_forward.4} parent=0 // pred_fallthru
    _
  %v15 = vld [vmem:[%s1] sm:$0xf]
  %v16 = vld [vmem:[%s1 + $0x4] sm:$0xf]
  %v17 = vld [vmem:[%s1 + $0x8] sm:$0xf]
  %v18 = vld [vmem:[%s1 + $0xc] sm:$0xf]
  %v19 = vld [vmem:[%s1 + $0x10] sm:$0xf]
  %v20 = vld [vmem:[%s1 + $0x14] sm:$0xf]
  %v21 = vld [vmem:[%s1 + $0x18] sm:$0xf]
  %v22 = vld [vmem:[%s1 + $0x1c] sm:$0xf]
  %v23 = vld [vmem:[%s1 + $0x20] sm:$0xf]
  %v24 = vld [vmem:[%s1 + $0x24] sm:$0xf]
  %v25 = vld [vmem:[%s1 + $0x28] sm:$0xf]
  %v26 = vld [vmem:[%s1 + $0x2c] sm:$0xf]
  %v27 = vld [vmem:[%s1 + $0x30] sm:$0xf]
  %v28 = vld [vmem:[%s1 + $0x34] sm:$0xf]
  %v29 = vld [vmem:[%s1 + $0x38] sm:$0xf]
  %v30 = vld [vmem:[%s1 + $0x3c] sm:$0xf]
  %v31 = vld [vmem:[%s1 + $0x40] sm:$0xf]
  %v32 = vld [vmem:[%s1 + $0x44] sm:$0xf]
  %v33 = vld [vmem:[%s1 + $0x48] sm:$0xf]
  %v34 = vld [vmem:[%s1 + $0x4c] sm:$0xf]
  %v35 = vld [vmem:[%s1 + $0x50] sm:$0xf]
  %v36 = vld [vmem:[%s1 + $0x54] sm:$0xf]
  %v37 = vld [vmem:[%s1 + $0x58] sm:$0xf]
  %v38 = vld [vmem:[%s1 + $0x5c] sm:$0xf]
  %v39 = vld [vmem:[%s1 + $0x60] sm:$0xf]
  %v40 = vld [vmem:[%s1 + $0x64] sm:$0xf]
  %v41 = vld [vmem:[%s1 + $0x68] sm:$0xf]
  %v42 = vld [vmem:[%s1 + $0x6c] sm:$0xf]
  %v43 = vld [vmem:[%s1 + $0x70] sm:$0xf]
  %v44 = vld [vmem:[%s1 + $0x74] sm:$0xf]
  %v45 = vld [vmem:[%s1 + $0x78] sm:$0xf]
  %v46 = vld [vmem:[%s1 + $0x7c] sm:$0xf]
  %v47 = vld [vmem:[%s1 + $0x80] sm:$0xf]
  %v48 = vld [vmem:[%s1 + $0x84] sm:$0xf]
  %v49 = vld [vmem:[%s1 + $0x88] sm:$0xf]
  %v50 = vld [vmem:[%s1 + $0x8c] sm:$0xf]
  %v51 = vld [vmem:[%s1 + $0x90] sm:$0xf]
  %v52 = vld [vmem:[%s1 + $0x94] sm:$0xf]
  %v53 = vld [vmem:[%s1 + $0x98] sm:$0xf]
  %v54 = vld [vmem:[%s1 + $0x9c] sm:$0xf]
  %v55 = vld [vmem:[%s1 + $0xa0] sm:$0xf]
  %v56 = vld [vmem:[%s1 + $0xa4] sm:$0xf]
  %v57 = vld [vmem:[%s1 + $0xa8] sm:$0xf]
  %v58 = vld [vmem:[%s1 + $0xac] sm:$0xf]
  %v59 = vld [vmem:[%s1 + $0xb0] sm:$0xf]
  %v60 = vld [vmem:[%s1 + $0xb4] sm:$0xf]
  %v61 = vld [vmem:[%s1 + $0xb8] sm:$0xf]
  %v62 = vld [vmem:[%s1 + $0xbc] sm:$0xf]
  %v63 = vld [vmem:[%s1 + $0xc0] sm:$0xf]
  %v64 = vld [vmem:[%s1 + $0xc4] sm:$0xf]
  %v65 = vld [vmem:[%s1 + $0xc8] sm:$0xf]
  %v66 = vld [vmem:[%s1 + $0xcc] sm:$0xf]
  %v67 = vld [vmem:[%s1 + $0xd0] sm:$0xf]
  %v68 = vld [vmem:[%s1 + $0xd4] sm:$0xf]
  %v69 = vld [vmem:[%s1 + $0xd8] sm:$0xf]
  %v70 = vld [vmem:[%s1 + $0xdc] sm:$0xf]
  %v71 = vld [vmem:[%s1 + $0xe0] sm:$0xf]
  %v72 = vld [vmem:[%s1 + $0xe4] sm:$0xf]
  %v73 = vld [vmem:[%s1 + $0xe8] sm:$0xf]
  %v74 = vld [vmem:[%s1 + $0xec] sm:$0xf]
  %v75 = vld [vmem:[%s1 + $0xf0] sm:$0xf]
  %v76 = vld [vmem:[%s1 + $0xf4] sm:$0xf]
  %v77 = vld [vmem:[%s1 + $0xf8] sm:$0x3]
  %v78 = vld [vmem:[%s0] sm:$0xff]
  %v79 = vld [vmem:[%s0 + $0x8] sm:$0xff]
  %v80 = vld [vmem:[%s0 + $0x10] sm:$0xff]
  %v81 = vld [vmem:[%s0 + $0x18] sm:$0xff]
  %v82 = vld [vmem:[%s0 + $0x20] sm:$0xff]
  %v83 = vld [vmem:[%s0 + $0x28] sm:$0xff]
  %v84 = vld [vmem:[%s0 + $0x30] sm:$0xff]
  %v85 = vld [vmem:[%s0 + $0x38] sm:$0xff]
  %v94 = vunpack.c.l.b16 %v78
  %v95 = vunpack.c.h.b16 %v78
  %v96 = vunpack.c.l.b16 %v79
  %v97 = vunpack.c.h.b16 %v79
  %v98 = vunpack.c.l.b16 %v80
  %v99 = vunpack.c.h.b16 %v80
  %v100 = vunpack.c.l.b16 %v81
  %v101 = vunpack.c.h.b16 %v81
  %v102 = vunpack.c.l.b16 %v82
  %v103 = vunpack.c.h.b16 %v82
  %v104 = vunpack.c.l.b16 %v83
  %v105 = vunpack.c.h.b16 %v83
  %v106 = vunpack.c.l.b16 %v84
  %v107 = vunpack.c.h.b16 %v84
  %v108 = vunpack.c.l.b16 %v85
  %v109 = vunpack.c.h.b16 %v85
  %v110 = vpack.c.b16 %v98, %v94
  %v111 = vpack.c.b16 %v99, %v95
  %v112 = vpack.c.b16 %v100, %v96
  %v113 = vpack.c.b16 %v101, %v97
  %v114 = vpack.c.b16 %v106, %v102
  %v115 = vpack.c.b16 %v107, %v103
  %v116 = vpack.c.b16 %v108, %v104
  %v117 = vpack.c.b16 %v109, %v105
  %v187 = vunpack.c.l.b16 %v15
  %v188 = vunpack.c.l.b16 %v16
  %v189 = vunpack.c.l.b16 %v17
  %v190 = vunpack.c.l.b16 %v18
  %v191 = vunpack.c.l.b16 %v19
  %v192 = vunpack.c.l.b16 %v20
  %v193 = vunpack.c.l.b16 %v21
  %v194 = vunpack.c.l.b16 %v22
  %v195 = vunpack.c.l.b16 %v23
  %v196 = vunpack.c.l.b16 %v24
  %v197 = vunpack.c.l.b16 %v25
  %v198 = vunpack.c.l.b16 %v26
  %v199 = vunpack.c.l.b16 %v27
  %v200 = vunpack.c.l.b16 %v28
  %v201 = vunpack.c.l.b16 %v29
  %v202 = vunpack.c.l.b16 %v30
  %v203 = vunpack.c.l.b16 %v31
  %v204 = vunpack.c.l.b16 %v32
  %v205 = vunpack.c.l.b16 %v33
  %v206 = vunpack.c.l.b16 %v34
  %v207 = vunpack.c.l.b16 %v35
  %v208 = vunpack.c.l.b16 %v36
  %v209 = vunpack.c.l.b16 %v37
  %v210 = vunpack.c.l.b16 %v38
  %v211 = vunpack.c.l.b16 %v39
  %v212 = vunpack.c.l.b16 %v40
  %v213 = vunpack.c.l.b16 %v41
  %v214 = vunpack.c.l.b16 %v42
  %v215 = vunpack.c.l.b16 %v43
  %v216 = vunpack.c.l.b16 %v44
  %v217 = vunpack.c.l.b16 %v45
  %v218 = vunpack.c.l.b16 %v46
  %v219 = vunpack.c.l.b16 %v47
  %v220 = vunpack.c.l.b16 %v48
  %v221 = vunpack.c.l.b16 %v49
  %v222 = vunpack.c.l.b16 %v50
  %v223 = vunpack.c.l.b16 %v51
  %v224 = vunpack.c.l.b16 %v52
  %v225 = vunpack.c.l.b16 %v53
  %v226 = vunpack.c.l.b16 %v54
  %v227 = vunpack.c.l.b16 %v55
  %v228 = vunpack.c.l.b16 %v56
  %v229 = vunpack.c.l.b16 %v57
  %v230 = vunpack.c.l.b16 %v58
  %v231 = vunpack.c.l.b16 %v59
  %v232 = vunpack.c.l.b16 %v60
  %v233 = vunpack.c.l.b16 %v61
  %v234 = vunpack.c.l.b16 %v62
  %v235 = vunpack.c.l.b16 %v63
  %v236 = vunpack.c.l.b16 %v64
  %v237 = vunpack.c.l.b16 %v65
  %v238 = vunpack.c.l.b16 %v66
  %v239 = vunpack.c.l.b16 %v67
  %v240 = vunpack.c.l.b16 %v68
  %v241 = vunpack.c.l.b16 %v69
  %v242 = vunpack.c.l.b16 %v70
  %v243 = vunpack.c.l.b16 %v71
  %v244 = vunpack.c.l.b16 %v72
  %v245 = vunpack.c.l.b16 %v73
  %v246 = vunpack.c.l.b16 %v74
  %v247 = vunpack.c.l.b16 %v75
  %v248 = vunpack.c.l.b16 %v76
  %v249 = vunpack.c.l.b16 %v77
  %v250 = vpack.c.b16 %v188, %v187
  %v251 = vpack.c.b16 %v190, %v189
  %v252 = vpack.c.b16 %v192, %v191
  %v253 = vpack.c.b16 %v194, %v193
  %v254 = vpack.c.b16 %v196, %v195
  %v255 = vpack.c.b16 %v198, %v197
  %v256 = vpack.c.b16 %v200, %v199
  %v257 = vpack.c.b16 %v202, %v201
  %v258 = vpack.c.b16 %v204, %v203
  %v259 = vpack.c.b16 %v206, %v205
  %v260 = vpack.c.b16 %v208, %v207
  %v261 = vpack.c.b16 %v210, %v209
  %v262 = vpack.c.b16 %v212, %v211
  %v263 = vpack.c.b16 %v214, %v213
  %v264 = vpack.c.b16 %v216, %v215
  %v265 = vpack.c.b16 %v218, %v217
  %v266 = vpack.c.b16 %v220, %v219
  %v267 = vpack.c.b16 %v222, %v221
  %v268 = vpack.c.b16 %v224, %v223
  %v269 = vpack.c.b16 %v226, %v225
  %v270 = vpack.c.b16 %v228, %v227
  %v271 = vpack.c.b16 %v230, %v229
  %v272 = vpack.c.b16 %v232, %v231
  %v273 = vpack.c.b16 %v234, %v233
  %v274 = vpack.c.b16 %v236, %v235
  %v275 = vpack.c.b16 %v238, %v237
  %v276 = vpack.c.b16 %v240, %v239
  %v277 = vpack.c.b16 %v242, %v241
  %v278 = vpack.c.b16 %v244, %v243
  %v279 = vpack.c.b16 %v246, %v245
  %v280 = vpack.c.b16 %v248, %v247
  %v281 = vpack.c.b16 %v249, %v249
  %vm313 = vcmask 949248
  %v315 = vsel %vm313, %v113, 0
  %v318 = vsel %vm313, %v117, 0
  %vm320 = vcmask 1041408
  %v322 = vsel %vm320, %v281, 0
  %324 = vmatprep.subr.bf16.mxu0 0
  %325 = vmatpush1.bf16.msra.mxu0 %v257
  %326 = vmatprep.subr.bf16.mxu0 0
  %327 = vmatpush1.bf16.msra.mxu0 %v256
  %328 = vmatprep.subr.bf16.mxu0 0
  %329 = vmatpush1.bf16.msra.mxu0 %v255
  %330 = vmatprep.subr.bf16.mxu0 0
  %331 = vmatpush1.bf16.msra.mxu0 %v254
  %332 = vmatprep.subr.bf16.mxu0 0
  %333 = vmatpush1.bf16.msra.mxu0 %v253
  %334 = vmatprep.subr.bf16.mxu0 0
  %335 = vmatpush1.bf16.msra.mxu0 %v252
  %336 = vmatprep.subr.bf16.mxu0 0
  %337 = vmatpush1.bf16.msra.mxu0 %v251
  %338 = vmatprep.subr.bf16.mxu0 0
  %339 = vmatpush1.bf16.msra.mxu0 %v250
  %340 = vmatprep.subr.bf16.mxu0 0
  %341 = vmatpush2.bf16.msra.mxu0 %v265
  %342 = vmatprep.subr.bf16.mxu0 0
  %343 = vmatpush2.bf16.msra.mxu0 %v264
  %344 = vmatprep.subr.bf16.mxu0 0
  %345 = vmatpush2.bf16.msra.mxu0 %v263
  %346 = vmatprep.subr.bf16.mxu0 0
  %347 = vmatpush2.bf16.msra.mxu0 %v262
  %348 = vmatprep.subr.bf16.mxu0 0
  %349 = vmatpush2.bf16.msra.mxu0 %v261
  %350 = vmatprep.subr.bf16.mxu0 0
  %351 = vmatpush2.bf16.msra.mxu0 %v260
  %352 = vmatprep.subr.bf16.mxu0 0
  %353 = vmatpush2.bf16.msra.mxu0 %v259
  %354 = vmatprep.subr.bf16.mxu0 0
  %355 = vmatpush2.bf16.msra.mxu0 %v258
  %356 = vmatprep.mubr.bf16.mxu0 %v111
  %357 = vmatmul.mubr.bf16.gmra.mxu0 %v110
  %v358 = vpop.f32.mrf.mxu0
  %v359 = vadd.f32 0.0, %v358
  %v360 = vpop.f32.mrf.mxu0
  %v361 = vpop.f32.mrf.mxu0
  %v362 = vadd.f32 0.0, %v361
  %v363 = vpop.f32.mrf.mxu0
  %364 = vmatprep.mubr.bf16.mxu0 %v115
  %365 = vmatmul.mubr.bf16.gmra.mxu0 %v114
  %v366 = vpop.f32.mrf.mxu0
  %v367 = vadd.f32 0.0, %v366
  %v368 = vpop.f32.mrf.mxu0
  %v369 = vpop.f32.mrf.mxu0
  %v370 = vadd.f32 0.0, %v369
  %v371 = vpop.f32.mrf.mxu0
  %372 = vdwg.mxu0
  %373 = vmatprep.subr.bf16.mxu0 0
  %374 = vmatpush1.bf16.msra.mxu0 %v273
  %375 = vmatprep.subr.bf16.mxu0 0
  %376 = vmatpush1.bf16.msra.mxu0 %v272
  %377 = vmatprep.subr.bf16.mxu0 0
  %378 = vmatpush1.bf16.msra.mxu0 %v271
  %379 = vmatprep.subr.bf16.mxu0 0
  %380 = vmatpush1.bf16.msra.mxu0 %v270
  %381 = vmatprep.subr.bf16.mxu0 0
  %382 = vmatpush1.bf16.msra.mxu0 %v269
  %383 = vmatprep.subr.bf16.mxu0 0
  %384 = vmatpush1.bf16.msra.mxu0 %v268
  %385 = vmatprep.subr.bf16.mxu0 0
  %386 = vmatpush1.bf16.msra.mxu0 %v267
  %387 = vmatprep.subr.bf16.mxu0 0
  %388 = vmatpush1.bf16.msra.mxu0 %v266
  %389 = vmatprep.subr.bf16.mxu0 0
  %390 = vmatpush2.bf16.msra.mxu0 %v322
  %391 = vmatprep.subr.bf16.mxu0 0
  %392 = vmatpush2.bf16.msra.mxu0 %v280
  %393 = vmatprep.subr.bf16.mxu0 0
  %394 = vmatpush2.bf16.msra.mxu0 %v279
  %395 = vmatprep.subr.bf16.mxu0 0
  %396 = vmatpush2.bf16.msra.mxu0 %v278
  %397 = vmatprep.subr.bf16.mxu0 0
  %398 = vmatpush2.bf16.msra.mxu0 %v277
  %399 = vmatprep.subr.bf16.mxu0 0
  %400 = vmatpush2.bf16.msra.mxu0 %v276
  %401 = vmatprep.subr.bf16.mxu0 0
  %402 = vmatpush2.bf16.msra.mxu0 %v275
  %403 = vmatprep.subr.bf16.mxu0 0
  %404 = vmatpush2.bf16.msra.mxu0 %v274
  %405 = vmatprep.mubr.bf16.mxu0 %v315
  %406 = vmatmul.mubr.bf16.gmra.mxu0 %v112
  %v407 = vpop.f32.mrf.mxu0
  %v408 = vadd.f32 %v359, %v407
  %v409 = vpop.f32.mrf.mxu0
  %v410 = vpop.f32.mrf.mxu0
  %v411 = vadd.f32 %v362, %v410
  %v412 = vpop.f32.mrf.mxu0
  %413 = vmatprep.mubr.bf16.mxu0 %v318
  %414 = vmatmul.mubr.bf16.gmra.mxu0 %v116
  %v415 = vpop.f32.mrf.mxu0
  %v416 = vadd.f32 %v367, %v415
  %v417 = vpop.f32.mrf.mxu0
  %v418 = vpop.f32.mrf.mxu0
  %v419 = vadd.f32 %v370, %v418
  %v420 = vpop.f32.mrf.mxu0
  %421 = vdwg.mxu0
  %s422 = scalar_lea.vmem %s0, 64
  %v423 = vld [vmem:[%s422] sm:$0xff]
  %v424 = vld [vmem:[%s422 + $0x8] sm:$0xff]
  %v425 = vld [vmem:[%s422 + $0x10] sm:$0xff]
  %v426 = vld [vmem:[%s422 + $0x18] sm:$0xff]
  %v427 = vld [vmem:[%s422 + $0x20] sm:$0xff]
  %v428 = vld [vmem:[%s422 + $0x28] sm:$0xff]
  %v429 = vld [vmem:[%s422 + $0x30] sm:$0xff]
  %v430 = vld [vmem:[%s422 + $0x38] sm:$0xff]
  %v439 = vunpack.c.l.b16 %v423
  %v440 = vunpack.c.h.b16 %v423
  %v441 = vunpack.c.l.b16 %v424
  %v442 = vunpack.c.h.b16 %v424
  %v443 = vunpack.c.l.b16 %v425
  %v444 = vunpack.c.h.b16 %v425
  %v445 = vunpack.c.l.b16 %v426
  %v446 = vunpack.c.h.b16 %v426
  %v447 = vunpack.c.l.b16 %v427
  %v448 = vunpack.c.h.b16 %v427
  %v449 = vunpack.c.l.b16 %v428
  %v450 = vunpack.c.h.b16 %v428
  %v451 = vunpack.c.l.b16 %v429
  %v452 = vunpack.c.h.b16 %v429
  %v453 = vunpack.c.l.b16 %v430
  %v454 = vunpack.c.h.b16 %v430
  %v455 = vpack.c.b16 %v443, %v439
  %v456 = vpack.c.b16 %v444, %v440
  %v457 = vpack.c.b16 %v445, %v441
  %v458 = vpack.c.b16 %v446, %v442
  %v459 = vpack.c.b16 %v451, %v447
  %v460 = vpack.c.b16 %v452, %v448
  %v461 = vpack.c.b16 %v453, %v449
  %v462 = vpack.c.b16 %v454, %v450
  %v470 = vsel %vm313, %v458, 0
  %v473 = vsel %vm313, %v462, 0
  %475 = vmatprep.subr.bf16.mxu0 0
  %476 = vmatpush1.bf16.msra.mxu0 %v257
  %477 = vmatprep.subr.bf16.mxu0 0
  %478 = vmatpush1.bf16.msra.mxu0 %v256
  %479 = vmatprep.subr.bf16.mxu0 0
  %480 = vmatpush1.bf16.msra.mxu0 %v255
  %481 = vmatprep.subr.bf16.mxu0 0
  %482 = vmatpush1.bf16.msra.mxu0 %v254
  %483 = vmatprep.subr.bf16.mxu0 0
  %484 = vmatpush1.bf16.msra.mxu0 %v253
  %485 = vmatprep.subr.bf16.mxu0 0
  %486 = vmatpush1.bf16.msra.mxu0 %v252
  %487 = vmatprep.subr.bf16.mxu0 0
  %488 = vmatpush1.bf16.msra.mxu0 %v251
  %489 = vmatprep.subr.bf16.mxu0 0
  %490 = vmatpush1.bf16.msra.mxu0 %v250
  %491 = vmatprep.subr.bf16.mxu0 0
  %492 = vmatpush2.bf16.msra.mxu0 %v265
  %493 = vmatprep.subr.bf16.mxu0 0
  %494 = vmatpush2.bf16.msra.mxu0 %v264
  %495 = vmatprep.subr.bf16.mxu0 0
  %496 = vmatpush2.bf16.msra.mxu0 %v263
  %497 = vmatprep.subr.bf16.mxu0 0
  %498 = vmatpush2.bf16.msra.mxu0 %v262
  %499 = vmatprep.subr.bf16.mxu0 0
  %500 = vmatpush2.bf16.msra.mxu0 %v261
  %501 = vmatprep.subr.bf16.mxu0 0
  %502 = vmatpush2.bf16.msra.mxu0 %v260
  %503 = vmatprep.subr.bf16.mxu0 0
  %504 = vmatpush2.bf16.msra.mxu0 %v259
  %505 = vmatprep.subr.bf16.mxu0 0
  %506 = vmatpush2.bf16.msra.mxu0 %v258
  %507 = vmatprep.mubr.bf16.mxu0 %v456
  %508 = vmatmul.mubr.bf16.gmra.mxu0 %v455
  %v509 = vpop.f32.mrf.mxu0
  %v510 = vadd.f32 0.0, %v509
  %v511 = vpop.f32.mrf.mxu0
  %v512 = vpop.f32.mrf.mxu0
  %v513 = vadd.f32 0.0, %v512
  %v514 = vpop.f32.mrf.mxu0
  %515 = vmatprep.mubr.bf16.mxu0 %v460
  %516 = vmatmul.mubr.bf16.gmra.mxu0 %v459
  %v517 = vpop.f32.mrf.mxu0
  %v518 = vadd.f32 0.0, %v517
  %v519 = vpop.f32.mrf.mxu0
  %v520 = vpop.f32.mrf.mxu0
  %v521 = vadd.f32 0.0, %v520
  %v522 = vpop.f32.mrf.mxu0
  %523 = vdwg.mxu0
  %524 = vmatprep.subr.bf16.mxu0 0
  %525 = vmatpush1.bf16.msra.mxu0 %v273
  %526 = vmatprep.subr.bf16.mxu0 0
  %527 = vmatpush1.bf16.msra.mxu0 %v272
  %528 = vmatprep.subr.bf16.mxu0 0
  %529 = vmatpush1.bf16.msra.mxu0 %v271
  %530 = vmatprep.subr.bf16.mxu0 0
  %531 = vmatpush1.bf16.msra.mxu0 %v270
  %532 = vmatprep.subr.bf16.mxu0 0
  %533 = vmatpush1.bf16.msra.mxu0 %v269
  %534 = vmatprep.subr.bf16.mxu0 0
  %535 = vmatpush1.bf16.msra.mxu0 %v268
  %536 = vmatprep.subr.bf16.mxu0 0
  %537 = vmatpush1.bf16.msra.mxu0 %v267
  %538 = vmatprep.subr.bf16.mxu0 0
  %539 = vmatpush1.bf16.msra.mxu0 %v266
  %540 = vmatprep.subr.bf16.mxu0 0
  %541 = vmatpush2.bf16.msra.mxu0 %v322
  %542 = vmatprep.subr.bf16.mxu0 0
  %543 = vmatpush2.bf16.msra.mxu0 %v280
  %544 = vmatprep.subr.bf16.mxu0 0
  %545 = vmatpush2.bf16.msra.mxu0 %v279
  %546 = vmatprep.subr.bf16.mxu0 0
  %547 = vmatpush2.bf16.msra.mxu0 %v278
  %548 = vmatprep.subr.bf16.mxu0 0
  %549 = vmatpush2.bf16.msra.mxu0 %v277
  %550 = vmatprep.subr.bf16.mxu0 0
  %551 = vmatpush2.bf16.msra.mxu0 %v276
  %552 = vmatprep.subr.bf16.mxu0 0
  %553 = vmatpush2.bf16.msra.mxu0 %v275
  %554 = vmatprep.subr.bf16.mxu0 0
  %555 = vmatpush2.bf16.msra.mxu0 %v274
  %556 = vmatprep.mubr.bf16.mxu0 %v470
  %557 = vmatmul.mubr.bf16.gmra.mxu0 %v457
  %v558 = vpop.f32.mrf.mxu0
  %v559 = vadd.f32 %v510, %v558
  %v560 = vpop.f32.mrf.mxu0
  %v561 = vpop.f32.mrf.mxu0
  %v562 = vadd.f32 %v513, %v561
  %v563 = vpop.f32.mrf.mxu0
  %564 = vmatprep.mubr.bf16.mxu0 %v473
  %565 = vmatmul.mubr.bf16.gmra.mxu0 %v461
  %v566 = vpop.f32.mrf.mxu0
  %v567 = vadd.f32 %v518, %v566
  %v568 = vpop.f32.mrf.mxu0
  %v569 = vpop.f32.mrf.mxu0
  %v570 = vadd.f32 %v521, %v569
  %v571 = vpop.f32.mrf.mxu0
  %572 = vdwg.mxu0
  %v573 = vmax.f32 %v408, %v559
  %v574 = vmax.f32 %v411, %v562
  %v575 = vmax.f32 %v416, %v567
  %v576 = vmax.f32 %v419, %v570
  %s577 = scalar_lea.vmem %s0, 128
  %v578 = vld [vmem:[%s577] sm:$0xff]
  %v579 = vld [vmem:[%s577 + $0x8] sm:$0xff]
  %v580 = vld [vmem:[%s577 + $0x10] sm:$0xff]
  %v581 = vld [vmem:[%s577 + $0x18] sm:$0xff]
  %v582 = vld [vmem:[%s577 + $0x20] sm:$0xff]
  %v583 = vld [vmem:[%s577 + $0x28] sm:$0xff]
  %v584 = vld [vmem:[%s577 + $0x30] sm:$0xff]
  %v585 = vld [vmem:[%s577 + $0x38] sm:$0xff]
  %v594 = vunpack.c.l.b16 %v578
  %v595 = vunpack.c.h.b16 %v578
  %v596 = vunpack.c.l.b16 %v579
  %v597 = vunpack.c.h.b16 %v579
  %v598 = vunpack.c.l.b16 %v580
  %v599 = vunpack.c.h.b16 %v580
  %v600 = vunpack.c.l.b16 %v581
  %v601 = vunpack.c.h.b16 %v581
  %v602 = vunpack.c.l.b16 %v582
  %v603 = vunpack.c.h.b16 %v582
  %v604 = vunpack.c.l.b16 %v583
  %v605 = vunpack.c.h.b16 %v583
  %v606 = vunpack.c.l.b16 %v584
  %v607 = vunpack.c.h.b16 %v584
  %v608 = vunpack.c.l.b16 %v585
  %v609 = vunpack.c.h.b16 %v585
  %v610 = vpack.c.b16 %v598, %v594
  %v611 = vpack.c.b16 %v599, %v595
  %v612 = vpack.c.b16 %v600, %v596
  %v613 = vpack.c.b16 %v601, %v597
  %v614 = vpack.c.b16 %v606, %v602
  %v615 = vpack.c.b16 %v607, %v603
  %v616 = vpack.c.b16 %v608, %v604
  %v617 = vpack.c.b16 %v609, %v605
  %v625 = vsel %vm313, %v613, 0
  %v628 = vsel %vm313, %v617, 0
  %630 = vmatprep.subr.bf16.mxu0 0
  %631 = vmatpush1.bf16.msra.mxu0 %v257
  %632 = vmatprep.subr.bf16.mxu0 0
  %633 = vmatpush1.bf16.msra.mxu0 %v256
  %634 = vmatprep.subr.bf16.mxu0 0
  %635 = vmatpush1.bf16.msra.mxu0 %v255
  %636 = vmatprep.subr.bf16.mxu0 0
  %637 = vmatpush1.bf16.msra.mxu0 %v254
  %638 = vmatprep.subr.bf16.mxu0 0
  %639 = vmatpush1.bf16.msra.mxu0 %v253
  %640 = vmatprep.subr.bf16.mxu0 0
  %641 = vmatpush1.bf16.msra.mxu0 %v252
  %642 = vmatprep.subr.bf16.mxu0 0
  %643 = vmatpush1.bf16.msra.mxu0 %v251
  %644 = vmatprep.subr.bf16.mxu0 0
  %645 = vmatpush1.bf16.msra.mxu0 %v250
  %646 = vmatprep.subr.bf16.mxu0 0
  %647 = vmatpush2.bf16.msra.mxu0 %v265
  %648 = vmatprep.subr.bf16.mxu0 0
  %649 = vmatpush2.bf16.msra.mxu0 %v264
  %650 = vmatprep.subr.bf16.mxu0 0
  %651 = vmatpush2.bf16.msra.mxu0 %v263
  %652 = vmatprep.subr.bf16.mxu0 0
  %653 = vmatpush2.bf16.msra.mxu0 %v262
  %654 = vmatprep.subr.bf16.mxu0 0
  %655 = vmatpush2.bf16.msra.mxu0 %v261
  %656 = vmatprep.subr.bf16.mxu0 0
  %657 = vmatpush2.bf16.msra.mxu0 %v260
  %658 = vmatprep.subr.bf16.mxu0 0
  %659 = vmatpush2.bf16.msra.mxu0 %v259
  %660 = vmatprep.subr.bf16.mxu0 0
  %661 = vmatpush2.bf16.msra.mxu0 %v258
  %662 = vmatprep.mubr.bf16.mxu0 %v611
  %663 = vmatmul.mubr.bf16.gmra.mxu0 %v610
  %v664 = vpop.f32.mrf.mxu0
  %v665 = vadd.f32 0.0, %v664
  %v666 = vpop.f32.mrf.mxu0
  %v667 = vpop.f32.mrf.mxu0
  %v668 = vadd.f32 0.0, %v667
  %v669 = vpop.f32.mrf.mxu0
  %670 = vmatprep.mubr.bf16.mxu0 %v615
  %671 = vmatmul.mubr.bf16.gmra.mxu0 %v614
  %v672 = vpop.f32.mrf.mxu0
  %v673 = vadd.f32 0.0, %v672
  %v674 = vpop.f32.mrf.mxu0
  %v675 = vpop.f32.mrf.mxu0
  %v676 = vadd.f32 0.0, %v675
  %v677 = vpop.f32.mrf.mxu0
  %678 = vdwg.mxu0
  %679 = vmatprep.subr.bf16.mxu0 0
  %680 = vmatpush1.bf16.msra.mxu0 %v273
  %681 = vmatprep.subr.bf16.mxu0 0
  %682 = vmatpush1.bf16.msra.mxu0 %v272
  %683 = vmatprep.subr.bf16.mxu0 0
  %684 = vmatpush1.bf16.msra.mxu0 %v271
  %685 = vmatprep.subr.bf16.mxu0 0
  %686 = vmatpush1.bf16.msra.mxu0 %v270
  %687 = vmatprep.subr.bf16.mxu0 0
  %688 = vmatpush1.bf16.msra.mxu0 %v269
  %689 = vmatprep.subr.bf16.mxu0 0
  %690 = vmatpush1.bf16.msra.mxu0 %v268
  %691 = vmatprep.subr.bf16.mxu0 0
  %692 = vmatpush1.bf16.msra.mxu0 %v267
  %693 = vmatprep.subr.bf16.mxu0 0
  %694 = vmatpush1.bf16.msra.mxu0 %v266
  %695 = vmatprep.subr.bf16.mxu0 0
  %696 = vmatpush2.bf16.msra.mxu0 %v322
  %697 = vmatprep.subr.bf16.mxu0 0
  %698 = vmatpush2.bf16.msra.mxu0 %v280
  %699 = vmatprep.subr.bf16.mxu0 0
  %700 = vmatpush2.bf16.msra.mxu0 %v279
  %701 = vmatprep.subr.bf16.mxu0 0
  %702 = vmatpush2.bf16.msra.mxu0 %v278
  %703 = vmatprep.subr.bf16.mxu0 0
  %704 = vmatpush2.bf16.msra.mxu0 %v277
  %705 = vmatprep.subr.bf16.mxu0 0
  %706 = vmatpush2.bf16.msra.mxu0 %v276
  %707 = vmatprep.subr.bf16.mxu0 0
  %708 = vmatpush2.bf16.msra.mxu0 %v275
  %709 = vmatprep.subr.bf16.mxu0 0
  %710 = vmatpush2.bf16.msra.mxu0 %v274
  %711 = vmatprep.mubr.bf16.mxu0 %v625
  %712 = vmatmul.mubr.bf16.gmra.mxu0 %v612
  %v713 = vpop.f32.mrf.mxu0
  %v714 = vadd.f32 %v665, %v713
  %v715 = vpop.f32.mrf.mxu0
  %v716 = vpop.f32.mrf.mxu0
  %v717 = vadd.f32 %v668, %v716
  %v718 = vpop.f32.mrf.mxu0
  %719 = vmatprep.mubr.bf16.mxu0 %v628
  %720 = vmatmul.mubr.bf16.gmra.mxu0 %v616
  %v721 = vpop.f32.mrf.mxu0
  %v722 = vadd.f32 %v673, %v721
  %v723 = vpop.f32.mrf.mxu0
  %v724 = vpop.f32.mrf.mxu0
  %v725 = vadd.f32 %v676, %v724
  %v726 = vpop.f32.mrf.mxu0
  %727 = vdwg.mxu0
  %v728 = vmax.f32 %v573, %v714
  %v729 = vmax.f32 %v574, %v717
  %v730 = vmax.f32 %v575, %v722
  %v731 = vmax.f32 %v576, %v725
  %s732 = scalar_lea.vmem %s0, 192
  %v733 = vld [vmem:[%s732] sm:$0xff]
  %v734 = vld [vmem:[%s732 + $0x8] sm:$0xff]
  %v735 = vld [vmem:[%s732 + $0x10] sm:$0xff]
  %v736 = vld [vmem:[%s732 + $0x18] sm:$0xff]
  %v737 = vld [vmem:[%s732 + $0x20] sm:$0xff]
  %v738 = vld [vmem:[%s732 + $0x28] sm:$0xff]
  %v739 = vld [vmem:[%s732 + $0x30] sm:$0xff]
  %v740 = vld [vmem:[%s732 + $0x38] sm:$0xff]
  %v749 = vunpack.c.l.b16 %v733
  %v750 = vunpack.c.h.b16 %v733
  %v751 = vunpack.c.l.b16 %v734
  %v752 = vunpack.c.h.b16 %v734
  %v753 = vunpack.c.l.b16 %v735
  %v754 = vunpack.c.h.b16 %v735
  %v755 = vunpack.c.l.b16 %v736
  %v756 = vunpack.c.h.b16 %v736
  %v757 = vunpack.c.l.b16 %v737
  %v758 = vunpack.c.h.b16 %v737
  %v759 = vunpack.c.l.b16 %v738
  %v760 = vunpack.c.h.b16 %v738
  %v761 = vunpack.c.l.b16 %v739
  %v762 = vunpack.c.h.b16 %v739
  %v763 = vunpack.c.l.b16 %v740
  %v764 = vunpack.c.h.b16 %v740
  %v765 = vpack.c.b16 %v753, %v749
  %v766 = vpack.c.b16 %v754, %v750
  %v767 = vpack.c.b16 %v755, %v751
  %v768 = vpack.c.b16 %v756, %v752
  %v769 = vpack.c.b16 %v761, %v757
  %v770 = vpack.c.b16 %v762, %v758
  %v771 = vpack.c.b16 %v763, %v759
  %v772 = vpack.c.b16 %v764, %v760
  %v780 = vsel %vm313, %v768, 0
  %v783 = vsel %vm313, %v772, 0
  %785 = vmatprep.subr.bf16.mxu0 0
  %786 = vmatpush1.bf16.msra.mxu0 %v257
  %787 = vmatprep.subr.bf16.mxu0 0
  %788 = vmatpush1.bf16.msra.mxu0 %v256
  %789 = vmatprep.subr.bf16.mxu0 0
  %790 = vmatpush1.bf16.msra.mxu0 %v255
  %791 = vmatprep.subr.bf16.mxu0 0
  %792 = vmatpush1.bf16.msra.mxu0 %v254
  %793 = vmatprep.subr.bf16.mxu0 0
  %794 = vmatpush1.bf16.msra.mxu0 %v253
  %795 = vmatprep.subr.bf16.mxu0 0
  %796 = vmatpush1.bf16.msra.mxu0 %v252
  %797 = vmatprep.subr.bf16.mxu0 0
  %798 = vmatpush1.bf16.msra.mxu0 %v251
  %799 = vmatprep.subr.bf16.mxu0 0
  %800 = vmatpush1.bf16.msra.mxu0 %v250
  %801 = vmatprep.subr.bf16.mxu0 0
  %802 = vmatpush2.bf16.msra.mxu0 %v265
  %803 = vmatprep.subr.bf16.mxu0 0
  %804 = vmatpush2.bf16.msra.mxu0 %v264
  %805 = vmatprep.subr.bf16.mxu0 0
  %806 = vmatpush2.bf16.msra.mxu0 %v263
  %807 = vmatprep.subr.bf16.mxu0 0
  %808 = vmatpush2.bf16.msra.mxu0 %v262
  %809 = vmatprep.subr.bf16.mxu0 0
  %810 = vmatpush2.bf16.msra.mxu0 %v261
  %811 = vmatprep.subr.bf16.mxu0 0
  %812 = vmatpush2.bf16.msra.mxu0 %v260
  %813 = vmatprep.subr.bf16.mxu0 0
  %814 = vmatpush2.bf16.msra.mxu0 %v259
  %815 = vmatprep.subr.bf16.mxu0 0
  %816 = vmatpush2.bf16.msra.mxu0 %v258
  %817 = vmatprep.mubr.bf16.mxu0 %v766
  %818 = vmatmul.mubr.bf16.gmra.mxu0 %v765
  %v819 = vpop.f32.mrf.mxu0
  %v820 = vadd.f32 0.0, %v819
  %v821 = vpop.f32.mrf.mxu0
  %v822 = vpop.f32.mrf.mxu0
  %v823 = vadd.f32 0.0, %v822
  %v824 = vpop.f32.mrf.mxu0
  %825 = vmatprep.mubr.bf16.mxu0 %v770
  %826 = vmatmul.mubr.bf16.gmra.mxu0 %v769
  %v827 = vpop.f32.mrf.mxu0
  %v828 = vadd.f32 0.0, %v827
  %v829 = vpop.f32.mrf.mxu0
  %v830 = vpop.f32.mrf.mxu0
  %v831 = vadd.f32 0.0, %v830
  %v832 = vpop.f32.mrf.mxu0
  %833 = vdwg.mxu0
  %834 = vmatprep.subr.bf16.mxu0 0
  %835 = vmatpush1.bf16.msra.mxu0 %v273
  %836 = vmatprep.subr.bf16.mxu0 0
  %837 = vmatpush1.bf16.msra.mxu0 %v272
  %838 = vmatprep.subr.bf16.mxu0 0
  %839 = vmatpush1.bf16.msra.mxu0 %v271
  %840 = vmatprep.subr.bf16.mxu0 0
  %841 = vmatpush1.bf16.msra.mxu0 %v270
  %842 = vmatprep.subr.bf16.mxu0 0
  %843 = vmatpush1.bf16.msra.mxu0 %v269
  %844 = vmatprep.subr.bf16.mxu0 0
  %845 = vmatpush1.bf16.msra.mxu0 %v268
  %846 = vmatprep.subr.bf16.mxu0 0
  %847 = vmatpush1.bf16.msra.mxu0 %v267
  %848 = vmatprep.subr.bf16.mxu0 0
  %849 = vmatpush1.bf16.msra.mxu0 %v266
  %850 = vmatprep.subr.bf16.mxu0 0
  %851 = vmatpush2.bf16.msra.mxu0 %v322
  %852 = vmatprep.subr.bf16.mxu0 0
  %853 = vmatpush2.bf16.msra.mxu0 %v280
  %854 = vmatprep.subr.bf16.mxu0 0
  %855 = vmatpush2.bf16.msra.mxu0 %v279
  %856 = vmatprep.subr.bf16.mxu0 0
  %857 = vmatpush2.bf16.msra.mxu0 %v278
  %858 = vmatprep.subr.bf16.mxu0 0
  %859 = vmatpush2.bf16.msra.mxu0 %v277
  %860 = vmatprep.subr.bf16.mxu0 0
  %861 = vmatpush2.bf16.msra.mxu0 %v276
  %862 = vmatprep.subr.bf16.mxu0 0
  %863 = vmatpush2.bf16.msra.mxu0 %v275
  %864 = vmatprep.subr.bf16.mxu0 0
  %865 = vmatpush2.bf16.msra.mxu0 %v274
  %866 = vmatprep.mubr.bf16.mxu0 %v780
  %867 = vmatmul.mubr.bf16.gmra.mxu0 %v767
  %v868 = vpop.f32.mrf.mxu0
  %v869 = vadd.f32 %v820, %v868
  %v870 = vpop.f32.mrf.mxu0
  %v871 = vpop.f32.mrf.mxu0
  %v872 = vadd.f32 %v823, %v871
  %v873 = vpop.f32.mrf.mxu0
  %874 = vmatprep.mubr.bf16.mxu0 %v783
  %875 = vmatmul.mubr.bf16.gmra.mxu0 %v771
  %v876 = vpop.f32.mrf.mxu0
  %v877 = vadd.f32 %v828, %v876
  %v878 = vpop.f32.mrf.mxu0
  %v879 = vpop.f32.mrf.mxu0
  %v880 = vadd.f32 %v831, %v879
  %v881 = vpop.f32.mrf.mxu0
  %882 = vdwg.mxu0
  %v883 = vmax.f32 %v728, %v869
  %v884 = vmax.f32 %v729, %v872
  %v885 = vmax.f32 %v730, %v877
  %v886 = vmax.f32 %v731, %v880
  %v887 = vld [vmem:[%s2] sm:$0x1]
  %v889 = vlaneseq
  %v890 = vshrl.u32 %v889, 7
  %v891 = vsub.s32 0, %v890
  %v892 = vrot.slane %v887, %v891
  %v894 = vadd.f32 %v883, %v892
  %v895 = vadd.f32 %v884, %v892
  %v896 = vadd.f32 %v885, %v892
  %v897 = vadd.f32 %v886, %v892
  %v898 = vmax.f32 %v894, 0.0
  %v899 = vmax.f32 %v895, 0.0
  %v900 = vmax.f32 %v896, 0.0
  %v901 = vmax.f32 %v897, 0.0
  %v902 = vpack.c.bf16 %v899, %v898
  %v903 = vpack.c.bf16 %v901, %v900
  %v906 = vunpack.c.l.b16 %v902
  %v907 = vunpack.c.h.b16 %v902
  %v908 = vunpack.c.l.b16 %v903
  %v909 = vunpack.c.h.b16 %v903
  %v910 = vpack.c.b16 %v906, %v906
  %v911 = vpack.c.b16 %v907, %v907
  %v912 = vpack.c.b16 %v908, %v908
  %v913 = vpack.c.b16 %v909, %v909
  %918 = vst [vmem:[%s3] sm:$0xf] %v910
  %919 = vst [vmem:[%s3 + $0x4] sm:$0xf] %v911
  %920 = vst [vmem:[%s3 + $0x8] sm:$0xf] %v912
  %921 = vst [vmem:[%s3 + $0xc] sm:$0xf] %v913
  // Predicated region
  $region14: #{net_forward.4} parent=0 // pred_check
    _
  $region15: #{net_forward.4} parent=0 // pred_check_branch
    %923 = sbr.rel (0) target = $region17
  $region16: #{net_forward.4} parent=0 // pred_region
    _
  $region17: #{net_forward.4} parent=0 // pred_fallthru
    _
  // Predicated region
  $region18: #{net_forward.4} parent=0 // pred_check
    _
  $region19: #{net_forward.4} parent=0 // pred_check_branch
    %925 = sbr.rel (0) target = $region21
  $region20: #{net_forward.4} parent=0 // pred_region
    _
  $region21: #{net_forward.4} parent=0 // pred_fallthru
    _

// kernel: net_forward.5
$region0: #{net_forward.5}
  #allocation0 [shape = 'u32[]', space=smem, size = 0x4, offset = 0x4, fixed_abs, tag = 'smem constant byte address 0x4 - core index']
  #allocation1 [shape = 'u32[144,128]{1,0:T(1,128)}', space=vmem, size = 0x12000, scoped, tag = 'internal scratch']
  %s0 = inlined_call_operand.vmem [shape: bf16[16,800], index: 0, kind: input, shape index: {}]
  %s1 = inlined_call_operand.vmem [shape: bf16[800,512], index: 1, kind: input, shape index: {}]
  %s2 = inlined_call_operand.vmem [shape: f32[1,512], index: 2, kind: input, shape index: {}]
  %s3 = inlined_call_operand.vmem [shape: bf16[512,128], index: 3, kind: input, shape index: {}]
  %s4 = inlined_call_operand.vmem [shape: f32[1,128], index: 4, kind: input, shape index: {}]
  %s5 = inlined_call_operand.vmem [shape: f32[16,128], index: 5, kind: output, shape index: {}]
  %s6 = sld [smem:[#allocation0]]
  $region30: #{net_forward.5} parent=0
    _
  %s8 = ssub.s32 1, %s6
  %s9 = scalar_select 0, %s8, %s6
  // Predicated region
  $region2: #{net_forward.5} parent=0 // pred_check
    _
  $region3: #{net_forward.5} parent=0 // pred_check_branch
    %11 = sbr.rel (0) target = $region5
  $region4: #{net_forward.5} parent=0 // pred_region
    _
  $region5: #{net_forward.5} parent=0 // pred_fallthru
    _
  // Predicated region
  $region6: #{net_forward.5} parent=0 // pred_check
    _
  $region7: #{net_forward.5} parent=0 // pred_check_branch
    %13 = sbr.rel (0) target = $region9
  $region8: #{net_forward.5} parent=0 // pred_region
    _
  $region9: #{net_forward.5} parent=0 // pred_fallthru
    _
  // Predicated region
  $region10: #{net_forward.5} parent=0 // pred_check
    _
  $region11: #{net_forward.5} parent=0 // pred_check_branch
    %15 = sbr.rel (0) target = $region13
  $region12: #{net_forward.5} parent=0 // pred_region
    _
  $region13: #{net_forward.5} parent=0 // pred_fallthru
    _
  // Predicated region
  $region14: #{net_forward.5} parent=0 // pred_check
    _
  $region15: #{net_forward.5} parent=0 // pred_check_branch
    %17 = sbr.rel (0) target = $region17
  $region16: #{net_forward.5} parent=0 // pred_region
    _
  $region17: #{net_forward.5} parent=0 // pred_fallthru
    _
  // Predicated region
  $region18: #{net_forward.5} parent=0 // pred_check
    _
  $region19: #{net_forward.5} parent=0 // pred_check_branch
    %19 = sbr.rel (0) target = $region21
  $region20: #{net_forward.5} parent=0 // pred_region
    _
  $region21: #{net_forward.5} parent=0 // pred_fallthru
    _
  %v21 = vld [vmem:[%s0] sm:$0xff]
  %v22 = vld [vmem:[%s0 + $0x8] sm:$0xff]
  %v23 = vld [vmem:[%s0 + $0x10] sm:$0xff]
  %v24 = vld [vmem:[%s0 + $0x18] sm:$0xf]
  %v25 = vld [vmem:[%s0 + $0x1c] sm:$0xff]
  %v26 = vld [vmem:[%s0 + $0x24] sm:$0xff]
  %v27 = vld [vmem:[%s0 + $0x2c] sm:$0xff]
  %v28 = vld [vmem:[%s0 + $0x34] sm:$0xf]
  %v29 = vld [vmem:[%s1] sm:$0xff]
  %v30 = vld [vmem:[%s1 + $0x8] sm:$0xff]
  %v31 = vld [vmem:[%s1 + $0x10] sm:$0xff]
  %v32 = vld [vmem:[%s1 + $0x18] sm:$0xff]
  %v33 = vld [vmem:[%s1 + $0x20] sm:$0xff]
  %v34 = vld [vmem:[%s1 + $0x28] sm:$0xff]
  %v35 = vld [vmem:[%s1 + $0x30] sm:$0xff]
  %v36 = vld [vmem:[%s1 + $0x38] sm:$0xff]
  %v37 = vld [vmem:[%s1 + $0x40] sm:$0xff]
  %v38 = vld [vmem:[%s1 + $0x48] sm:$0xff]
  %v39 = vld [vmem:[%s1 + $0x50] sm:$0xff]
  %v40 = vld [vmem:[%s1 + $0x58] sm:$0xff]
  %v41 = vld [vmem:[%s1 + $0x60] sm:$0xff]
  %v42 = vld [vmem:[%s1 + $0x68] sm:$0xff]
  %v43 = vld [vmem:[%s1 + $0x70] sm:$0xff]
  %v44 = vld [vmem:[%s1 + $0x78] sm:$0xff]
  %v45 = vld [vmem:[%s1 + $0x80] sm:$0xff]
  %v46 = vld [vmem:[%s1 + $0x88] sm:$0xff]
  %v47 = vld [vmem:[%s1 + $0x90] sm:$0xff]
  %v48 = vld [vmem:[%s1 + $0x98] sm:$0xff]
  %v49 = vld [vmem:[%s1 + $0xa0] sm:$0xff]
  %v50 = vld [vmem:[%s1 + $0xa8] sm:$0xff]
  %v51 = vld [vmem:[%s1 + $0xb0] sm:$0xff]
  %v52 = vld [vmem:[%s1 + $0xb8] sm:$0xff]
  %v53 = vld [vmem:[%s1 + $0xc0] sm:$0xff]
  %v54 = vld [vmem:[%s1 + $0xc8] sm:$0xff]
  %v55 = vld [vmem:[%s1 + $0xd0] sm:$0xff]
  %v56 = vld [vmem:[%s1 + $0xd8] sm:$0xff]
  %v57 = vld [vmem:[%s1 + $0xe0] sm:$0xff]
  %v58 = vld [vmem:[%s1 + $0xe8] sm:$0xff]
  %v59 = vld [vmem:[%s1 + $0xf0] sm:$0xff]
  %v60 = vld [vmem:[%s1 + $0xf8] sm:$0xff]
  %v61 = vld [vmem:[%s1 + $0x100] sm:$0xff]
  %v62 = vld [vmem:[%s1 + $0x108] sm:$0xff]
  %v63 = vld [vmem:[%s1 + $0x110] sm:$0xff]
  %v64 = vld [vmem:[%s1 + $0x118] sm:$0xff]
  %v65 = vld [vmem:[%s1 + $0x120] sm:$0xff]
  %v66 = vld [vmem:[%s1 + $0x128] sm:$0xff]
  %v67 = vld [vmem:[%s1 + $0x130] sm:$0xff]
  %v68 = vld [vmem:[%s1 + $0x138] sm:$0xff]
  %v69 = vld [vmem:[%s1 + $0x140] sm:$0xff]
  %v70 = vld [vmem:[%s1 + $0x148] sm:$0xff]
  %v71 = vld [vmem:[%s1 + $0x150] sm:$0xff]
  %v72 = vld [vmem:[%s1 + $0x158] sm:$0xff]
  %v73 = vld [vmem:[%s1 + $0x160] sm:$0xff]
  %v74 = vld [vmem:[%s1 + $0x168] sm:$0xff]
  %v75 = vld [vmem:[%s1 + $0x170] sm:$0xff]
  %v76 = vld [vmem:[%s1 + $0x178] sm:$0xff]
  %v77 = vld [vmem:[%s1 + $0x180] sm:$0xff]
  %v78 = vld [vmem:[%s1 + $0x188] sm:$0xff]
  %v79 = vld [vmem:[%s1 + $0x190] sm:$0xff]
  %v80 = vld [vmem:[%s1 + $0x198] sm:$0xff]
  %v81 = vld [vmem:[%s1 + $0x1a0] sm:$0xff]
  %v82 = vld [vmem:[%s1 + $0x1a8] sm:$0xff]
  %v83 = vld [vmem:[%s1 + $0x1b0] sm:$0xff]
  %v84 = vld [vmem:[%s1 + $0x1b8] sm:$0xff]
  %v85 = vld [vmem:[%s1 + $0x1c0] sm:$0xff]
  %v86 = vld [vmem:[%s1 + $0x1c8] sm:$0xff]
  %v87 = vld [vmem:[%s1 + $0x1d0] sm:$0xff]
  %v88 = vld [vmem:[%s1 + $0x1d8] sm:$0xff]
  %v89 = vld [vmem:[%s1 + $0x1e0] sm:$0xff]
  %v90 = vld [vmem:[%s1 + $0x1e8] sm:$0xff]
  %v91 = vld [vmem:[%s1 + $0x1f0] sm:$0xff]
  %v92 = vld [vmem:[%s1 + $0x1f8] sm:$0xff]
  %v93 = vld [vmem:[%s1 + $0x200] sm:$0xff]
  %v94 = vld [vmem:[%s1 + $0x208] sm:$0xff]
  %v95 = vld [vmem:[%s1 + $0x210] sm:$0xff]
  %v96 = vld [vmem:[%s1 + $0x218] sm:$0xff]
  %v97 = vld [vmem:[%s1 + $0x220] sm:$0xff]
  %v98 = vld [vmem:[%s1 + $0x228] sm:$0xff]
  %v99 = vld [vmem:[%s1 + $0x230] sm:$0xff]
  %v100 = vld [vmem:[%s1 + $0x238] sm:$0xff]
  %v101 = vld [vmem:[%s1 + $0x240] sm:$0xff]
  %v102 = vld [vmem:[%s1 + $0x248] sm:$0xff]
  %v103 = vld [vmem:[%s1 + $0x250] sm:$0xff]
  %v104 = vld [vmem:[%s1 + $0x258] sm:$0xff]
  %v105 = vld [vmem:[%s1 + $0x260] sm:$0xff]
  %v106 = vld [vmem:[%s1 + $0x268] sm:$0xff]
  %v107 = vld [vmem:[%s1 + $0x270] sm:$0xff]
  %v108 = vld [vmem:[%s1 + $0x278] sm:$0xff]
  %v109 = vld [vmem:[%s1 + $0x280] sm:$0xff]
  %v110 = vld [vmem:[%s1 + $0x288] sm:$0xff]
  %v111 = vld [vmem:[%s1 + $0x290] sm:$0xff]
  %v112 = vld [vmem:[%s1 + $0x298] sm:$0xff]
  %v113 = vld [vmem:[%s1 + $0x2a0] sm:$0xff]
  %v114 = vld [vmem:[%s1 + $0x2a8] sm:$0xff]
  %v115 = vld [vmem:[%s1 + $0x2b0] sm:$0xff]
  %v116 = vld [vmem:[%s1 + $0x2b8] sm:$0xff]
  %v117 = vld [vmem:[%s1 + $0x2c0] sm:$0xff]
  %v118 = vld [vmem:[%s1 + $0x2c8] sm:$0xff]
  %v119 = vld [vmem:[%s1 + $0x2d0] sm:$0xff]
  %v120 = vld [vmem:[%s1 + $0x2d8] sm:$0xff]
  %v121 = vld [vmem:[%s1 + $0x2e0] sm:$0xff]
  %v122 = vld [vmem:[%s1 + $0x2e8] sm:$0xff]
  %v123 = vld [vmem:[%s1 + $0x2f0] sm:$0xff]
  %v124 = vld [vmem:[%s1 + $0x2f8] sm:$0xff]
  %v125 = vld [vmem:[%s1 + $0x300] sm:$0xff]
  %v126 = vld [vmem:[%s1 + $0x308] sm:$0xff]
  %v127 = vld [vmem:[%s1 + $0x310] sm:$0xff]
  %v128 = vld [vmem:[%s1 + $0x318] sm:$0xff]
  %v129 = vld [vmem:[%s1 + $0x320] sm:$0xff]
  %v130 = vld [vmem:[%s1 + $0x328] sm:$0xff]
  %v131 = vld [vmem:[%s1 + $0x330] sm:$0xff]
  %v132 = vld [vmem:[%s1 + $0x338] sm:$0xff]
  %v133 = vld [vmem:[%s1 + $0x340] sm:$0xff]
  %v134 = vld [vmem:[%s1 + $0x348] sm:$0xff]
  %v135 = vld [vmem:[%s1 + $0x350] sm:$0xff]
  %v136 = vld [vmem:[%s1 + $0x358] sm:$0xff]
  %v137 = vld [vmem:[%s1 + $0x360] sm:$0xff]
  %v138 = vld [vmem:[%s1 + $0x368] sm:$0xff]
  %v139 = vld [vmem:[%s1 + $0x370] sm:$0xff]
  %v140 = vld [vmem:[%s1 + $0x378] sm:$0xff]
  %v141 = vld [vmem:[%s1 + $0x380] sm:$0xff]
  %v142 = vld [vmem:[%s1 + $0x388] sm:$0xff]
  %v143 = vld [vmem:[%s1 + $0x390] sm:$0xff]
  %v144 = vld [vmem:[%s1 + $0x398] sm:$0xff]
  %v145 = vld [vmem:[%s1 + $0x3a0] sm:$0xff]
  %v146 = vld [vmem:[%s1 + $0x3a8] sm:$0xff]
  %v147 = vld [vmem:[%s1 + $0x3b0] sm:$0xff]
  %v148 = vld [vmem:[%s1 + $0x3b8] sm:$0xff]
  %v149 = vld [vmem:[%s1 + $0x3c0] sm:$0xff]
  %v150 = vld [vmem:[%s1 + $0x3c8] sm:$0xff]
  %v151 = vld [vmem:[%s1 + $0x3d0] sm:$0xff]
  %v152 = vld [vmem:[%s1 + $0x3d8] sm:$0xff]
  %v153 = vld [vmem:[%s1 + $0x3e0] sm:$0xff]
  %v154 = vld [vmem:[%s1 + $0x3e8] sm:$0xff]
  %v155 = vld [vmem:[%s1 + $0x3f0] sm:$0xff]
  %v156 = vld [vmem:[%s1 + $0x3f8] sm:$0xff]
  %v157 = vld [vmem:[%s1 + $0x400] sm:$0xff]
  %v158 = vld [vmem:[%s1 + $0x408] sm:$0xff]
  %v159 = vld [vmem:[%s1 + $0x410] sm:$0xff]
  %v160 = vld [vmem:[%s1 + $0x418] sm:$0xff]
  %v161 = vld [vmem:[%s1 + $0x420] sm:$0xff]
  %v162 = vld [vmem:[%s1 + $0x428] sm:$0xff]
  %v163 = vld [vmem:[%s1 + $0x430] sm:$0xff]
  %v164 = vld [vmem:[%s1 + $0x438] sm:$0xff]
  %v165 = vld [vmem:[%s1 + $0x440] sm:$0xff]
  %v166 = vld [vmem:[%s1 + $0x448] sm:$0xff]
  %v167 = vld [vmem:[%s1 + $0x450] sm:$0xff]
  %v168 = vld [vmem:[%s1 + $0x458] sm:$0xff]
  %v169 = vld [vmem:[%s1 + $0x460] sm:$0xff]
  %v170 = vld [vmem:[%s1 + $0x468] sm:$0xff]
  %v171 = vld [vmem:[%s1 + $0x470] sm:$0xff]
  %v172 = vld [vmem:[%s1 + $0x478] sm:$0xff]
  %v173 = vld [vmem:[%s1 + $0x480] sm:$0xff]
  %v174 = vld [vmem:[%s1 + $0x488] sm:$0xff]
  %v175 = vld [vmem:[%s1 + $0x490] sm:$0xff]
  %v176 = vld [vmem:[%s1 + $0x498] sm:$0xff]
  %v177 = vld [vmem:[%s1 + $0x4a0] sm:$0xff]
  %v178 = vld [vmem:[%s1 + $0x4a8] sm:$0xff]
  %v179 = vld [vmem:[%s1 + $0x4b0] sm:$0xff]
  %v180 = vld [vmem:[%s1 + $0x4b8] sm:$0xff]
  %v181 = vld [vmem:[%s1 + $0x4c0] sm:$0xff]
  %v182 = vld [vmem:[%s1 + $0x4c8] sm:$0xff]
  %v183 = vld [vmem:[%s1 + $0x4d0] sm:$0xff]
  %v184 = vld [vmem:[%s1 + $0x4d8] sm:$0xff]
  %v185 = vld [vmem:[%s1 + $0x4e0] sm:$0xff]
  %v186 = vld [vmem:[%s1 + $0x4e8] sm:$0xff]
  %v187 = vld [vmem:[%s1 + $0x4f0] sm:$0xff]
  %v188 = vld [vmem:[%s1 + $0x4f8] sm:$0xff]
  %v189 = vld [vmem:[%s1 + $0x500] sm:$0xff]
  %v190 = vld [vmem:[%s1 + $0x508] sm:$0xff]
  %v191 = vld [vmem:[%s1 + $0x510] sm:$0xff]
  %v192 = vld [vmem:[%s1 + $0x518] sm:$0xff]
  %v193 = vld [vmem:[%s1 + $0x520] sm:$0xff]
  %v194 = vld [vmem:[%s1 + $0x528] sm:$0xff]
  %v195 = vld [vmem:[%s1 + $0x530] sm:$0xff]
  %v196 = vld [vmem:[%s1 + $0x538] sm:$0xff]
  %v197 = vld [vmem:[%s1 + $0x540] sm:$0xff]
  %v198 = vld [vmem:[%s1 + $0x548] sm:$0xff]
  %v199 = vld [vmem:[%s1 + $0x550] sm:$0xff]
  %v200 = vld [vmem:[%s1 + $0x558] sm:$0xff]
  %v201 = vld [vmem:[%s1 + $0x560] sm:$0xff]
  %v202 = vld [vmem:[%s1 + $0x568] sm:$0xff]
  %v203 = vld [vmem:[%s1 + $0x570] sm:$0xff]
  %v204 = vld [vmem:[%s1 + $0x578] sm:$0xff]
  %v205 = vld [vmem:[%s1 + $0x580] sm:$0xff]
  %v206 = vld [vmem:[%s1 + $0x588] sm:$0xff]
  %v207 = vld [vmem:[%s1 + $0x590] sm:$0xff]
  %v208 = vld [vmem:[%s1 + $0x598] sm:$0xff]
  %v209 = vld [vmem:[%s1 + $0x5a0] sm:$0xff]
  %v210 = vld [vmem:[%s1 + $0x5a8] sm:$0xff]
  %v211 = vld [vmem:[%s1 + $0x5b0] sm:$0xff]
  %v212 = vld [vmem:[%s1 + $0x5b8] sm:$0xff]
  %v213 = vld [vmem:[%s1 + $0x5c0] sm:$0xff]
  %v214 = vld [vmem:[%s1 + $0x5c8] sm:$0xff]
  %v215 = vld [vmem:[%s1 + $0x5d0] sm:$0xff]
  %v216 = vld [vmem:[%s1 + $0x5d8] sm:$0xff]
  %v217 = vld [vmem:[%s1 + $0x5e0] sm:$0xff]
  %v218 = vld [vmem:[%s1 + $0x5e8] sm:$0xff]
  %v219 = vld [vmem:[%s1 + $0x5f0] sm:$0xff]
  %v220 = vld [vmem:[%s1 + $0x5f8] sm:$0xff]
  %v221 = vld [vmem:[%s1 + $0x600] sm:$0xff]
  %v222 = vld [vmem:[%s1 + $0x608] sm:$0xff]
  %v223 = vld [vmem:[%s1 + $0x610] sm:$0xff]
  %v224 = vld [vmem:[%s1 + $0x618] sm:$0xff]
  %v225 = vld [vmem:[%s1 + $0x620] sm:$0xff]
  %v226 = vld [vmem:[%s1 + $0x628] sm:$0xff]
  %v227 = vld [vmem:[%s1 + $0x630] sm:$0xff]
  %v228 = vld [vmem:[%s1 + $0x638] sm:$0xff]
  %v229 = vld [vmem:[%s2] sm:$0xf]
  %v231 = vlaneseq
  %v232 = vshrl.u32 %v231, 7
  %v233 = vsub.s32 0, %v232
  %v234 = vrot.slane %v229, %v233
  %v235 = vlaneseq
  %v236 = vshrl.u32 %v235, 7
  %v237 = vsub.s32 1, %v236
  %v238 = vrot.slane %v229, %v237
  %v239 = vlaneseq
  %v240 = vshrl.u32 %v239, 7
  %v241 = vsub.s32 2, %v240
  %v242 = vrot.slane %v229, %v241
  %v243 = vlaneseq
  %v244 = vshrl.u32 %v243, 7
  %v245 = vsub.s32 3, %v244
  %v246 = vrot.slane %v229, %v245
  %v259 = vunpack.c.l.b16 %v21
  %v260 = vunpack.c.h.b16 %v21
  %v261 = vunpack.c.l.b16 %v22
  %v262 = vunpack.c.h.b16 %v22
  %v263 = vunpack.c.l.b16 %v23
  %v264 = vunpack.c.h.b16 %v23
  %v265 = vunpack.c.l.b16 %v24
  %v266 = vunpack.c.l.b16 %v25
  %v267 = vunpack.c.h.b16 %v25
  %v268 = vunpack.c.l.b16 %v26
  %v269 = vunpack.c.h.b16 %v26
  %v270 = vunpack.c.l.b16 %v27
  %v271 = vunpack.c.h.b16 %v27
  %v272 = vunpack.c.l.b16 %v28
  %v273 = vpack.c.b16 %v266, %v259
  %v274 = vpack.c.b16 %v267, %v260
  %v275 = vpack.c.b16 %v268, %v261
  %v276 = vpack.c.b16 %v269, %v262
  %v277 = vpack.c.b16 %v270, %v263
  %v278 = vpack.c.b16 %v271, %v264
  %v279 = vpack.c.b16 %v272, %v265
  %v486 = vunpack.c.l.b16 %v29
  %v487 = vunpack.c.h.b16 %v29
  %v488 = vunpack.c.l.b16 %v30
  %v489 = vunpack.c.h.b16 %v30
  %v490 = vunpack.c.l.b16 %v31
  %v491 = vunpack.c.h.b16 %v31
  %v492 = vunpack.c.l.b16 %v32
  %v493 = vunpack.c.h.b16 %v32
  %v494 = vunpack.c.l.b16 %v33
  %v495 = vunpack.c.h.b16 %v33
  %v496 = vunpack.c.l.b16 %v34
  %v497 = vunpack.c.h.b16 %v34
  %v498 = vunpack.c.l.b16 %v35
  %v499 = vunpack.c.h.b16 %v35
  %v500 = vunpack.c.l.b16 %v36
  %v501 = vunpack.c.h.b16 %v36
  %v502 = vunpack.c.l.b16 %v37
  %v503 = vunpack.c.h.b16 %v37
  %v504 = vunpack.c.l.b16 %v38
  %v505 = vunpack.c.h.b16 %v38
  %v506 = vunpack.c.l.b16 %v39
  %v507 = vunpack.c.h.b16 %v39
  %v508 = vunpack.c.l.b16 %v40
  %v509 = vunpack.c.h.b16 %v40
  %v510 = vunpack.c.l.b16 %v41
  %v511 = vunpack.c.h.b16 %v41
  %v512 = vunpack.c.l.b16 %v42
  %v513 = vunpack.c.h.b16 %v42
  %v514 = vunpack.c.l.b16 %v43
  %v515 = vunpack.c.h.b16 %v43
  %v516 = vunpack.c.l.b16 %v44
  %v517 = vunpack.c.h.b16 %v44
  %v518 = vunpack.c.l.b16 %v45
  %v519 = vunpack.c.h.b16 %v45
  %v520 = vunpack.c.l.b16 %v46
  %v521 = vunpack.c.h.b16 %v46
  %v522 = vunpack.c.l.b16 %v47
  %v523 = vunpack.c.h.b16 %v47
  %v524 = vunpack.c.l.b16 %v48
  %v525 = vunpack.c.h.b16 %v48
  %v526 = vunpack.c.l.b16 %v49
  %v527 = vunpack.c.h.b16 %v49
  %v528 = vunpack.c.l.b16 %v50
  %v529 = vunpack.c.h.b16 %v50
  %v530 = vunpack.c.l.b16 %v51
  %v531 = vunpack.c.h.b16 %v51
  %v532 = vunpack.c.l.b16 %v52
  %v533 = vunpack.c.h.b16 %v52
  %v534 = vunpack.c.l.b16 %v53
  %v535 = vunpack.c.h.b16 %v53
  %v536 = vunpack.c.l.b16 %v54
  %v537 = vunpack.c.h.b16 %v54
  %v538 = vunpack.c.l.b16 %v55
  %v539 = vunpack.c.h.b16 %v55
  %v540 = vunpack.c.l.b16 %v56
  %v541 = vunpack.c.h.b16 %v56
  %v542 = vunpack.c.l.b16 %v57
  %v543 = vunpack.c.h.b16 %v57
  %v544 = vunpack.c.l.b16 %v58
  %v545 = vunpack.c.h.b16 %v58
  %v546 = vunpack.c.l.b16 %v59
  %v547 = vunpack.c.h.b16 %v59
  %v548 = vunpack.c.l.b16 %v60
  %v549 = vunpack.c.h.b16 %v60
  %v550 = vunpack.c.l.b16 %v61
  %v551 = vunpack.c.h.b16 %v61
  %v552 = vunpack.c.l.b16 %v62
  %v553 = vunpack.c.h.b16 %v62
  %v554 = vunpack.c.l.b16 %v63
  %v555 = vunpack.c.h.b16 %v63
  %v556 = vunpack.c.l.b16 %v64
  %v557 = vunpack.c.h.b16 %v64
  %v558 = vunpack.c.l.b16 %v65
  %v559 = vunpack.c.h.b16 %v65
  %v560 = vunpack.c.l.b16 %v66
  %v561 = vunpack.c.h.b16 %v66
  %v562 = vunpack.c.l.b16 %v67
  %v563 = vunpack.c.h.b16 %v67
  %v564 = vunpack.c.l.b16 %v68
  %v565 = vunpack.c.h.b16 %v68
  %v566 = vunpack.c.l.b16 %v69
  %v567 = vunpack.c.h.b16 %v69
  %v568 = vunpack.c.l.b16 %v70
  %v569 = vunpack.c.h.b16 %v70
  %v570 = vunpack.c.l.b16 %v71
  %v571 = vunpack.c.h.b16 %v71
  %v572 = vunpack.c.l.b16 %v72
  %v573 = vunpack.c.h.b16 %v72
  %v574 = vunpack.c.l.b16 %v73
  %v575 = vunpack.c.h.b16 %v73
  %v576 = vunpack.c.l.b16 %v74
  %v577 = vunpack.c.h.b16 %v74
  %v578 = vunpack.c.l.b16 %v75
  %v579 = vunpack.c.h.b16 %v75
  %v580 = vunpack.c.l.b16 %v76
  %v581 = vunpack.c.h.b16 %v76
  %v582 = vunpack.c.l.b16 %v77
  %v583 = vunpack.c.h.b16 %v77
  %v584 = vunpack.c.l.b16 %v78
  %v585 = vunpack.c.h.b16 %v78
  %v586 = vunpack.c.l.b16 %v79
  %v587 = vunpack.c.h.b16 %v79
  %v588 = vunpack.c.l.b16 %v80
  %v589 = vunpack.c.h.b16 %v80
  %v590 = vunpack.c.l.b16 %v81
  %v591 = vunpack.c.h.b16 %v81
  %v592 = vunpack.c.l.b16 %v82
  %v593 = vunpack.c.h.b16 %v82
  %v594 = vunpack.c.l.b16 %v83
  %v595 = vunpack.c.h.b16 %v83
  %v596 = vunpack.c.l.b16 %v84
  %v597 = vunpack.c.h.b16 %v84
  %v598 = vunpack.c.l.b16 %v85
  %v599 = vunpack.c.h.b16 %v85
  %v600 = vunpack.c.l.b16 %v86
  %v601 = vunpack.c.h.b16 %v86
  %v602 = vunpack.c.l.b16 %v87
  %v603 = vunpack.c.h.b16 %v87
  %v604 = vunpack.c.l.b16 %v88
  %v605 = vunpack.c.h.b16 %v88
  %v606 = vunpack.c.l.b16 %v89
  %v607 = vunpack.c.h.b16 %v89
  %v608 = vunpack.c.l.b16 %v90
  %v609 = vunpack.c.h.b16 %v90
  %v610 = vunpack.c.l.b16 %v91
  %v611 = vunpack.c.h.b16 %v91
  %v612 = vunpack.c.l.b16 %v92
  %v613 = vunpack.c.h.b16 %v92
  %v614 = vunpack.c.l.b16 %v93
  %v615 = vunpack.c.h.b16 %v93
  %v616 = vunpack.c.l.b16 %v94
  %v617 = vunpack.c.h.b16 %v94
  %v618 = vunpack.c.l.b16 %v95
  %v619 = vunpack.c.h.b16 %v95
  %v620 = vunpack.c.l.b16 %v96
  %v621 = vunpack.c.h.b16 %v96
  %v622 = vunpack.c.l.b16 %v97
  %v623 = vunpack.c.h.b16 %v97
  %v624 = vunpack.c.l.b16 %v98
  %v625 = vunpack.c.h.b16 %v98
  %v626 = vunpack.c.l.b16 %v99
  %v627 = vunpack.c.h.b16 %v99
  %v628 = vunpack.c.l.b16 %v100
  %v629 = vunpack.c.h.b16 %v100
  %v630 = vunpack.c.l.b16 %v101
  %v631 = vunpack.c.h.b16 %v101
  %v632 = vunpack.c.l.b16 %v102
  %v633 = vunpack.c.h.b16 %v102
  %v634 = vunpack.c.l.b16 %v103
  %v635 = vunpack.c.h.b16 %v103
  %v636 = vunpack.c.l.b16 %v104
  %v637 = vunpack.c.h.b16 %v104
  %v638 = vunpack.c.l.b16 %v105
  %v639 = vunpack.c.h.b16 %v105
  %v640 = vunpack.c.l.b16 %v106
  %v641 = vunpack.c.h.b16 %v106
  %v642 = vunpack.c.l.b16 %v107
  %v643 = vunpack.c.h.b16 %v107
  %v644 = vunpack.c.l.b16 %v108
  %v645 = vunpack.c.h.b16 %v108
  %v646 = vunpack.c.l.b16 %v109
  %v647 = vunpack.c.h.b16 %v109
  %v648 = vunpack.c.l.b16 %v110
  %v649 = vunpack.c.h.b16 %v110
  %v650 = vunpack.c.l.b16 %v111
  %v651 = vunpack.c.h.b16 %v111
  %v652 = vunpack.c.l.b16 %v112
  %v653 = vunpack.c.h.b16 %v112
  %v654 = vunpack.c.l.b16 %v113
  %v655 = vunpack.c.h.b16 %v113
  %v656 = vunpack.c.l.b16 %v114
  %v657 = vunpack.c.h.b16 %v114
  %v658 = vunpack.c.l.b16 %v115
  %v659 = vunpack.c.h.b16 %v115
  %v660 = vunpack.c.l.b16 %v116
  %v661 = vunpack.c.h.b16 %v116
  %v662 = vunpack.c.l.b16 %v117
  %v663 = vunpack.c.h.b16 %v117
  %v664 = vunpack.c.l.b16 %v118
  %v665 = vunpack.c.h.b16 %v118
  %v666 = vunpack.c.l.b16 %v119
  %v667 = vunpack.c.h.b16 %v119
  %v668 = vunpack.c.l.b16 %v120
  %v669 = vunpack.c.h.b16 %v120
  %v670 = vunpack.c.l.b16 %v121
  %v671 = vunpack.c.h.b16 %v121
  %v672 = vunpack.c.l.b16 %v122
  %v673 = vunpack.c.h.b16 %v122
  %v674 = vunpack.c.l.b16 %v123
  %v675 = vunpack.c.h.b16 %v123
  %v676 = vunpack.c.l.b16 %v124
  %v677 = vunpack.c.h.b16 %v124
  %v678 = vunpack.c.l.b16 %v125
  %v679 = vunpack.c.h.b16 %v125
  %v680 = vunpack.c.l.b16 %v126
  %v681 = vunpack.c.h.b16 %v126
  %v682 = vunpack.c.l.b16 %v127
  %v683 = vunpack.c.h.b16 %v127
  %v684 = vunpack.c.l.b16 %v128
  %v685 = vunpack.c.h.b16 %v128
  %v686 = vunpack.c.l.b16 %v129
  %v687 = vunpack.c.h.b16 %v129
  %v688 = vunpack.c.l.b16 %v130
  %v689 = vunpack.c.h.b16 %v130
  %v690 = vunpack.c.l.b16 %v131
  %v691 = vunpack.c.h.b16 %v131
  %v692 = vunpack.c.l.b16 %v132
  %v693 = vunpack.c.h.b16 %v132
  %v694 = vunpack.c.l.b16 %v133
  %v695 = vunpack.c.h.b16 %v133
  %v696 = vunpack.c.l.b16 %v134
  %v697 = vunpack.c.h.b16 %v134
  %v698 = vunpack.c.l.b16 %v135
  %v699 = vunpack.c.h.b16 %v135
  %v700 = vunpack.c.l.b16 %v136
  %v701 = vunpack.c.h.b16 %v136
  %v702 = vunpack.c.l.b16 %v137
  %v703 = vunpack.c.h.b16 %v137
  %v704 = vunpack.c.l.b16 %v138
  %v705 = vunpack.c.h.b16 %v138
  %v706 = vunpack.c.l.b16 %v139
  %v707 = vunpack.c.h.b16 %v139
  %v708 = vunpack.c.l.b16 %v140
  %v709 = vunpack.c.h.b16 %v140
  %v710 = vunpack.c.l.b16 %v141
  %v711 = vunpack.c.h.b16 %v141
  %v712 = vunpack.c.l.b16 %v142
  %v713 = vunpack.c.h.b16 %v142
  %v714 = vunpack.c.l.b16 %v143
  %v715 = vunpack.c.h.b16 %v143
  %v716 = vunpack.c.l.b16 %v144
  %v717 = vunpack.c.h.b16 %v144
  %v718 = vunpack.c.l.b16 %v145
  %v719 = vunpack.c.h.b16 %v145
  %v720 = vunpack.c.l.b16 %v146
  %v721 = vunpack.c.h.b16 %v146
  %v722 = vunpack.c.l.b16 %v147
  %v723 = vunpack.c.h.b16 %v147
  %v724 = vunpack.c.l.b16 %v148
  %v725 = vunpack.c.h.b16 %v148
  %v726 = vunpack.c.l.b16 %v149
  %v727 = vunpack.c.h.b16 %v149
  %v728 = vunpack.c.l.b16 %v150
  %v729 = vunpack.c.h.b16 %v150
  %v730 = vunpack.c.l.b16 %v151
  %v731 = vunpack.c.h.b16 %v151
  %v732 = vunpack.c.l.b16 %v152
  %v733 = vunpack.c.h.b16 %v152
  %v734 = vunpack.c.l.b16 %v153
  %v735 = vunpack.c.h.b16 %v153
  %v736 = vunpack.c.l.b16 %v154
  %v737 = vunpack.c.h.b16 %v154
  %v738 = vunpack.c.l.b16 %v155
  %v739 = vunpack.c.h.b16 %v155
  %v740 = vunpack.c.l.b16 %v156
  %v741 = vunpack.c.h.b16 %v156
  %v742 = vunpack.c.l.b16 %v157
  %v743 = vunpack.c.h.b16 %v157
  %v744 = vunpack.c.l.b16 %v158
  %v745 = vunpack.c.h.b16 %v158
  %v746 = vunpack.c.l.b16 %v159
  %v747 = vunpack.c.h.b16 %v159
  %v748 = vunpack.c.l.b16 %v160
  %v749 = vunpack.c.h.b16 %v160
  %v750 = vunpack.c.l.b16 %v161
  %v751 = vunpack.c.h.b16 %v161
  %v752 = vunpack.c.l.b16 %v162
  %v753 = vunpack.c.h.b16 %v162
  %v754 = vunpack.c.l.b16 %v163
  %v755 = vunpack.c.h.b16 %v163
  %v756 = vunpack.c.l.b16 %v164
  %v757 = vunpack.c.h.b16 %v164
  %v758 = vunpack.c.l.b16 %v165
  %v759 = vunpack.c.h.b16 %v165
  %v760 = vunpack.c.l.b16 %v166
  %v761 = vunpack.c.h.b16 %v166
  %v762 = vunpack.c.l.b16 %v167
  %v763 = vunpack.c.h.b16 %v167
  %v764 = vunpack.c.l.b16 %v168
  %v765 = vunpack.c.h.b16 %v168
  %v766 = vunpack.c.l.b16 %v169
  %v767 = vunpack.c.h.b16 %v169
  %v768 = vunpack.c.l.b16 %v170
  %v769 = vunpack.c.h.b16 %v170
  %v770 = vunpack.c.l.b16 %v171
  %v771 = vunpack.c.h.b16 %v171
  %v772 = vunpack.c.l.b16 %v172
  %v773 = vunpack.c.h.b16 %v172
  %v774 = vunpack.c.l.b16 %v173
  %v775 = vunpack.c.h.b16 %v173
  %v776 = vunpack.c.l.b16 %v174
  %v777 = vunpack.c.h.b16 %v174
  %v778 = vunpack.c.l.b16 %v175
  %v779 = vunpack.c.h.b16 %v175
  %v780 = vunpack.c.l.b16 %v176
  %v781 = vunpack.c.h.b16 %v176
  %v782 = vunpack.c.l.b16 %v177
  %v783 = vunpack.c.h.b16 %v177
  %v784 = vunpack.c.l.b16 %v178
  %v785 = vunpack.c.h.b16 %v178
  %v786 = vunpack.c.l.b16 %v179
  %v787 = vunpack.c.h.b16 %v179
  %v788 = vunpack.c.l.b16 %v180
  %v789 = vunpack.c.h.b16 %v180
  %v790 = vunpack.c.l.b16 %v181
  %v791 = vunpack.c.h.b16 %v181
  %v792 = vunpack.c.l.b16 %v182
  %v793 = vunpack.c.h.b16 %v182
  %v794 = vunpack.c.l.b16 %v183
  %v795 = vunpack.c.h.b16 %v183
  %v796 = vunpack.c.l.b16 %v184
  %v797 = vunpack.c.h.b16 %v184
  %v798 = vunpack.c.l.b16 %v185
  %v799 = vunpack.c.h.b16 %v185
  %v800 = vunpack.c.l.b16 %v186
  %v801 = vunpack.c.h.b16 %v186
  %v802 = vunpack.c.l.b16 %v187
  %v803 = vunpack.c.h.b16 %v187
  %v804 = vunpack.c.l.b16 %v188
  %v805 = vunpack.c.h.b16 %v188
  %v806 = vunpack.c.l.b16 %v189
  %v807 = vunpack.c.h.b16 %v189
  %v808 = vunpack.c.l.b16 %v190
  %v809 = vunpack.c.h.b16 %v190
  %v810 = vunpack.c.l.b16 %v191
  %v811 = vunpack.c.h.b16 %v191
  %v812 = vunpack.c.l.b16 %v192
  %v813 = vunpack.c.h.b16 %v192
  %v814 = vunpack.c.l.b16 %v193
  %v815 = vunpack.c.h.b16 %v193
  %v816 = vunpack.c.l.b16 %v194
  %v817 = vunpack.c.h.b16 %v194
  %v818 = vunpack.c.l.b16 %v195
  %v819 = vunpack.c.h.b16 %v195
  %v820 = vunpack.c.l.b16 %v196
  %v821 = vunpack.c.h.b16 %v196
  %v822 = vunpack.c.l.b16 %v197
  %v823 = vunpack.c.h.b16 %v197
  %v824 = vunpack.c.l.b16 %v198
  %v825 = vunpack.c.h.b16 %v198
  %v826 = vunpack.c.l.b16 %v199
  %v827 = vunpack.c.h.b16 %v199
  %v828 = vunpack.c.l.b16 %v200
  %v829 = vunpack.c.h.b16 %v200
  %v830 = vunpack.c.l.b16 %v201
  %v831 = vunpack.c.h.b16 %v201
  %v832 = vunpack.c.l.b16 %v202
  %v833 = vunpack.c.h.b16 %v202
  %v834 = vunpack.c.l.b16 %v203
  %v835 = vunpack.c.h.b16 %v203
  %v836 = vunpack.c.l.b16 %v204
  %v837 = vunpack.c.h.b16 %v204
  %v838 = vunpack.c.l.b16 %v205
  %v839 = vunpack.c.h.b16 %v205
  %v840 = vunpack.c.l.b16 %v206
  %v841 = vunpack.c.h.b16 %v206
  %v842 = vunpack.c.l.b16 %v207
  %v843 = vunpack.c.h.b16 %v207
  %v844 = vunpack.c.l.b16 %v208
  %v845 = vunpack.c.h.b16 %v208
  %v846 = vunpack.c.l.b16 %v209
  %v847 = vunpack.c.h.b16 %v209
  %v848 = vunpack.c.l.b16 %v210
  %v849 = vunpack.c.h.b16 %v210
  %v850 = vunpack.c.l.b16 %v211
  %v851 = vunpack.c.h.b16 %v211
  %v852 = vunpack.c.l.b16 %v212
  %v853 = vunpack.c.h.b16 %v212
  %v854 = vunpack.c.l.b16 %v213
  %v855 = vunpack.c.h.b16 %v213
  %v856 = vunpack.c.l.b16 %v214
  %v857 = vunpack.c.h.b16 %v214
  %v858 = vunpack.c.l.b16 %v215
  %v859 = vunpack.c.h.b16 %v215
  %v860 = vunpack.c.l.b16 %v216
  %v861 = vunpack.c.h.b16 %v216
  %v862 = vunpack.c.l.b16 %v217
  %v863 = vunpack.c.h.b16 %v217
  %v864 = vunpack.c.l.b16 %v218
  %v865 = vunpack.c.h.b16 %v218
  %v866 = vunpack.c.l.b16 %v219
  %v867 = vunpack.c.h.b16 %v219
  %v868 = vunpack.c.l.b16 %v220
  %v869 = vunpack.c.h.b16 %v220
  %v870 = vunpack.c.l.b16 %v221
  %v871 = vunpack.c.h.b16 %v221
  %v872 = vunpack.c.l.b16 %v222
  %v873 = vunpack.c.h.b16 %v222
  %v874 = vunpack.c.l.b16 %v223
  %v875 = vunpack.c.h.b16 %v223
  %v876 = vunpack.c.l.b16 %v224
  %v877 = vunpack.c.h.b16 %v224
  %v878 = vunpack.c.l.b16 %v225
  %v879 = vunpack.c.h.b16 %v225
  %v880 = vunpack.c.l.b16 %v226
  %v881 = vunpack.c.h.b16 %v226
  %v882 = vunpack.c.l.b16 %v227
  %v883 = vunpack.c.h.b16 %v227
  %v884 = vunpack.c.l.b16 %v228
  %v885 = vunpack.c.h.b16 %v228
  %v886 = vpack.c.b16 %v490, %v486
  %v887 = vpack.c.b16 %v491, %v487
  %v888 = vpack.c.b16 %v492, %v488
  %v889 = vpack.c.b16 %v493, %v489
  %v890 = vpack.c.b16 %v498, %v494
  %v891 = vpack.c.b16 %v499, %v495
  %v892 = vpack.c.b16 %v500, %v496
  %v893 = vpack.c.b16 %v501, %v497
  %v894 = vpack.c.b16 %v506, %v502
  %v895 = vpack.c.b16 %v507, %v503
  %v896 = vpack.c.b16 %v508, %v504
  %v897 = vpack.c.b16 %v509, %v505
  %v898 = vpack.c.b16 %v514, %v510
  %v899 = vpack.c.b16 %v515, %v511
  %v900 = vpack.c.b16 %v516, %v512
  %v901 = vpack.c.b16 %v517, %v513
  %v902 = vpack.c.b16 %v522, %v518
  %v903 = vpack.c.b16 %v523, %v519
  %v904 = vpack.c.b16 %v524, %v520
  %v905 = vpack.c.b16 %v525, %v521
  %v906 = vpack.c.b16 %v530, %v526
  %v907 = vpack.c.b16 %v531, %v527
  %v908 = vpack.c.b16 %v532, %v528
  %v909 = vpack.c.b16 %v533, %v529
  %v910 = vpack.c.b16 %v538, %v534
  %v911 = vpack.c.b16 %v539, %v535
  %v912 = vpack.c.b16 %v540, %v536
  %v913 = vpack.c.b16 %v541, %v537
  %v914 = vpack.c.b16 %v546, %v542
  %v915 = vpack.c.b16 %v547, %v543
  %v916 = vpack.c.b16 %v548, %v544
  %v917 = vpack.c.b16 %v549, %v545
  %v918 = vpack.c.b16 %v554, %v550
  %v919 = vpack.c.b16 %v555, %v551
  %v920 = vpack.c.b16 %v556, %v552
  %v921 = vpack.c.b16 %v557, %v553
  %v922 = vpack.c.b16 %v562, %v558
  %v923 = vpack.c.b16 %v563, %v559
  %v924 = vpack.c.b16 %v564, %v560
  %v925 = vpack.c.b16 %v565, %v561
  %v926 = vpack.c.b16 %v570, %v566
  %v927 = vpack.c.b16 %v571, %v567
  %v928 = vpack.c.b16 %v572, %v568
  %v929 = vpack.c.b16 %v573, %v569
  %v930 = vpack.c.b16 %v578, %v574
  %v931 = vpack.c.b16 %v579, %v575
  %v932 = vpack.c.b16 %v580, %v576
  %v933 = vpack.c.b16 %v581, %v577
  %v934 = vpack.c.b16 %v586, %v582
  %v935 = vpack.c.b16 %v587, %v583
  %v936 = vpack.c.b16 %v588, %v584
  %v937 = vpack.c.b16 %v589, %v585
  %v938 = vpack.c.b16 %v594, %v590
  %v939 = vpack.c.b16 %v595, %v591
  %v940 = vpack.c.b16 %v596, %v592
  %v941 = vpack.c.b16 %v597, %v593
  %v942 = vpack.c.b16 %v602, %v598
  %v943 = vpack.c.b16 %v603, %v599
  %v944 = vpack.c.b16 %v604, %v600
  %v945 = vpack.c.b16 %v605, %v601
  %v946 = vpack.c.b16 %v610, %v606
  %v947 = vpack.c.b16 %v611, %v607
  %v948 = vpack.c.b16 %v612, %v608
  %v949 = vpack.c.b16 %v613, %v609
  %v950 = vpack.c.b16 %v618, %v614
  %v951 = vpack.c.b16 %v619, %v615
  %v952 = vpack.c.b16 %v620, %v616
  %v953 = vpack.c.b16 %v621, %v617
  %v954 = vpack.c.b16 %v626, %v622
  %v955 = vpack.c.b16 %v627, %v623
  %v956 = vpack.c.b16 %v628, %v624
  %v957 = vpack.c.b16 %v629, %v625
  %v958 = vpack.c.b16 %v634, %v630
  %v959 = vpack.c.b16 %v635, %v631
  %v960 = vpack.c.b16 %v636, %v632
  %v961 = vpack.c.b16 %v637, %v633
  %v962 = vpack.c.b16 %v642, %v638
  %v963 = vpack.c.b16 %v643, %v639
  %v964 = vpack.c.b16 %v644, %v640
  %v965 = vpack.c.b16 %v645, %v641
  %v966 = vpack.c.b16 %v650, %v646
  %v967 = vpack.c.b16 %v651, %v647
  %v968 = vpack.c.b16 %v652, %v648
  %v969 = vpack.c.b16 %v653, %v649
  %v970 = vpack.c.b16 %v658, %v654
  %v971 = vpack.c.b16 %v659, %v655
  %v972 = vpack.c.b16 %v660, %v656
  %v973 = vpack.c.b16 %v661, %v657
  %v974 = vpack.c.b16 %v666, %v662
  %v975 = vpack.c.b16 %v667, %v663
  %v976 = vpack.c.b16 %v668, %v664
  %v977 = vpack.c.b16 %v669, %v665
  %v978 = vpack.c.b16 %v674, %v670
  %v979 = vpack.c.b16 %v675, %v671
  %v980 = vpack.c.b16 %v676, %v672
  %v981 = vpack.c.b16 %v677, %v673
  %v982 = vpack.c.b16 %v682, %v678
  %v983 = vpack.c.b16 %v683, %v679
  %v984 = vpack.c.b16 %v684, %v680
  %v985 = vpack.c.b16 %v685, %v681
  %v986 = vpack.c.b16 %v690, %v686
  %v987 = vpack.c.b16 %v691, %v687
  %v988 = vpack.c.b16 %v692, %v688
  %v989 = vpack.c.b16 %v693, %v689
  %v990 = vpack.c.b16 %v698, %v694
  %v991 = vpack.c.b16 %v699, %v695
  %v992 = vpack.c.b16 %v700, %v696
  %v993 = vpack.c.b16 %v701, %v697
  %v994 = vpack.c.b16 %v706, %v702
  %v995 = vpack.c.b16 %v707, %v703
  %v996 = vpack.c.b16 %v708, %v704
  %v997 = vpack.c.b16 %v709, %v705
  %v998 = vpack.c.b16 %v714, %v710
  %v999 = vpack.c.b16 %v715, %v711
  %v1000 = vpack.c.b16 %v716, %v712
  %v1001 = vpack.c.b16 %v717, %v713
  %v1002 = vpack.c.b16 %v722, %v718
  %v1003 = vpack.c.b16 %v723, %v719
  %v1004 = vpack.c.b16 %v724, %v720
  %v1005 = vpack.c.b16 %v725, %v721
  %v1006 = vpack.c.b16 %v730, %v726
  %v1007 = vpack.c.b16 %v731, %v727
  %v1008 = vpack.c.b16 %v732, %v728
  %v1009 = vpack.c.b16 %v733, %v729
  %v1010 = vpack.c.b16 %v738, %v734
  %v1011 = vpack.c.b16 %v739, %v735
  %v1012 = vpack.c.b16 %v740, %v736
  %v1013 = vpack.c.b16 %v741, %v737
  %v1014 = vpack.c.b16 %v746, %v742
  %v1015 = vpack.c.b16 %v747, %v743
  %v1016 = vpack.c.b16 %v748, %v744
  %v1017 = vpack.c.b16 %v749, %v745
  %v1018 = vpack.c.b16 %v754, %v750
  %v1019 = vpack.c.b16 %v755, %v751
  %v1020 = vpack.c.b16 %v756, %v752
  %v1021 = vpack.c.b16 %v757, %v753
  %v1022 = vpack.c.b16 %v762, %v758
  %v1023 = vpack.c.b16 %v763, %v759
  %v1024 = vpack.c.b16 %v764, %v760
  %v1025 = vpack.c.b16 %v765, %v761
  %v1026 = vpack.c.b16 %v770, %v766
  %v1027 = vpack.c.b16 %v771, %v767
  %v1028 = vpack.c.b16 %v772, %v768
  %v1029 = vpack.c.b16 %v773, %v769
  %v1030 = vpack.c.b16 %v778, %v774
  %v1031 = vpack.c.b16 %v779, %v775
  %v1032 = vpack.c.b16 %v780, %v776
  %v1033 = vpack.c.b16 %v781, %v777
  %v1034 = vpack.c.b16 %v786, %v782
  %v1035 = vpack.c.b16 %v787, %v783
  %v1036 = vpack.c.b16 %v788, %v784
  %v1037 = vpack.c.b16 %v789, %v785
  %v1038 = vpack.c.b16 %v794, %v790
  %v1039 = vpack.c.b16 %v795, %v791
  %v1040 = vpack.c.b16 %v796, %v792
  %v1041 = vpack.c.b16 %v797, %v793
  %v1042 = vpack.c.b16 %v802, %v798
  %v1043 = vpack.c.b16 %v803, %v799
  %v1044 = vpack.c.b16 %v804, %v800
  %v1045 = vpack.c.b16 %v805, %v801
  %v1046 = vpack.c.b16 %v810, %v806
  %v1047 = vpack.c.b16 %v811, %v807
  %v1048 = vpack.c.b16 %v812, %v808
  %v1049 = vpack.c.b16 %v813, %v809
  %v1050 = vpack.c.b16 %v818, %v814
  %v1051 = vpack.c.b16 %v819, %v815
  %v1052 = vpack.c.b16 %v820, %v816
  %v1053 = vpack.c.b16 %v821, %v817
  %v1054 = vpack.c.b16 %v826, %v822
  %v1055 = vpack.c.b16 %v827, %v823
  %v1056 = vpack.c.b16 %v828, %v824
  %v1057 = vpack.c.b16 %v829, %v825
  %v1058 = vpack.c.b16 %v834, %v830
  %v1059 = vpack.c.b16 %v835, %v831
  %v1060 = vpack.c.b16 %v836, %v832
  %v1061 = vpack.c.b16 %v837, %v833
  %v1062 = vpack.c.b16 %v842, %v838
  %v1063 = vpack.c.b16 %v843, %v839
  %v1064 = vpack.c.b16 %v844, %v840
  %v1065 = vpack.c.b16 %v845, %v841
  %v1066 = vpack.c.b16 %v850, %v846
  %v1067 = vpack.c.b16 %v851, %v847
  %v1068 = vpack.c.b16 %v852, %v848
  %v1069 = vpack.c.b16 %v853, %v849
  %v1070 = vpack.c.b16 %v858, %v854
  %v1071 = vpack.c.b16 %v859, %v855
  %v1072 = vpack.c.b16 %v860, %v856
  %v1073 = vpack.c.b16 %v861, %v857
  %v1074 = vpack.c.b16 %v866, %v862
  %v1075 = vpack.c.b16 %v867, %v863
  %v1076 = vpack.c.b16 %v868, %v864
  %v1077 = vpack.c.b16 %v869, %v865
  %v1078 = vpack.c.b16 %v874, %v870
  %v1079 = vpack.c.b16 %v875, %v871
  %v1080 = vpack.c.b16 %v876, %v872
  %v1081 = vpack.c.b16 %v877, %v873
  %v1082 = vpack.c.b16 %v882, %v878
  %v1083 = vpack.c.b16 %v883, %v879
  %v1084 = vpack.c.b16 %v884, %v880
  %v1085 = vpack.c.b16 %v885, %v881
  %vm1286 = vcmask 261120
  %v1288 = vsel %vm1286, %v279, 0
  %1290 = vmatprep.subr.bf16.mxu0 %v915
  %1291 = vmatpush1.bf16.msra.mxu0 %v914
  %1292 = vmatprep.subr.bf16.mxu0 %v911
  %1293 = vmatpush1.bf16.msra.mxu0 %v910
  %1294 = vmatprep.subr.bf16.mxu0 %v907
  %1295 = vmatpush1.bf16.msra.mxu0 %v906
  %1296 = vmatprep.subr.bf16.mxu0 %v903
  %1297 = vmatpush1.bf16.msra.mxu0 %v902
  %1298 = vmatprep.subr.bf16.mxu0 %v899
  %1299 = vmatpush1.bf16.msra.mxu0 %v898
  %1300 = vmatprep.subr.bf16.mxu0 %v895
  %1301 = vmatpush1.bf16.msra.mxu0 %v894
  %1302 = vmatprep.subr.bf16.mxu0 %v891
  %1303 = vmatpush1.bf16.msra.mxu0 %v890
  %1304 = vmatprep.subr.bf16.mxu0 %v887
  %1305 = vmatpush1.bf16.msra.mxu0 %v886
  %1306 = vmatprep.subr.bf16.mxu0 %v947
  %1307 = vmatpush2.bf16.msra.mxu0 %v946
  %1308 = vmatprep.subr.bf16.mxu0 %v943
  %1309 = vmatpush2.bf16.msra.mxu0 %v942
  %1310 = vmatprep.subr.bf16.mxu0 %v939
  %1311 = vmatpush2.bf16.msra.mxu0 %v938
  %1312 = vmatprep.subr.bf16.mxu0 %v935
  %1313 = vmatpush2.bf16.msra.mxu0 %v934
  %1314 = vmatprep.subr.bf16.mxu0 %v931
  %1315 = vmatpush2.bf16.msra.mxu0 %v930
  %1316 = vmatprep.subr.bf16.mxu0 %v927
  %1317 = vmatpush2.bf16.msra.mxu0 %v926
  %1318 = vmatprep.subr.bf16.mxu0 %v923
  %1319 = vmatpush2.bf16.msra.mxu0 %v922
  %1320 = vmatprep.subr.bf16.mxu0 %v919
  %1321 = vmatpush2.bf16.msra.mxu0 %v918
  %1322 = vmatprep.mubr.bf16.mxu0 %v274
  %1323 = vmatmul.mubr.bf16.gmra.mxu0 %v273
  %v1324 = vpop.f32.mrf.mxu0
  %v1325 = vadd.f32 %v234, %v1324
  %v1326 = vpop.f32.mrf.mxu0
  %v1327 = vadd.f32 %v238, %v1326
  %v1328 = vpop.f32.mrf.mxu0
  %v1329 = vadd.f32 %v234, %v1328
  %v1330 = vpop.f32.mrf.mxu0
  %v1331 = vadd.f32 %v238, %v1330
  %1332 = vdwg.mxu0
  %1333 = vmatprep.subr.bf16.mxu0 %v979
  %1334 = vmatpush1.bf16.msra.mxu0 %v978
  %1335 = vmatprep.subr.bf16.mxu0 %v975
  %1336 = vmatpush1.bf16.msra.mxu0 %v974
  %1337 = vmatprep.subr.bf16.mxu0 %v971
  %1338 = vmatpush1.bf16.msra.mxu0 %v970
  %1339 = vmatprep.subr.bf16.mxu0 %v967
  %1340 = vmatpush1.bf16.msra.mxu0 %v966
  %1341 = vmatprep.subr.bf16.mxu0 %v963
  %1342 = vmatpush1.bf16.msra.mxu0 %v962
  %1343 = vmatprep.subr.bf16.mxu0 %v959
  %1344 = vmatpush1.bf16.msra.mxu0 %v958
  %1345 = vmatprep.subr.bf16.mxu0 %v955
  %1346 = vmatpush1.bf16.msra.mxu0 %v954
  %1347 = vmatprep.subr.bf16.mxu0 %v951
  %1348 = vmatpush1.bf16.msra.mxu0 %v950
  %1349 = vmatprep.subr.bf16.mxu0 %v1011
  %1350 = vmatpush2.bf16.msra.mxu0 %v1010
  %1351 = vmatprep.subr.bf16.mxu0 %v1007
  %1352 = vmatpush2.bf16.msra.mxu0 %v1006
  %1353 = vmatprep.subr.bf16.mxu0 %v1003
  %1354 = vmatpush2.bf16.msra.mxu0 %v1002
  %1355 = vmatprep.subr.bf16.mxu0 %v999
  %1356 = vmatpush2.bf16.msra.mxu0 %v998
  %1357 = vmatprep.subr.bf16.mxu0 %v995
  %1358 = vmatpush2.bf16.msra.mxu0 %v994
  %1359 = vmatprep.subr.bf16.mxu0 %v991
  %1360 = vmatpush2.bf16.msra.mxu0 %v990
  %1361 = vmatprep.subr.bf16.mxu0 %v987
  %1362 = vmatpush2.bf16.msra.mxu0 %v986
  %1363 = vmatprep.subr.bf16.mxu0 %v983
  %1364 = vmatpush2.bf16.msra.mxu0 %v982
  %1365 = vmatprep.mubr.bf16.mxu0 %v276
  %1366 = vmatmul.mubr.bf16.gmra.mxu0 %v275
  %v1367 = vpop.f32.mrf.mxu0
  %v1368 = vadd.f32 %v1325, %v1367
  %v1369 = vpop.f32.mrf.mxu0
  %v1370 = vadd.f32 %v1327, %v1369
  %v1371 = vpop.f32.mrf.mxu0
  %v1372 = vadd.f32 %v1329, %v1371
  %v1373 = vpop.f32.mrf.mxu0
  %v1374 = vadd.f32 %v1331, %v1373
  %1375 = vdwg.mxu0
  %1376 = vmatprep.subr.bf16.mxu0 %v1043
  %1377 = vmatpush1.bf16.msra.mxu0 %v1042
  %1378 = vmatprep.subr.bf16.mxu0 %v1039
  %1379 = vmatpush1.bf16.msra.mxu0 %v1038
  %1380 = vmatprep.subr.bf16.mxu0 %v1035
  %1381 = vmatpush1.bf16.msra.mxu0 %v1034
  %1382 = vmatprep.subr.bf16.mxu0 %v1031
  %1383 = vmatpush1.bf16.msra.mxu0 %v1030
  %1384 = vmatprep.subr.bf16.mxu0 %v1027
  %1385 = vmatpush1.bf16.msra.mxu0 %v1026
  %1386 = vmatprep.subr.bf16.mxu0 %v1023
  %1387 = vmatpush1.bf16.msra.mxu0 %v1022
  %1388 = vmatprep.subr.bf16.mxu0 %v1019
  %1389 = vmatpush1.bf16.msra.mxu0 %v1018
  %1390 = vmatprep.subr.bf16.mxu0 %v1015
  %1391 = vmatpush1.bf16.msra.mxu0 %v1014
  %1392 = vmatprep.subr.bf16.mxu0 %v1075
  %1393 = vmatpush2.bf16.msra.mxu0 %v1074
  %1394 = vmatprep.subr.bf16.mxu0 %v1071
  %1395 = vmatpush2.bf16.msra.mxu0 %v1070
  %1396 = vmatprep.subr.bf16.mxu0 %v1067
  %1397 = vmatpush2.bf16.msra.mxu0 %v1066
  %1398 = vmatprep.subr.bf16.mxu0 %v1063
  %1399 = vmatpush2.bf16.msra.mxu0 %v1062
  %1400 = vmatprep.subr.bf16.mxu0 %v1059
  %1401 = vmatpush2.bf16.msra.mxu0 %v1058
  %1402 = vmatprep.subr.bf16.mxu0 %v1055
  %1403 = vmatpush2.bf16.msra.mxu0 %v1054
  %1404 = vmatprep.subr.bf16.mxu0 %v1051
  %1405 = vmatpush2.bf16.msra.mxu0 %v1050
  %1406 = vmatprep.subr.bf16.mxu0 %v1047
  %1407 = vmatpush2.bf16.msra.mxu0 %v1046
  %1408 = vmatprep.mubr.bf16.mxu0 %v278
  %1409 = vmatmul.mubr.bf16.gmra.mxu0 %v277
  %v1410 = vpop.f32.mrf.mxu0
  %v1411 = vadd.f32 %v1368, %v1410
  %v1412 = vpop.f32.mrf.mxu0
  %v1413 = vadd.f32 %v1370, %v1412
  %v1414 = vpop.f32.mrf.mxu0
  %v1415 = vadd.f32 %v1372, %v1414
  %v1416 = vpop.f32.mrf.mxu0
  %v1417 = vadd.f32 %v1374, %v1416
  %1418 = vdwg.mxu0
  %1419 = vmatprep.subr.bf16.mxu0 0
  %1420 = vmatpush1.bf16.msra.mxu0 0
  %1421 = vmatprep.subr.bf16.mxu0 0
  %1422 = vmatpush1.bf16.msra.mxu0 0
  %1423 = vmatprep.subr.bf16.mxu0 0
  %1424 = vmatpush1.bf16.msra.mxu0 0
  %1425 = vmatprep.subr.bf16.mxu0 0
  %1426 = vmatpush1.bf16.msra.mxu0 0
  %1427 = vmatprep.subr.bf16.mxu0 0
  %1428 = vmatpush1.bf16.msra.mxu0 0
  %1429 = vmatprep.subr.bf16.mxu0 0
  %1430 = vmatpush1.bf16.msra.mxu0 0
  %1431 = vmatprep.subr.bf16.mxu0 %v1083
  %1432 = vmatpush1.bf16.msra.mxu0 %v1082
  %1433 = vmatprep.subr.bf16.mxu0 %v1079
  %1434 = vmatpush1.bf16.msra.mxu0 %v1078
  %1435 = vmatprep.subr.bf16.mxu0 0
  %1436 = vmatpush2.bf16.msra.mxu0 0
  %1437 = vmatprep.subr.bf16.mxu0 0
  %1438 = vmatpush2.bf16.msra.mxu0 0
  %1439 = vmatprep.subr.bf16.mxu0 0
  %1440 = vmatpush2.bf16.msra.mxu0 0
  %1441 = vmatprep.subr.bf16.mxu0 0
  %1442 = vmatpush2.bf16.msra.mxu0 0
  %1443 = vmatprep.subr.bf16.mxu0 0
  %1444 = vmatpush2.bf16.msra.mxu0 0
  %1445 = vmatprep.subr.bf16.mxu0 0
  %1446 = vmatpush2.bf16.msra.mxu0 0
  %1447 = vmatprep.subr.bf16.mxu0 0
  %1448 = vmatpush2.bf16.msra.mxu0 0
  %1449 = vmatprep.subr.bf16.mxu0 0
  %1450 = vmatpush2.bf16.msra.mxu0 0
  %1451 = vmatprep.mubr.bf16.mxu0 0
  %1452 = vmatmul.mubr.bf16.gmra.mxu0 %v1288
  %v1453 = vpop.f32.mrf.mxu0
  %v1454 = vadd.f32 %v1411, %v1453
  %v1455 = vpop.f32.mrf.mxu0
  %v1456 = vadd.f32 %v1413, %v1455
  %v1457 = vpop.f32.mrf.mxu0
  %v1458 = vadd.f32 %v1415, %v1457
  %v1459 = vpop.f32.mrf.mxu0
  %v1460 = vadd.f32 %v1417, %v1459
  %1461 = vdwg.mxu0
  %1462 = vmatprep.subr.bf16.mxu0 %v917
  %1463 = vmatpush1.bf16.msra.mxu0 %v916
  %1464 = vmatprep.subr.bf16.mxu0 %v913
  %1465 = vmatpush1.bf16.msra.mxu0 %v912
  %1466 = vmatprep.subr.bf16.mxu0 %v909
  %1467 = vmatpush1.bf16.msra.mxu0 %v908
  %1468 = vmatprep.subr.bf16.mxu0 %v905
  %1469 = vmatpush1.bf16.msra.mxu0 %v904
  %1470 = vmatprep.subr.bf16.mxu0 %v901
  %1471 = vmatpush1.bf16.msra.mxu0 %v900
  %1472 = vmatprep.subr.bf16.mxu0 %v897
  %1473 = vmatpush1.bf16.msra.mxu0 %v896
  %1474 = vmatprep.subr.bf16.mxu0 %v893
  %1475 = vmatpush1.bf16.msra.mxu0 %v892
  %1476 = vmatprep.subr.bf16.mxu0 %v889
  %1477 = vmatpush1.bf16.msra.mxu0 %v888
  %1478 = vmatprep.subr.bf16.mxu0 %v949
  %1479 = vmatpush2.bf16.msra.mxu0 %v948
  %1480 = vmatprep.subr.bf16.mxu0 %v945
  %1481 = vmatpush2.bf16.msra.mxu0 %v944
  %1482 = vmatprep.subr.bf16.mxu0 %v941
  %1483 = vmatpush2.bf16.msra.mxu0 %v940
  %1484 = vmatprep.subr.bf16.mxu0 %v937
  %1485 = vmatpush2.bf16.msra.mxu0 %v936
  %1486 = vmatprep.subr.bf16.mxu0 %v933
  %1487 = vmatpush2.bf16.msra.mxu0 %v932
  %1488 = vmatprep.subr.bf16.mxu0 %v929
  %1489 = vmatpush2.bf16.msra.mxu0 %v928
  %1490 = vmatprep.subr.bf16.mxu0 %v925
  %1491 = vmatpush2.bf16.msra.mxu0 %v924
  %1492 = vmatprep.subr.bf16.mxu0 %v921
  %1493 = vmatpush2.bf16.msra.mxu0 %v920
  %1494 = vmatprep.mubr.bf16.mxu0 %v274
  %1495 = vmatmul.mubr.bf16.gmra.mxu0 %v273
  %v1496 = vpop.f32.mrf.mxu0
  %v1497 = vadd.f32 %v242, %v1496
  %v1498 = vpop.f32.mrf.mxu0
  %v1499 = vadd.f32 %v246, %v1498
  %v1500 = vpop.f32.mrf.mxu0
  %v1501 = vadd.f32 %v242, %v1500
  %v1502 = vpop.f32.mrf.mxu0
  %v1503 = vadd.f32 %v246, %v1502
  %1504 = vdwg.mxu0
  %1505 = vmatprep.subr.bf16.mxu0 %v981
  %1506 = vmatpush1.bf16.msra.mxu0 %v980
  %1507 = vmatprep.subr.bf16.mxu0 %v977
  %1508 = vmatpush1.bf16.msra.mxu0 %v976
  %1509 = vmatprep.subr.bf16.mxu0 %v973
  %1510 = vmatpush1.bf16.msra.mxu0 %v972
  %1511 = vmatprep.subr.bf16.mxu0 %v969
  %1512 = vmatpush1.bf16.msra.mxu0 %v968
  %1513 = vmatprep.subr.bf16.mxu0 %v965
  %1514 = vmatpush1.bf16.msra.mxu0 %v964
  %1515 = vmatprep.subr.bf16.mxu0 %v961
  %1516 = vmatpush1.bf16.msra.mxu0 %v960
  %1517 = vmatprep.subr.bf16.mxu0 %v957
  %1518 = vmatpush1.bf16.msra.mxu0 %v956
  %1519 = vmatprep.subr.bf16.mxu0 %v953
  %1520 = vmatpush1.bf16.msra.mxu0 %v952
  %1521 = vmatprep.subr.bf16.mxu0 %v1013
  %1522 = vmatpush2.bf16.msra.mxu0 %v1012
  %1523 = vmatprep.subr.bf16.mxu0 %v1009
  %1524 = vmatpush2.bf16.msra.mxu0 %v1008
  %1525 = vmatprep.subr.bf16.mxu0 %v1005
  %1526 = vmatpush2.bf16.msra.mxu0 %v1004
  %1527 = vmatprep.subr.bf16.mxu0 %v1001
  %1528 = vmatpush2.bf16.msra.mxu0 %v1000
  %1529 = vmatprep.subr.bf16.mxu0 %v997
  %1530 = vmatpush2.bf16.msra.mxu0 %v996
  %1531 = vmatprep.subr.bf16.mxu0 %v993
  %1532 = vmatpush2.bf16.msra.mxu0 %v992
  %1533 = vmatprep.subr.bf16.mxu0 %v989
  %1534 = vmatpush2.bf16.msra.mxu0 %v988
  %1535 = vmatprep.subr.bf16.mxu0 %v985
  %1536 = vmatpush2.bf16.msra.mxu0 %v984
  %1537 = vmatprep.mubr.bf16.mxu0 %v276
  %1538 = vmatmul.mubr.bf16.gmra.mxu0 %v275
  %v1539 = vpop.f32.mrf.mxu0
  %v1540 = vadd.f32 %v1497, %v1539
  %v1541 = vpop.f32.mrf.mxu0
  %v1542 = vadd.f32 %v1499, %v1541
  %v1543 = vpop.f32.mrf.mxu0
  %v1544 = vadd.f32 %v1501, %v1543
  %v1545 = vpop.f32.mrf.mxu0
  %v1546 = vadd.f32 %v1503, %v1545
  %1547 = vdwg.mxu0
  %1548 = vmatprep.subr.bf16.mxu0 %v1045
  %1549 = vmatpush1.bf16.msra.mxu0 %v1044
  %1550 = vmatprep.subr.bf16.mxu0 %v1041
  %1551 = vmatpush1.bf16.msra.mxu0 %v1040
  %1552 = vmatprep.subr.bf16.mxu0 %v1037
  %1553 = vmatpush1.bf16.msra.mxu0 %v1036
  %1554 = vmatprep.subr.bf16.mxu0 %v1033
  %1555 = vmatpush1.bf16.msra.mxu0 %v1032
  %1556 = vmatprep.subr.bf16.mxu0 %v1029
  %1557 = vmatpush1.bf16.msra.mxu0 %v1028
  %1558 = vmatprep.subr.bf16.mxu0 %v1025
  %1559 = vmatpush1.bf16.msra.mxu0 %v1024
  %1560 = vmatprep.subr.bf16.mxu0 %v1021
  %1561 = vmatpush1.bf16.msra.mxu0 %v1020
  %1562 = vmatprep.subr.bf16.mxu0 %v1017
  %1563 = vmatpush1.bf16.msra.mxu0 %v1016
  %1564 = vmatprep.subr.bf16.mxu0 %v1077
  %1565 = vmatpush2.bf16.msra.mxu0 %v1076
  %1566 = vmatprep.subr.bf16.mxu0 %v1073
  %1567 = vmatpush2.bf16.msra.mxu0 %v1072
  %1568 = vmatprep.subr.bf16.mxu0 %v1069
  %1569 = vmatpush2.bf16.msra.mxu0 %v1068
  %1570 = vmatprep.subr.bf16.mxu0 %v1065
  %1571 = vmatpush2.bf16.msra.mxu0 %v1064
  %1572 = vmatprep.subr.bf16.mxu0 %v1061
  %1573 = vmatpush2.bf16.msra.mxu0 %v1060
  %1574 = vmatprep.subr.bf16.mxu0 %v1057
  %1575 = vmatpush2.bf16.msra.mxu0 %v1056
  %1576 = vmatprep.subr.bf16.mxu0 %v1053
  %1577 = vmatpush2.bf16.msra.mxu0 %v1052
  %1578 = vmatprep.subr.bf16.mxu0 %v1049
  %1579 = vmatpush2.bf16.msra.mxu0 %v1048
  %1580 = vmatprep.mubr.bf16.mxu0 %v278
  %1581 = vmatmul.mubr.bf16.gmra.mxu0 %v277
  %v1582 = vpop.f32.mrf.mxu0
  %v1583 = vadd.f32 %v1540, %v1582
  %v1584 = vpop.f32.mrf.mxu0
  %v1585 = vadd.f32 %v1542, %v1584
  %v1586 = vpop.f32.mrf.mxu0
  %v1587 = vadd.f32 %v1544, %v1586
  %v1588 = vpop.f32.mrf.mxu0
  %v1589 = vadd.f32 %v1546, %v1588
  %1590 = vdwg.mxu0
  %1591 = vmatprep.subr.bf16.mxu0 0
  %1592 = vmatpush1.bf16.msra.mxu0 0
  %1593 = vmatprep.subr.bf16.mxu0 0
  %1594 = vmatpush1.bf16.msra.mxu0 0
  %1595 = vmatprep.subr.bf16.mxu0 0
  %1596 = vmatpush1.bf16.msra.mxu0 0
  %1597 = vmatprep.subr.bf16.mxu0 0
  %1598 = vmatpush1.bf16.msra.mxu0 0
  %1599 = vmatprep.subr.bf16.mxu0 0
  %1600 = vmatpush1.bf16.msra.mxu0 0
  %1601 = vmatprep.subr.bf16.mxu0 0
  %1602 = vmatpush1.bf16.msra.mxu0 0
  %1603 = vmatprep.subr.bf16.mxu0 %v1085
  %1604 = vmatpush1.bf16.msra.mxu0 %v1084
  %1605 = vmatprep.subr.bf16.mxu0 %v1081
  %1606 = vmatpush1.bf16.msra.mxu0 %v1080
  %1607 = vmatprep.subr.bf16.mxu0 0
  %1608 = vmatpush2.bf16.msra.mxu0 0
  %1609 = vmatprep.subr.bf16.mxu0 0
  %1610 = vmatpush2.bf16.msra.mxu0 0
  %1611 = vmatprep.subr.bf16.mxu0 0
  %1612 = vmatpush2.bf16.msra.mxu0 0
  %1613 = vmatprep.subr.bf16.mxu0 0
  %1614 = vmatpush2.bf16.msra.mxu0 0
  %1615 = vmatprep.subr.bf16.mxu0 0
  %1616 = vmatpush2.bf16.msra.mxu0 0
  %1617 = vmatprep.subr.bf16.mxu0 0
  %1618 = vmatpush2.bf16.msra.mxu0 0
  %1619 = vmatprep.subr.bf16.mxu0 0
  %1620 = vmatpush2.bf16.msra.mxu0 0
  %1621 = vmatprep.subr.bf16.mxu0 0
  %1622 = vmatpush2.bf16.msra.mxu0 0
  %1623 = vmatprep.mubr.bf16.mxu0 0
  %1624 = vmatmul.mubr.bf16.gmra.mxu0 %v1288
  %v1625 = vpop.f32.mrf.mxu0
  %v1626 = vadd.f32 %v1583, %v1625
  %v1627 = vpop.f32.mrf.mxu0
  %v1628 = vadd.f32 %v1585, %v1627
  %v1629 = vpop.f32.mrf.mxu0
  %v1630 = vadd.f32 %v1587, %v1629
  %v1631 = vpop.f32.mrf.mxu0
  %v1632 = vadd.f32 %v1589, %v1631
  %1633 = vdwg.mxu0
  %v1634 = vmax.f32 %v1454, 0.0
  %v1635 = vmax.f32 %v1456, 0.0
  %v1636 = vmax.f32 %v1626, 0.0
  %v1637 = vmax.f32 %v1628, 0.0
  %v1638 = vmax.f32 %v1458, 0.0
  %v1639 = vmax.f32 %v1460, 0.0
  %v1640 = vmax.f32 %v1630, 0.0
  %v1641 = vmax.f32 %v1632, 0.0
  %v1642 = vpack.c.bf16 %v1638, %v1634
  %v1643 = vpack.c.bf16 %v1639, %v1635
  %v1644 = vpack.c.bf16 %v1640, %v1636
  %v1645 = vpack.c.bf16 %v1641, %v1637
  %v1646 = vld [vmem:[%s3] sm:$0xf]
  %v1647 = vld [vmem:[%s3 + $0x4] sm:$0xf]
  %v1648 = vld [vmem:[%s3 + $0x8] sm:$0xf]
  %v1649 = vld [vmem:[%s3 + $0xc] sm:$0xf]
  %v1650 = vld [vmem:[%s3 + $0x10] sm:$0xf]
  %v1651 = vld [vmem:[%s3 + $0x14] sm:$0xf]
  %v1652 = vld [vmem:[%s3 + $0x18] sm:$0xf]
  %v1653 = vld [vmem:[%s3 + $0x1c] sm:$0xf]
  %v1654 = vld [vmem:[%s3 + $0x20] sm:$0xf]
  %v1655 = vld [vmem:[%s3 + $0x24] sm:$0xf]
  %v1656 = vld [vmem:[%s3 + $0x28] sm:$0xf]
  %v1657 = vld [vmem:[%s3 + $0x2c] sm:$0xf]
  %v1658 = vld [vmem:[%s3 + $0x30] sm:$0xf]
  %v1659 = vld [vmem:[%s3 + $0x34] sm:$0xf]
  %v1660 = vld [vmem:[%s3 + $0x38] sm:$0xf]
  %v1661 = vld [vmem:[%s3 + $0x3c] sm:$0xf]
  %v1662 = vld [vmem:[%s3 + $0x40] sm:$0xf]
  %v1663 = vld [vmem:[%s3 + $0x44] sm:$0xf]
  %v1664 = vld [vmem:[%s3 + $0x48] sm:$0xf]
  %v1665 = vld [vmem:[%s3 + $0x4c] sm:$0xf]
  %v1666 = vld [vmem:[%s3 + $0x50] sm:$0xf]
  %v1667 = vld [vmem:[%s3 + $0x54] sm:$0xf]
  %v1668 = vld [vmem:[%s3 + $0x58] sm:$0xf]
  %v1669 = vld [vmem:[%s3 + $0x5c] sm:$0xf]
  %v1670 = vld [vmem:[%s3 + $0x60] sm:$0xf]
  %v1671 = vld [vmem:[%s3 + $0x64] sm:$0xf]
  %v1672 = vld [vmem:[%s3 + $0x68] sm:$0xf]
  %v1673 = vld [vmem:[%s3 + $0x6c] sm:$0xf]
  %v1674 = vld [vmem:[%s3 + $0x70] sm:$0xf]
  %v1675 = vld [vmem:[%s3 + $0x74] sm:$0xf]
  %v1676 = vld [vmem:[%s3 + $0x78] sm:$0xf]
  %v1677 = vld [vmem:[%s3 + $0x7c] sm:$0xf]
  %v1678 = vld [vmem:[%s3 + $0x80] sm:$0xf]
  %v1679 = vld [vmem:[%s3 + $0x84] sm:$0xf]
  %v1680 = vld [vmem:[%s3 + $0x88] sm:$0xf]
  %v1681 = vld [vmem:[%s3 + $0x8c] sm:$0xf]
  %v1682 = vld [vmem:[%s3 + $0x90] sm:$0xf]
  %v1683 = vld [vmem:[%s3 + $0x94] sm:$0xf]
  %v1684 = vld [vmem:[%s3 + $0x98] sm:$0xf]
  %v1685 = vld [vmem:[%s3 + $0x9c] sm:$0xf]
  %v1686 = vld [vmem:[%s3 + $0xa0] sm:$0xf]
  %v1687 = vld [vmem:[%s3 + $0xa4] sm:$0xf]
  %v1688 = vld [vmem:[%s3 + $0xa8] sm:$0xf]
  %v1689 = vld [vmem:[%s3 + $0xac] sm:$0xf]
  %v1690 = vld [vmem:[%s3 + $0xb0] sm:$0xf]
  %v1691 = vld [vmem:[%s3 + $0xb4] sm:$0xf]
  %v1692 = vld [vmem:[%s3 + $0xb8] sm:$0xf]
  %v1693 = vld [vmem:[%s3 + $0xbc] sm:$0xf]
  %v1694 = vld [vmem:[%s3 + $0xc0] sm:$0xf]
  %v1695 = vld [vmem:[%s3 + $0xc4] sm:$0xf]
  %v1696 = vld [vmem:[%s3 + $0xc8] sm:$0xf]
  %v1697 = vld [vmem:[%s3 + $0xcc] sm:$0xf]
  %v1698 = vld [vmem:[%s3 + $0xd0] sm:$0xf]
  %v1699 = vld [vmem:[%s3 + $0xd4] sm:$0xf]
  %v1700 = vld [vmem:[%s3 + $0xd8] sm:$0xf]
  %v1701 = vld [vmem:[%s3 + $0xdc] sm:$0xf]
  %v1702 = vld [vmem:[%s3 + $0xe0] sm:$0xf]
  %v1703 = vld [vmem:[%s3 + $0xe4] sm:$0xf]
  %v1704 = vld [vmem:[%s3 + $0xe8] sm:$0xf]
  %v1705 = vld [vmem:[%s3 + $0xec] sm:$0xf]
  %v1706 = vld [vmem:[%s3 + $0xf0] sm:$0xf]
  %v1707 = vld [vmem:[%s3 + $0xf4] sm:$0xf]
  %v1708 = vld [vmem:[%s3 + $0xf8] sm:$0xf]
  %v1709 = vld [vmem:[%s3 + $0xfc] sm:$0xf]
  %v1710 = vld [vmem:[%s4] sm:$0x1]
  %v1712 = vlaneseq
  %v1713 = vshrl.u32 %v1712, 7
  %v1714 = vsub.s32 0, %v1713
  %v1715 = vrot.slane %v1710, %v1714
  %v1781 = vunpack.c.l.b16 %v1646
  %v1782 = vunpack.c.l.b16 %v1647
  %v1783 = vunpack.c.l.b16 %v1648
  %v1784 = vunpack.c.l.b16 %v1649
  %v1785 = vunpack.c.l.b16 %v1650
  %v1786 = vunpack.c.l.b16 %v1651
  %v1787 = vunpack.c.l.b16 %v1652
  %v1788 = vunpack.c.l.b16 %v1653
  %v1789 = vunpack.c.l.b16 %v1654
  %v1790 = vunpack.c.l.b16 %v1655
  %v1791 = vunpack.c.l.b16 %v1656
  %v1792 = vunpack.c.l.b16 %v1657
  %v1793 = vunpack.c.l.b16 %v1658
  %v1794 = vunpack.c.l.b16 %v1659
  %v1795 = vunpack.c.l.b16 %v1660
  %v1796 = vunpack.c.l.b16 %v1661
  %v1797 = vunpack.c.l.b16 %v1662
  %v1798 = vunpack.c.l.b16 %v1663
  %v1799 = vunpack.c.l.b16 %v1664
  %v1800 = vunpack.c.l.b16 %v1665
  %v1801 = vunpack.c.l.b16 %v1666
  %v1802 = vunpack.c.l.b16 %v1667
  %v1803 = vunpack.c.l.b16 %v1668
  %v1804 = vunpack.c.l.b16 %v1669
  %v1805 = vunpack.c.l.b16 %v1670
  %v1806 = vunpack.c.l.b16 %v1671
  %v1807 = vunpack.c.l.b16 %v1672
  %v1808 = vunpack.c.l.b16 %v1673
  %v1809 = vunpack.c.l.b16 %v1674
  %v1810 = vunpack.c.l.b16 %v1675
  %v1811 = vunpack.c.l.b16 %v1676
  %v1812 = vunpack.c.l.b16 %v1677
  %v1813 = vunpack.c.l.b16 %v1678
  %v1814 = vunpack.c.l.b16 %v1679
  %v1815 = vunpack.c.l.b16 %v1680
  %v1816 = vunpack.c.l.b16 %v1681
  %v1817 = vunpack.c.l.b16 %v1682
  %v1818 = vunpack.c.l.b16 %v1683
  %v1819 = vunpack.c.l.b16 %v1684
  %v1820 = vunpack.c.l.b16 %v1685
  %v1821 = vunpack.c.l.b16 %v1686
  %v1822 = vunpack.c.l.b16 %v1687
  %v1823 = vunpack.c.l.b16 %v1688
  %v1824 = vunpack.c.l.b16 %v1689
  %v1825 = vunpack.c.l.b16 %v1690
  %v1826 = vunpack.c.l.b16 %v1691
  %v1827 = vunpack.c.l.b16 %v1692
  %v1828 = vunpack.c.l.b16 %v1693
  %v1829 = vunpack.c.l.b16 %v1694
  %v1830 = vunpack.c.l.b16 %v1695
  %v1831 = vunpack.c.l.b16 %v1696
  %v1832 = vunpack.c.l.b16 %v1697
  %v1833 = vunpack.c.l.b16 %v1698
  %v1834 = vunpack.c.l.b16 %v1699
  %v1835 = vunpack.c.l.b16 %v1700
  %v1836 = vunpack.c.l.b16 %v1701
  %v1837 = vunpack.c.l.b16 %v1702
  %v1838 = vunpack.c.l.b16 %v1703
  %v1839 = vunpack.c.l.b16 %v1704
  %v1840 = vunpack.c.l.b16 %v1705
  %v1841 = vunpack.c.l.b16 %v1706
  %v1842 = vunpack.c.l.b16 %v1707
  %v1843 = vunpack.c.l.b16 %v1708
  %v1844 = vunpack.c.l.b16 %v1709
  %v1845 = vpack.c.b16 %v1782, %v1781
  %v1846 = vpack.c.b16 %v1784, %v1783
  %v1847 = vpack.c.b16 %v1786, %v1785
  %v1848 = vpack.c.b16 %v1788, %v1787
  %v1849 = vpack.c.b16 %v1790, %v1789
  %v1850 = vpack.c.b16 %v1792, %v1791
  %v1851 = vpack.c.b16 %v1794, %v1793
  %v1852 = vpack.c.b16 %v1796, %v1795
  %v1853 = vpack.c.b16 %v1798, %v1797
  %v1854 = vpack.c.b16 %v1800, %v1799
  %v1855 = vpack.c.b16 %v1802, %v1801
  %v1856 = vpack.c.b16 %v1804, %v1803
  %v1857 = vpack.c.b16 %v1806, %v1805
  %v1858 = vpack.c.b16 %v1808, %v1807
  %v1859 = vpack.c.b16 %v1810, %v1809
  %v1860 = vpack.c.b16 %v1812, %v1811
  %v1861 = vpack.c.b16 %v1814, %v1813
  %v1862 = vpack.c.b16 %v1816, %v1815
  %v1863 = vpack.c.b16 %v1818, %v1817
  %v1864 = vpack.c.b16 %v1820, %v1819
  %v1865 = vpack.c.b16 %v1822, %v1821
  %v1866 = vpack.c.b16 %v1824, %v1823
  %v1867 = vpack.c.b16 %v1826, %v1825
  %v1868 = vpack.c.b16 %v1828, %v1827
  %v1869 = vpack.c.b16 %v1830, %v1829
  %v1870 = vpack.c.b16 %v1832, %v1831
  %v1871 = vpack.c.b16 %v1834, %v1833
  %v1872 = vpack.c.b16 %v1836, %v1835
  %v1873 = vpack.c.b16 %v1838, %v1837
  %v1874 = vpack.c.b16 %v1840, %v1839
  %v1875 = vpack.c.b16 %v1842, %v1841
  %v1876 = vpack.c.b16 %v1844, %v1843
  %1909 = vmatprep.subr.bf16.mxu0 0
  %1910 = vmatpush1.bf16.msra.mxu0 %v1852
  %1911 = vmatprep.subr.bf16.mxu0 0
  %1912 = vmatpush1.bf16.msra.mxu0 %v1851
  %1913 = vmatprep.subr.bf16.mxu0 0
  %1914 = vmatpush1.bf16.msra.mxu0 %v1850
  %1915 = vmatprep.subr.bf16.mxu0 0
  %1916 = vmatpush1.bf16.msra.mxu0 %v1849
  %1917 = vmatprep.subr.bf16.mxu0 0
  %1918 = vmatpush1.bf16.msra.mxu0 %v1848
  %1919 = vmatprep.subr.bf16.mxu0 0
  %1920 = vmatpush1.bf16.msra.mxu0 %v1847
  %1921 = vmatprep.subr.bf16.mxu0 0
  %1922 = vmatpush1.bf16.msra.mxu0 %v1846
  %1923 = vmatprep.subr.bf16.mxu0 0
  %1924 = vmatpush1.bf16.msra.mxu0 %v1845
  %1925 = vmatprep.subr.bf16.mxu0 0
  %1926 = vmatpush2.bf16.msra.mxu0 %v1860
  %1927 = vmatprep.subr.bf16.mxu0 0
  %1928 = vmatpush2.bf16.msra.mxu0 %v1859
  %1929 = vmatprep.subr.bf16.mxu0 0
  %1930 = vmatpush2.bf16.msra.mxu0 %v1858
  %1931 = vmatprep.subr.bf16.mxu0 0
  %1932 = vmatpush2.bf16.msra.mxu0 %v1857
  %1933 = vmatprep.subr.bf16.mxu0 0
  %1934 = vmatpush2.bf16.msra.mxu0 %v1856
  %1935 = vmatprep.subr.bf16.mxu0 0
  %1936 = vmatpush2.bf16.msra.mxu0 %v1855
  %1937 = vmatprep.subr.bf16.mxu0 0
  %1938 = vmatpush2.bf16.msra.mxu0 %v1854
  %1939 = vmatprep.subr.bf16.mxu0 0
  %1940 = vmatpush2.bf16.msra.mxu0 %v1853
  %1941 = vmatprep.mubr.bf16.mxu0 %v1643
  %1942 = vmatmul.mubr.bf16.gmra.mxu0 %v1642
  %v1943 = vpop.f32.mrf.mxu0
  %v1944 = vadd.f32 %v1715, %v1943
  %v1945 = vpop.f32.mrf.mxu0
  %v1946 = vpop.f32.mrf.mxu0
  %v1947 = vadd.f32 %v1715, %v1946
  %v1948 = vpop.f32.mrf.mxu0
  %1949 = vdwg.mxu0
  %1950 = vmatprep.subr.bf16.mxu0 0
  %1951 = vmatpush1.bf16.msra.mxu0 %v1868
  %1952 = vmatprep.subr.bf16.mxu0 0
  %1953 = vmatpush1.bf16.msra.mxu0 %v1867
  %1954 = vmatprep.subr.bf16.mxu0 0
  %1955 = vmatpush1.bf16.msra.mxu0 %v1866
  %1956 = vmatprep.subr.bf16.mxu0 0
  %1957 = vmatpush1.bf16.msra.mxu0 %v1865
  %1958 = vmatprep.subr.bf16.mxu0 0
  %1959 = vmatpush1.bf16.msra.mxu0 %v1864
  %1960 = vmatprep.subr.bf16.mxu0 0
  %1961 = vmatpush1.bf16.msra.mxu0 %v1863
  %1962 = vmatprep.subr.bf16.mxu0 0
  %1963 = vmatpush1.bf16.msra.mxu0 %v1862
  %1964 = vmatprep.subr.bf16.mxu0 0
  %1965 = vmatpush1.bf16.msra.mxu0 %v1861
  %1966 = vmatprep.subr.bf16.mxu0 0
  %1967 = vmatpush2.bf16.msra.mxu0 %v1876
  %1968 = vmatprep.subr.bf16.mxu0 0
  %1969 = vmatpush2.bf16.msra.mxu0 %v1875
  %1970 = vmatprep.subr.bf16.mxu0 0
  %1971 = vmatpush2.bf16.msra.mxu0 %v1874
  %1972 = vmatprep.subr.bf16.mxu0 0
  %1973 = vmatpush2.bf16.msra.mxu0 %v1873
  %1974 = vmatprep.subr.bf16.mxu0 0
  %1975 = vmatpush2.bf16.msra.mxu0 %v1872
  %1976 = vmatprep.subr.bf16.mxu0 0
  %1977 = vmatpush2.bf16.msra.mxu0 %v1871
  %1978 = vmatprep.subr.bf16.mxu0 0
  %1979 = vmatpush2.bf16.msra.mxu0 %v1870
  %1980 = vmatprep.subr.bf16.mxu0 0
  %1981 = vmatpush2.bf16.msra.mxu0 %v1869
  %1982 = vmatprep.mubr.bf16.mxu0 %v1645
  %1983 = vmatmul.mubr.bf16.gmra.mxu0 %v1644
  %v1984 = vpop.f32.mrf.mxu0
  %v1985 = vadd.f32 %v1944, %v1984
  %v1986 = vpop.f32.mrf.mxu0
  %v1987 = vpop.f32.mrf.mxu0
  %v1988 = vadd.f32 %v1947, %v1987
  %v1989 = vpop.f32.mrf.mxu0
  %1990 = vdwg.mxu0
  %1991 = vmax.xlane.f32.xlu0 %v1985
  %v1992 = vpop.xlane.xlu0 %1991
  %1993 = vmax.xlane.f32.xlu0 %v1988
  %v1994 = vpop.xlane.xlu0 %1993
  %v1995 = vsub.f32 %v1985, %v1992
  %v1996 = vsub.f32 %v1988, %v1994
  %v1997 = vmul.f32 %v1995, 1.442695
  %v1998 = vpow.pop %v1997
  %v1999 = vmul.f32 %v1996, 1.442695
  %v2000 = vpow.pop %v1999
  %2001 = vadd.xlane.f32.xlu0 %v1998
  %v2002 = vpop.xlane.xlu0 %2001
  %2003 = vadd.xlane.f32.xlu0 %v2000
  %v2004 = vpop.xlane.xlu0 %2003
  %v2005 = vlog2.pop %v2002
  %v2006 = vmul.f32 %v2005, 0.6931472
  %v2007 = vlog2.pop %v2004
  %v2008 = vmul.f32 %v2007, 0.6931472
  %v2009 = vsub.f32 %v1995, %v2006
  %v2010 = vsub.f32 %v1996, %v2008
  %2011 = vst [vmem:[%s5] sm:$0xff] %v2009
  %2012 = vst [vmem:[%s5 + $0x8] sm:$0xff] %v2010
  // Predicated region
  $region22: #{net_forward.5} parent=0 // pred_check
    _
  $region23: #{net_forward.5} parent=0 // pred_check_branch
    %2014 = sbr.rel (0) target = $region25
  $region24: #{net_forward.5} parent=0 // pred_region
    _
  $region25: #{net_forward.5} parent=0 // pred_fallthru
    _
  // Predicated region
  $region26: #{net_forward.5} parent=0 // pred_check
    _
  $region27: #{net_forward.5} parent=0 // pred_check_branch
    %2016 = sbr.rel (0) target = $region29
  $region28: #{net_forward.5} parent=0 // pred_region
    _
  $region29: #{net_forward.5} parent=0 // pred_fallthru
    _

</llo_original>
